<compile_context>
chip_gen: v7x
topology: tpu7x:2x2x1
jax: 0.10.0
libtpu: 0.0.40
codegen_flags: <defaults>
</compile_context>

<pallas_src>
import functools

import jax
import jax.numpy as jnp
from jax.experimental import pallas as pl
from jax.experimental.pallas import tpu as pltpu


def _make_divisible(v, divisor=8, min_value=None):
    min_value = min_value or divisor
    new_v = max(min_value, int(v + divisor / 2) // divisor * divisor)
    if new_v < 0.9 * v:
        new_v += divisor
    return new_v


# -----------------------------------------------------------------------------
# Kernel
# -----------------------------------------------------------------------------
def _cond_conv_residual_kernel(
    x_ref,      # (1, P, Cb)          packed input (bf16/f32), lane = b*Cin + c
    wr_ref,     # (Cb, bblk*E) f32    block-diag routing_fn weight
    sel_ref,    # (bblk*E, E*(Mb+Ob)) bf16 0/1: routing -> per-lane scale (pw | pwl)
    wpw_ref,    # (Cb, E*Mb)   bf16   block-diag expert 1x1 expand weights
    wdw_ref,    # (E, 9, Mb)   bf16   lane-tiled expert 3x3 depthwise taps
    wpwl_ref,   # (Mb, E*Ob)   bf16   block-diag expert 1x1 project weights
    bn_ref,     # (8, L)       f32    rows: bn1_s,bn1_b,bn2_s,bn2_b,bn3_s,bn3_b,routing_bias,pad
    o_ref,      # (1, P, Ob)          packed output, lane = b*Cout + c
    *, num_experts, mb, ob, bblk_e, h, w, has_residual,
):
    f32, bf16 = jnp.float32, jnp.bfloat16
    E = num_experts

    x = x_ref[0]                                      # (P, Cb)
    P, cb = x.shape
    x_f32 = x.astype(f32)
    bn = bn_ref[...]                                  # (8, L) f32

    # ---- CondConv routing: global avg pool + linear + sigmoid ------------------
    pooled = jnp.mean(x_f32, axis=0, keepdims=True)                            # (1, Cb)
    logits = jnp.dot(pooled, wr_ref[...], preferred_element_type=f32)
    logits = logits + bn[6:7, :bblk_e]
    routing = jax.nn.sigmoid(logits)                                           # (1, bblk*E)
    # Expand routing to per-packed-lane scales with one tiny MXU matmul through a
    # 0/1 selection matrix (exact per-lane pick of a routing value):
    #   rvec[0,           e*Mb + b*Mid  + m] == routing[b, e]   (pw / dw lanes)
    #   rvec[0, E*Mb + e*Ob + b*Cout + c]    == routing[b, e]   (pwl lanes)
    rvec = jnp.dot(routing.astype(bf16), sel_ref[...],
                   preferred_element_type=f32)                                 # (1, E*(Mb+Ob))

    # ---- mix expert kernels with routing weights (lane-dense f32 FMAs) ---------
    w_pw = jnp.zeros((cb, mb), f32)                   # block-diag per-sample (Cin, Mid)
    w_pwl = jnp.zeros((mb, ob), f32)                  # block-diag per-sample (Mid, Cout)
    w_dw = jnp.zeros((9, mb), f32)                    # per-tap packed depthwise taps
    for e in range(E):
        r_m = rvec[:, e * mb:(e + 1) * mb]                                  # (1, Mb)
        r_o = rvec[:, E * mb + e * ob: E * mb + (e + 1) * ob]               # (1, Ob)
        w_pw = w_pw + wpw_ref[:, e * mb:(e + 1) * mb] * r_m                 # bf16*f32 -> f32
        w_pwl = w_pwl + wpwl_ref[:, e * ob:(e + 1) * ob] * r_o
        w_dw = w_dw + wdw_ref[e] * r_m
    # TODO(synk): at real EfficientNet channel counts (Cin/Mid >= ~64) drop the
    # block-diagonal sample packing for the two 1x1 matmuls (it wastes bblk x MXU
    # FLOPs on zero blocks) and do per-sample matmuls gridded over batch instead.

    # ---- conv_pw (1x1 expand) + bn1 + ReLU: bf16 MXU operands, f32 accum -------
    y = jnp.dot(x.astype(bf16), w_pw.astype(bf16), preferred_element_type=f32)  # (P, Mb)
    y = jnp.maximum(y * bn[0:1, :mb] + bn[1:2, :mb], 0.0)

    # ---- conv_dw (3x3 depthwise, stride 1, pad 1) + bn2 + ReLU ------------------
    # Each tap is a static pltpu.roll (XLU slot) of the flat (H*W, Mb) slab.
    # Column validity is pre-applied to two shared SOURCE variants (wrap-safe since
    # P is a multiple of W); row validity is applied once per row-offset group.
    pos = jax.lax.broadcasted_iota(jnp.int32, (P, mb), 0)
    col = (pos & (w - 1)) if (w & (w - 1)) == 0 else (pos % w)   # no div/mod if W=2^k
    y_oxm = jnp.where(col != (w - 1), y, 0.0)   # ox=-1: wrapped source col W-1 invalid
    y_oxp = jnp.where(col != 0, y, 0.0)         # ox=+1: wrapped source col 0   invalid
    src = {-1: y_oxm, 0: y, 1: y_oxp}

    z = jnp.zeros((P, mb), f32)
    for oy in (-1, 0, 1):
        part = None
        for ox in (-1, 0, 1):
            t = (oy + 1) * 3 + (ox + 1)          # tap index 0..8
            d = oy * w + ox                      # flat (row-major) source offset
            s = src[ox]
            if d != 0:
                s = pltpu.roll(s, shift=(-d) % P, axis=0)   # s[p] = src[p + d]
            term = s * w_dw[t:t + 1]             # (1, Mb) tap broadcast
            part = term if part is None else part + term
        if oy == -1:
            part = jnp.where(pos >= w, part, 0.0)             # dest row 0 invalid
        elif oy == 1:
            part = jnp.where(pos < (h - 1) * w, part, 0.0)    # dest last row invalid
        z = z + part
    z = jnp.maximum(z * bn[2:3, :mb] + bn[3:4, :mb], 0.0)
    # TODO(synk): on v6e/v7x (bf16 VPU) this VALU-bound tap chain could run in
    # bf16 (2 elems/lane, half the vreg pressure); kept f32 until packed-sublane
    # pltpu.roll is validated and because v5e has no bf16 VPU.

    # ---- SE: se_layer=None -> Identity ------------------------------------------
    # ---- conv_pwl (1x1 project) + bn3 (+ residual, f32) --------------------------
    o = jnp.dot(z.astype(bf16), w_pwl.astype(bf16), preferred_element_type=f32)  # (P, Ob)
    o = o * bn[4:5, :ob] + bn[5:6, :ob]
    if has_residual:
        o = o + x_f32            # Cin == Cout and identical lane packing
    o_ref[0] = o.astype(o_ref.dtype)


# -----------------------------------------------------------------------------
# Packing helpers (run once per weight update / layout boundary)
# -----------------------------------------------------------------------------
def _choose_bblk(batch, in_chs, mid_chs, out_chs, max_lanes=1024):
    """Samples packed per grid step.

    Prefer lane-dense packed widths (multiples of 128 -> unmasked vld/vst), then
    >= 2 grid steps (keep both v7x TensorCores busy), then fatter blocks.
    """
    best, best_key = 1, None
    for d in range(1, batch + 1):
        if batch % d:
            continue
        cb, mb, ob = d * in_chs, d * mid_chs, d * out_chs
        if max(cb, mb, ob) > max_lanes:
            continue
        dense = (cb % 128 == 0) + (mb % 128 == 0) + (ob % 128 == 0)
        key = (dense, (batch // d) >= 2, ob)
        if best_key is None or key > best_key:
            best_key, best = key, d
    return best
    # TODO(synk): for batch sizes with no dense divisor, pad the batch to the
    # nearest multiple of the dense bblk instead of falling back to narrow packing.


def pack_params(params, bblk, *, weight_dtype=jnp.bfloat16):
    """Build routing-independent packed operands ONCE (per weight update)."""
    f32 = jnp.float32
    E, Cin, Mid = params["experts_pw"].shape
    Cout = params["experts_pwl"].shape[2]
    Cb, Mb, Ob = bblk * Cin, bblk * Mid, bblk * Cout

    eye_b = jnp.eye(bblk, dtype=f32)
    eye_e = jnp.eye(E, dtype=f32)

    # routing Linear weight, block-diagonal per packed sample (kept f32: tiny,
    # precision-critical for the sigmoid gates)
    wr = jnp.einsum("bB,ce->bcBe", eye_b, params["wr"].astype(f32)).reshape(Cb, bblk * E)

    # 0/1 selection matrices: routing (1, bblk*E) -> per-lane scales; fused pw|pwl
    sel_pw = jnp.einsum("bB,eF,m->beFBm", eye_b, eye_e,
                        jnp.ones((Mid,), f32)).reshape(bblk * E, E * Mb)
    sel_pwl = jnp.einsum("bB,eF,o->beFBo", eye_b, eye_e,
                         jnp.ones((Cout,), f32)).reshape(bblk * E, E * Ob)
    sel = jnp.concatenate([sel_pw, sel_pwl], axis=1).astype(weight_dtype)

    # expert conv weights, block-diagonal per packed sample, stored bf16
    wpw = jnp.einsum("bB,ecm->bceBm", eye_b,
                     params["experts_pw"].astype(f32)).reshape(Cb, E * Mb).astype(weight_dtype)
    wpwl = jnp.einsum("bB,emo->bmeBo", eye_b,
                      params["experts_pwl"].astype(f32)).reshape(Mb, E * Ob).astype(weight_dtype)
    wdw = jnp.tile(params["experts_dw"].astype(f32), (1, 1, bblk)).astype(weight_dtype)

    # folded-BN scales/biases + routing bias fused into ONE (8, L) f32 operand
    L = max(Mb, Ob, bblk * E)
    L = ((L + 127) // 128) * 128

    def _row(vec, n):
        return jnp.zeros((L,), f32).at[:n].set(vec.reshape(-1).astype(f32))

    bn = jnp.stack([
        _row(jnp.tile(params["bn1_s"], (1, bblk)), Mb),
        _row(jnp.tile(params["bn1_b"], (1, bblk)), Mb),
        _row(jnp.tile(params["bn2_s"], (1, bblk)), Mb),
        _row(jnp.tile(params["bn2_b"], (1, bblk)), Mb),
        _row(jnp.tile(params["bn3_s"], (1, bblk)), Ob),
        _row(jnp.tile(params["bn3_b"], (1, bblk)), Ob),
        _row(jnp.tile(params["br"].reshape(1, E), (1, bblk)), bblk * E),
        jnp.zeros((L,), f32),
    ])
    return dict(wr=wr, sel=sel, wpw=wpw, wdw=wdw, wpwl=wpwl, bn=bn)


def _nchw_to_slab(x_nchw, bblk, io_dtype):
    B, C, H, W = x_nchw.shape
    assert B % bblk == 0
    G = B // bblk
    xp = (x_nchw.reshape(G, bblk, C, H, W)
          .transpose(0, 3, 4, 1, 2)
          .reshape(G, H * W, bblk * C))
    return xp.astype(io_dtype)


def _slab_to_nchw(slab, bblk, H, W, out_dtype):
    G, _, L = slab.shape
    C = L // bblk
    x = (slab.reshape(G, H, W, bblk, C)
         .transpose(0, 3, 4, 1, 2)
         .reshape(G * bblk, C, H, W))
    return x.astype(out_dtype)


# -----------------------------------------------------------------------------
# Forward passes
# -----------------------------------------------------------------------------
def cond_conv_residual_slab(xp, packed, *, h, w, has_residual):
    """Forward on the packed slab layout (use this when chaining blocks)."""
    G, P, Cb = xp.shape
    E, _, Mb = packed["wdw"].shape
    Ob = packed["wpwl"].shape[1] // E
    bblk_e = packed["wr"].shape[1]
    assert P == h * w

    kernel = functools.partial(
        _cond_conv_residual_kernel,
        num_experts=E, mb=Mb, ob=Ob, bblk_e=bblk_e,
        h=h, w=w, has_residual=has_residual)

    const2 = lambda g: (0, 0)        # parameter tensors: same block every step
    const3 = lambda g: (0, 0, 0)

    # Explicit VMEM budget (v7x has 64 MiB/TC -- do not rely on defaults).
    def nbytes(a):
        return a.size * a.dtype.itemsize
    est = (2 * (P * Cb + P * Ob) * xp.dtype.itemsize          # dbl-buffered in/out block
           + sum(nbytes(packed[k]) for k in packed)           # constant operands
           + P * max(Cb, Mb, Ob) * 4 * 8)                     # f32 intermediates / masks
    vmem_limit = int(min(64 * 1024 * 1024, max(16 * 1024 * 1024, 4 * est)))

    # TODO(synk): constant operands could be single-buffered (pipeline_mode=
    # pl.Buffered(1)) once validated on the grid pipeline; the fused bn operand
    # already cuts their descriptor/VMEM cost substantially.
    # TODO(synk): at real EfficientNet feature-map sizes (e.g. 112x112, Mid>=96)
    # add spatial row-block tiling with an explicit 1-row halo (the roll+mask
    # depthwise is only correct when the whole H*W frame is resident per block).
    out = pl.pallas_call(
        kernel,
        out_shape=jax.ShapeDtypeStruct((G, P, Ob), xp.dtype),
        grid_spec=pltpu.PrefetchScalarGridSpec(
            num_scalar_prefetch=0,
            grid=(G,),
            in_specs=[
                pl.BlockSpec((1, P, Cb), lambda g: (g, 0, 0)),
                pl.BlockSpec(packed["wr"].shape, const2),
                pl.BlockSpec(packed["sel"].shape, const2),
                pl.BlockSpec(packed["wpw"].shape, const2),
                pl.BlockSpec(packed["wdw"].shape, const3),
                pl.BlockSpec(packed["wpwl"].shape, const2),
                pl.BlockSpec(packed["bn"].shape, const2),
            ],
            out_specs=pl.BlockSpec((1, P, Ob), lambda g: (g, 0, 0)),
        ),
        compiler_params=pltpu.CompilerParams(
            dimension_semantics=("parallel",),      # shard batch groups across TCs
            vmem_limit_bytes=vmem_limit),
    )(xp, packed["wr"], packed["sel"], packed["wpw"], packed["wdw"],
      packed["wpwl"], packed["bn"])
    return out


def cond_conv_residual(x_nchw, packed, bblk, *, stride=1,
                       io_dtype=jnp.bfloat16, out_dtype=None):
    """CondConvResidual forward.  x_nchw: (B, Cin, H, W) (PyTorch layout).

    NCHW convenience wrapper; for chained blocks keep activations in the packed
    slab layout and call cond_conv_residual_slab directly (avoids the HBM
    transpose passes on each side).
    """
    # TODO(synk): stride>1 / dilated depthwise not implemented (config uses stride=1).
    assert stride == 1, "only stride=1 is implemented"
    B, Cin, H, W = x_nchw.shape
    E, _, Mb = packed["wdw"].shape
    Ob = packed["wpwl"].shape[1] // E
    Cout = Ob // bblk
    has_residual = (Cin == Cout) and (stride == 1)
    out_dtype = out_dtype or x_nchw.dtype

    xp = _nchw_to_slab(x_nchw, bblk, io_dtype)
    out = cond_conv_residual_slab(xp, packed, h=H, w=W, has_residual=has_residual)
    return _slab_to_nchw(out, bblk, H, W, out_dtype)


# -----------------------------------------------------------------------------
# Parameter init + pure-JAX reference
# -----------------------------------------------------------------------------
def init_params(key, in_chs, out_chs, mid_chs, num_experts, dw_k=3, eps=1e-5):
    ks = jax.random.split(key, 17)

    def n(k, shape, scale):
        return jax.random.normal(k, shape, jnp.float32) * scale

    params = {
        "wr": n(ks[0], (in_chs, num_experts), 0.2),        # routing Linear weight (Cin, E)
        "br": n(ks[1], (1, num_experts), 0.2),             # routing Linear bias
        "experts_pw": n(ks[2], (num_experts, in_chs, mid_chs), 0.3),
        "experts_dw": n(ks[3], (num_experts, dw_k * dw_k, mid_chs), 0.3),
        "experts_pwl": n(ks[4], (num_experts, mid_chs, out_chs), 0.3),
    }

    def bn(kg, kb, km, kv, c):
        gamma = 1.0 + 0.1 * jax.random.normal(kg, (c,), jnp.float32)
        beta = 0.1 * jax.random.normal(kb, (c,), jnp.float32)
        mean = 0.1 * jax.random.normal(km, (c,), jnp.float32)
        var = jnp.abs(jax.random.normal(kv, (c,), jnp.float32)) + 0.5
        s = gamma * jax.lax.rsqrt(var + eps)
        b = beta - mean * s
        return s.reshape(1, c), b.reshape(1, c)

    params["bn1_s"], params["bn1_b"] = bn(ks[5], ks[6], ks[7], ks[8], mid_chs)
    params["bn2_s"], params["bn2_b"] = bn(ks[9], ks[10], ks[11], ks[12], mid_chs)
    params["bn3_s"], params["bn3_b"] = bn(ks[13], ks[14], ks[15], ks[16], out_chs)
    return params


def ref_forward(x_nchw, params, has_residual=True):
    """Pure-JAX f32 reference of the same math (NHWC internally)."""
    x = jnp.transpose(x_nchw, (0, 2, 3, 1)).astype(jnp.float32)
    B, H, W, Cin = x.shape
    pooled = x.mean(axis=(1, 2))                                     # (B, Cin)
    routing = jax.nn.sigmoid(pooled @ params["wr"] + params["br"])   # (B, E)

    w_pw = jnp.einsum("be,ecm->bcm", routing, params["experts_pw"])
    y = jnp.einsum("bhwc,bcm->bhwm", x, w_pw)
    y = jnp.maximum(y * params["bn1_s"] + params["bn1_b"], 0.0)

    w_dw = jnp.einsum("be,ekm->bkm", routing, params["experts_dw"])
    yp = jnp.pad(y, ((0, 0), (1, 1), (1, 1), (0, 0)))
    z = jnp.zeros_like(y)
    for dy in range(3):
        for dx in range(3):
            z = z + yp[:, dy:dy + H, dx:dx + W, :] * w_dw[:, dy * 3 + dx, :][:, None, None, :]
    z = jnp.maximum(z * params["bn2_s"] + params["bn2_b"], 0.0)

    w_pwl = jnp.einsum("be,emo->bmo", routing, params["experts_pwl"])
    o = jnp.einsum("bhwm,bmo->bhwo", z, w_pwl)
    o = o * params["bn3_s"] + params["bn3_b"]
    if has_residual:
        o = o + x
    return jnp.transpose(o, (0, 3, 1, 2))


if __name__ == "__main__":
    B, Cin, H, W = 16, 16, 16, 16
    out_chs = 16
    exp_ratio = 2.0
    num_experts = 4
    mid_chs = _make_divisible(Cin * exp_ratio)   # 32

    key = jax.random.PRNGKey(0)
    kx, kp = jax.random.split(key)
    x = jax.random.normal(kx, (B, Cin, H, W), jnp.float32)   # PyTorch NCHW input
    params = init_params(kp, Cin, out_chs, mid_chs, num_experts)

    # bblk=8 -> Cb=Ob=128, Mb=256 (lane-dense), G=2 (both v7x TensorCores busy).
    bblk = _choose_bblk(B, Cin, mid_chs, out_chs)

    # Packed, routing-independent operands built ONCE (hoisted out of the forward).
    packed = jax.block_until_ready(pack_params(params, bblk))

    fwd = jax.jit(functools.partial(cond_conv_residual, bblk=bblk))
    out = jax.block_until_ready(fwd(x, packed))
    assert out.shape == (B, out_chs, H, W), out.shape

    ref = ref_forward(x, params, has_residual=True)
    err = jnp.abs(out.astype(jnp.float32) - ref)
    max_err = float(jnp.max(err))
    mean_err = float(jnp.mean(err))
    scale = float(jnp.max(jnp.abs(ref)))
    # bf16 MXU operands, bf16 routing expansion and bf16 I/O slabs vs. the all-f32
    # reference -> allow a small relative tolerance on the max error, and a
    # modest absolute tolerance on the mean.
    assert mean_err < 3e-2, f"mean abs err too large: {mean_err}"
    assert max_err < 6e-2 * scale + 5e-2, f"max abs err too large: {max_err} (ref max {scale})"
    print("KERNEL_OK")
</pallas_src>

<mosaic_0001>
module attributes {stable_mosaic.version = 11 : i64} {
  func.func @_cond_conv_residual_kernel(%arg0: i32, %arg1: memref<1x256x128xbf16, #tpu.memory_space<vmem>>, %arg2: memref<128x32xf32, #tpu.memory_space<vmem>>, %arg3: memref<32x1536xbf16, #tpu.memory_space<vmem>>, %arg4: memref<128x1024xbf16, #tpu.memory_space<vmem>>, %arg5: memref<4x9x256xbf16, #tpu.memory_space<vmem>>, %arg6: memref<256x512xbf16, #tpu.memory_space<vmem>>, %arg7: memref<8x256xf32, #tpu.memory_space<vmem>>, %arg8: memref<1x256x128xbf16, #tpu.memory_space<vmem>>) attributes {dimension_semantics = [#tpu.dimension_semantics<parallel>], iteration_bounds = array<i64: 2>, scalar_prefetch = 0 : i64, scratch_operands = 0 : i64, tpu.core_type = #tpu.core_type<tc>, window_params = [{transform_indices = @transform_0, window_bounds = array<i64: 1, 256, 128>}, {pipeline_mode = #tpu.pipeline_mode<synchronous>, transform_indices = @transform_1, window_bounds = array<i64: 128, 32>}, {pipeline_mode = #tpu.pipeline_mode<synchronous>, transform_indices = @transform_2, window_bounds = array<i64: 32, 1536>}, {pipeline_mode = #tpu.pipeline_mode<synchronous>, transform_indices = @transform_3, window_bounds = array<i64: 128, 1024>}, {pipeline_mode = #tpu.pipeline_mode<synchronous>, transform_indices = @transform_4, window_bounds = array<i64: 4, 9, 256>}, {pipeline_mode = #tpu.pipeline_mode<synchronous>, transform_indices = @transform_5, window_bounds = array<i64: 256, 512>}, {pipeline_mode = #tpu.pipeline_mode<synchronous>, transform_indices = @transform_6, window_bounds = array<i64: 8, 256>}, {transform_indices = @transform_7, window_bounds = array<i64: 1, 256, 128>}]} {
    %c0 = arith.constant 0 : index
    %c0_0 = arith.constant 0 : index
    %c0_1 = arith.constant 0 : index
    %0 = vector.load %arg1[%c0, %c0_0, %c0_1] : memref<1x256x128xbf16, #tpu.memory_space<vmem>>, vector<1x256x128xbf16>
    %1 = vector.shape_cast %0 : vector<1x256x128xbf16> to vector<256x128xbf16>
    %2 = arith.extf %1 : vector<256x128xbf16> to vector<256x128xf32>
    %c0_2 = arith.constant 0 : index
    %c0_3 = arith.constant 0 : index
    %3 = vector.load %arg7[%c0_2, %c0_3] : memref<8x256xf32, #tpu.memory_space<vmem>>, vector<8x256xf32>
    %cst = arith.constant dense<0.000000e+00> : vector<128xf32>
    %4 = vector.multi_reduction <add>, %2, %cst [0] : vector<256x128xf32> to vector<128xf32>
    %5 = vector.shape_cast %4 : vector<128xf32> to vector<1x128xf32>
    %cst_4 = arith.constant 2.560000e+02 : f32
    %6 = vector.broadcast %cst_4 : f32 to vector<1x128xf32>
    %7 = arith.divf %5, %6 : vector<1x128xf32>
    %c0_5 = arith.constant 0 : index
    %c0_6 = arith.constant 0 : index
    %8 = vector.load %arg2[%c0_5, %c0_6] : memref<128x32xf32, #tpu.memory_space<vmem>>, vector<128x32xf32>
    %cst_7 = arith.constant dense<0.000000e+00> : vector<1x32xf32>
    %9 = tpu.matmul %7, %8, %cst_7 {dimension_numbers = #tpu.dot_dimension_numbers<[1], [0], [0], [1], [0, 0, 1, 1], [], []>} : vector<1x128xf32>, vector<128x32xf32>, vector<1x32xf32> -> vector<1x32xf32>
    %10 = vector.extract_strided_slice %3 {offsets = [6, 0], sizes = [1, 32], strides = [1, 1]} : vector<8x256xf32> to vector<1x32xf32>
    %11 = arith.addf %9, %10 : vector<1x32xf32>
    %12 = arith.negf %11 : vector<1x32xf32>
    %13 = math.exp %12 : vector<1x32xf32>
    %cst_8 = arith.constant 1.000000e+00 : f32
    %14 = vector.broadcast %cst_8 : f32 to vector<1x32xf32>
    %15 = arith.addf %14, %13 : vector<1x32xf32>
    %16 = arith.divf %14, %15 : vector<1x32xf32>
    %17 = arith.truncf %16 : vector<1x32xf32> to vector<1x32xbf16>
    %c0_9 = arith.constant 0 : index
    %c0_10 = arith.constant 0 : index
    %18 = vector.load %arg3[%c0_9, %c0_10] : memref<32x1536xbf16, #tpu.memory_space<vmem>>, vector<32x1536xbf16>
    %cst_11 = arith.constant dense<0.000000e+00> : vector<1x1536xf32>
    %19 = tpu.matmul %17, %18, %cst_11 {dimension_numbers = #tpu.dot_dimension_numbers<[1], [0], [0], [1], [0, 0, 1, 1], [], []>} : vector<1x32xbf16>, vector<32x1536xbf16>, vector<1x1536xf32> -> vector<1x1536xf32>
    %cst_12 = arith.constant 0.000000e+00 : f32
    %20 = vector.broadcast %cst_12 : f32 to vector<128x256xf32>
    %cst_13 = arith.constant 0.000000e+00 : f32
    %21 = vector.broadcast %cst_13 : f32 to vector<256x128xf32>
    %cst_14 = arith.constant 0.000000e+00 : f32
    %22 = vector.broadcast %cst_14 : f32 to vector<9x256xf32>
    %23 = vector.extract_strided_slice %19 {offsets = [0, 0], sizes = [1, 256], strides = [1, 1]} : vector<1x1536xf32> to vector<1x256xf32>
    %24 = vector.extract_strided_slice %19 {offsets = [0, 1024], sizes = [1, 128], strides = [1, 1]} : vector<1x1536xf32> to vector<1x128xf32>
    %c0_15 = arith.constant 0 : index
    %c0_16 = arith.constant 0 : index
    %25 = vector.load %arg4[%c0_15, %c0_16] : memref<128x1024xbf16, #tpu.memory_space<vmem>>, vector<128x256xbf16>
    %26 = arith.extf %25 : vector<128x256xbf16> to vector<128x256xf32>
    %27 = vector.broadcast %23 : vector<1x256xf32> to vector<128x256xf32>
    %28 = arith.mulf %26, %27 : vector<128x256xf32>
    %29 = arith.addf %20, %28 : vector<128x256xf32>
    %c0_17 = arith.constant 0 : index
    %c0_18 = arith.constant 0 : index
    %30 = vector.load %arg6[%c0_17, %c0_18] : memref<256x512xbf16, #tpu.memory_space<vmem>>, vector<256x128xbf16>
    %31 = arith.extf %30 : vector<256x128xbf16> to vector<256x128xf32>
    %32 = vector.broadcast %24 : vector<1x128xf32> to vector<256x128xf32>
    %33 = arith.mulf %31, %32 : vector<256x128xf32>
    %34 = arith.addf %21, %33 : vector<256x128xf32>
    %c0_19 = arith.constant 0 : index
    %c0_20 = arith.constant 0 : index
    %c0_21 = arith.constant 0 : index
    %35 = vector.load %arg5[%c0_19, %c0_20, %c0_21] : memref<4x9x256xbf16, #tpu.memory_space<vmem>>, vector<1x9x256xbf16>
    %36 = vector.shape_cast %35 : vector<1x9x256xbf16> to vector<9x256xbf16>
    %37 = arith.extf %36 : vector<9x256xbf16> to vector<9x256xf32>
    %38 = vector.broadcast %23 : vector<1x256xf32> to vector<9x256xf32>
    %39 = arith.mulf %37, %38 : vector<9x256xf32>
    %40 = arith.addf %22, %39 : vector<9x256xf32>
    %41 = vector.extract_strided_slice %19 {offsets = [0, 256], sizes = [1, 256], strides = [1, 1]} : vector<1x1536xf32> to vector<1x256xf32>
    %42 = vector.extract_strided_slice %19 {offsets = [0, 1152], sizes = [1, 128], strides = [1, 1]} : vector<1x1536xf32> to vector<1x128xf32>
    %c0_22 = arith.constant 0 : index
    %c256 = arith.constant 256 : index
    %43 = vector.load %arg4[%c0_22, %c256] : memref<128x1024xbf16, #tpu.memory_space<vmem>>, vector<128x256xbf16>
    %44 = arith.extf %43 : vector<128x256xbf16> to vector<128x256xf32>
    %45 = vector.broadcast %41 : vector<1x256xf32> to vector<128x256xf32>
    %46 = arith.mulf %44, %45 : vector<128x256xf32>
    %47 = arith.addf %29, %46 : vector<128x256xf32>
    %c0_23 = arith.constant 0 : index
    %c128 = arith.constant 128 : index
    %48 = vector.load %arg6[%c0_23, %c128] : memref<256x512xbf16, #tpu.memory_space<vmem>>, vector<256x128xbf16>
    %49 = arith.extf %48 : vector<256x128xbf16> to vector<256x128xf32>
    %50 = vector.broadcast %42 : vector<1x128xf32> to vector<256x128xf32>
    %51 = arith.mulf %49, %50 : vector<256x128xf32>
    %52 = arith.addf %34, %51 : vector<256x128xf32>
    %c1 = arith.constant 1 : index
    %c0_24 = arith.constant 0 : index
    %c0_25 = arith.constant 0 : index
    %53 = vector.load %arg5[%c1, %c0_24, %c0_25] : memref<4x9x256xbf16, #tpu.memory_space<vmem>>, vector<1x9x256xbf16>
    %54 = vector.shape_cast %53 : vector<1x9x256xbf16> to vector<9x256xbf16>
    %55 = arith.extf %54 : vector<9x256xbf16> to vector<9x256xf32>
    %56 = vector.broadcast %41 : vector<1x256xf32> to vector<9x256xf32>
    %57 = arith.mulf %55, %56 : vector<9x256xf32>
    %58 = arith.addf %40, %57 : vector<9x256xf32>
    %59 = vector.extract_strided_slice %19 {offsets = [0, 512], sizes = [1, 256], strides = [1, 1]} : vector<1x1536xf32> to vector<1x256xf32>
    %60 = vector.extract_strided_slice %19 {offsets = [0, 1280], sizes = [1, 128], strides = [1, 1]} : vector<1x1536xf32> to vector<1x128xf32>
    %c0_26 = arith.constant 0 : index
    %c512 = arith.constant 512 : index
    %61 = vector.load %arg4[%c0_26, %c512] : memref<128x1024xbf16, #tpu.memory_space<vmem>>, vector<128x256xbf16>
    %62 = arith.extf %61 : vector<128x256xbf16> to vector<128x256xf32>
    %63 = vector.broadcast %59 : vector<1x256xf32> to vector<128x256xf32>
    %64 = arith.mulf %62, %63 : vector<128x256xf32>
    %65 = arith.addf %47, %64 : vector<128x256xf32>
    %c0_27 = arith.constant 0 : index
    %c256_28 = arith.constant 256 : index
    %66 = vector.load %arg6[%c0_27, %c256_28] : memref<256x512xbf16, #tpu.memory_space<vmem>>, vector<256x128xbf16>
    %67 = arith.extf %66 : vector<256x128xbf16> to vector<256x128xf32>
    %68 = vector.broadcast %60 : vector<1x128xf32> to vector<256x128xf32>
    %69 = arith.mulf %67, %68 : vector<256x128xf32>
    %70 = arith.addf %52, %69 : vector<256x128xf32>
    %c2 = arith.constant 2 : index
    %c0_29 = arith.constant 0 : index
    %c0_30 = arith.constant 0 : index
    %71 = vector.load %arg5[%c2, %c0_29, %c0_30] : memref<4x9x256xbf16, #tpu.memory_space<vmem>>, vector<1x9x256xbf16>
    %72 = vector.shape_cast %71 : vector<1x9x256xbf16> to vector<9x256xbf16>
    %73 = arith.extf %72 : vector<9x256xbf16> to vector<9x256xf32>
    %74 = vector.broadcast %59 : vector<1x256xf32> to vector<9x256xf32>
    %75 = arith.mulf %73, %74 : vector<9x256xf32>
    %76 = arith.addf %58, %75 : vector<9x256xf32>
    %77 = vector.extract_strided_slice %19 {offsets = [0, 768], sizes = [1, 256], strides = [1, 1]} : vector<1x1536xf32> to vector<1x256xf32>
    %78 = vector.extract_strided_slice %19 {offsets = [0, 1408], sizes = [1, 128], strides = [1, 1]} : vector<1x1536xf32> to vector<1x128xf32>
    %c0_31 = arith.constant 0 : index
    %c768 = arith.constant 768 : index
    %79 = vector.load %arg4[%c0_31, %c768] : memref<128x1024xbf16, #tpu.memory_space<vmem>>, vector<128x256xbf16>
    %80 = arith.extf %79 : vector<128x256xbf16> to vector<128x256xf32>
    %81 = vector.broadcast %77 : vector<1x256xf32> to vector<128x256xf32>
    %82 = arith.mulf %80, %81 : vector<128x256xf32>
    %83 = arith.addf %65, %82 : vector<128x256xf32>
    %c0_32 = arith.constant 0 : index
    %c384 = arith.constant 384 : index
    %84 = vector.load %arg6[%c0_32, %c384] : memref<256x512xbf16, #tpu.memory_space<vmem>>, vector<256x128xbf16>
    %85 = arith.extf %84 : vector<256x128xbf16> to vector<256x128xf32>
    %86 = vector.broadcast %78 : vector<1x128xf32> to vector<256x128xf32>
    %87 = arith.mulf %85, %86 : vector<256x128xf32>
    %88 = arith.addf %70, %87 : vector<256x128xf32>
    %c3 = arith.constant 3 : index
    %c0_33 = arith.constant 0 : index
    %c0_34 = arith.constant 0 : index
    %89 = vector.load %arg5[%c3, %c0_33, %c0_34] : memref<4x9x256xbf16, #tpu.memory_space<vmem>>, vector<1x9x256xbf16>
    %90 = vector.shape_cast %89 : vector<1x9x256xbf16> to vector<9x256xbf16>
    %91 = arith.extf %90 : vector<9x256xbf16> to vector<9x256xf32>
    %92 = vector.broadcast %77 : vector<1x256xf32> to vector<9x256xf32>
    %93 = arith.mulf %91, %92 : vector<9x256xf32>
    %94 = arith.addf %76, %93 : vector<9x256xf32>
    %95 = arith.truncf %83 : vector<128x256xf32> to vector<128x256xbf16>
    %cst_35 = arith.constant dense<0.000000e+00> : vector<256x256xf32>
    %96 = tpu.matmul %1, %95, %cst_35 {dimension_numbers = #tpu.dot_dimension_numbers<[1], [0], [0], [1], [0, 0, 1, 1], [], []>} : vector<256x128xbf16>, vector<128x256xbf16>, vector<256x256xf32> -> vector<256x256xf32>
    %97 = vector.extract_strided_slice %3 {offsets = [0, 0], sizes = [1, 256], strides = [1, 1]} : vector<8x256xf32> to vector<1x256xf32>
    %98 = vector.broadcast %97 : vector<1x256xf32> to vector<256x256xf32>
    %99 = arith.mulf %96, %98 : vector<256x256xf32>
    %100 = vector.extract_strided_slice %3 {offsets = [1, 0], sizes = [1, 256], strides = [1, 1]} : vector<8x256xf32> to vector<1x256xf32>
    %101 = vector.broadcast %100 : vector<1x256xf32> to vector<256x256xf32>
    %102 = arith.addf %99, %101 : vector<256x256xf32>
    %cst_36 = arith.constant 0.000000e+00 : f32
    %103 = vector.broadcast %cst_36 : f32 to vector<256x256xf32>
    %104 = arith.maximumf %102, %103 : vector<256x256xf32>
    %105 = tpu.iota {dimensions = array<i32: 0>} : vector<256x256xi32>
    %c15_i32 = arith.constant 15 : i32
    %106 = vector.broadcast %c15_i32 : i32 to vector<256x256xi32>
    %107 = arith.andi %105, %106 : vector<256x256xi32>
    %c15_i32_37 = arith.constant 15 : i32
    %108 = vector.broadcast %c15_i32_37 : i32 to vector<256x256xi32>
    %109 = arith.cmpi ne, %107, %108 : vector<256x256xi32>
    %cst_38 = arith.constant 0.000000e+00 : f32
    %110 = vector.broadcast %cst_38 : f32 to vector<256x256xf32>
    %111 = arith.select %109, %104, %110 : vector<256x256xi1>, vector<256x256xf32>
    %c0_i32 = arith.constant 0 : i32
    %112 = vector.broadcast %c0_i32 : i32 to vector<256x256xi32>
    %113 = arith.cmpi ne, %107, %112 : vector<256x256xi32>
    %cst_39 = arith.constant 0.000000e+00 : f32
    %114 = vector.broadcast %cst_39 : f32 to vector<256x256xf32>
    %115 = arith.select %113, %104, %114 : vector<256x256xi1>, vector<256x256xf32>
    %cst_40 = arith.constant 0.000000e+00 : f32
    %116 = vector.broadcast %cst_40 : f32 to vector<256x256xf32>
    %c17_i32 = arith.constant 17 : i32
    %117 = tpu.dynamic_rotate %111 by %c17_i32 dim 0 : vector<256x256xf32>, i32 -> vector<256x256xf32>
    %118 = vector.extract_strided_slice %94 {offsets = [0, 0], sizes = [1, 256], strides = [1, 1]} : vector<9x256xf32> to vector<1x256xf32>
    %119 = vector.broadcast %118 : vector<1x256xf32> to vector<256x256xf32>
    %120 = arith.mulf %117, %119 : vector<256x256xf32>
    %c16_i32 = arith.constant 16 : i32
    %121 = tpu.dynamic_rotate %104 by %c16_i32 dim 0 : vector<256x256xf32>, i32 -> vector<256x256xf32>
    %122 = vector.extract_strided_slice %94 {offsets = [1, 0], sizes = [1, 256], strides = [1, 1]} : vector<9x256xf32> to vector<1x256xf32>
    %123 = vector.broadcast %122 : vector<1x256xf32> to vector<256x256xf32>
    %124 = arith.mulf %121, %123 : vector<256x256xf32>
    %125 = arith.addf %120, %124 : vector<256x256xf32>
    %c15_i32_41 = arith.constant 15 : i32
    %126 = tpu.dynamic_rotate %115 by %c15_i32_41 dim 0 : vector<256x256xf32>, i32 -> vector<256x256xf32>
    %127 = vector.extract_strided_slice %94 {offsets = [2, 0], sizes = [1, 256], strides = [1, 1]} : vector<9x256xf32> to vector<1x256xf32>
    %128 = vector.broadcast %127 : vector<1x256xf32> to vector<256x256xf32>
    %129 = arith.mulf %126, %128 : vector<256x256xf32>
    %130 = arith.addf %125, %129 : vector<256x256xf32>
    %c16_i32_42 = arith.constant 16 : i32
    %131 = vector.broadcast %c16_i32_42 : i32 to vector<256x256xi32>
    %132 = arith.cmpi sge, %105, %131 : vector<256x256xi32>
    %cst_43 = arith.constant 0.000000e+00 : f32
    %133 = vector.broadcast %cst_43 : f32 to vector<256x256xf32>
    %134 = arith.select %132, %130, %133 : vector<256x256xi1>, vector<256x256xf32>
    %135 = arith.addf %116, %134 : vector<256x256xf32>
    %c1_i32 = arith.constant 1 : i32
    %136 = tpu.dynamic_rotate %111 by %c1_i32 dim 0 : vector<256x256xf32>, i32 -> vector<256x256xf32>
    %137 = vector.extract_strided_slice %94 {offsets = [3, 0], sizes = [1, 256], strides = [1, 1]} : vector<9x256xf32> to vector<1x256xf32>
    %138 = vector.broadcast %137 : vector<1x256xf32> to vector<256x256xf32>
    %139 = arith.mulf %136, %138 : vector<256x256xf32>
    %140 = vector.extract_strided_slice %94 {offsets = [4, 0], sizes = [1, 256], strides = [1, 1]} : vector<9x256xf32> to vector<1x256xf32>
    %141 = vector.broadcast %140 : vector<1x256xf32> to vector<256x256xf32>
    %142 = arith.mulf %104, %141 : vector<256x256xf32>
    %143 = arith.addf %139, %142 : vector<256x256xf32>
    %c255_i32 = arith.constant 255 : i32
    %144 = tpu.dynamic_rotate %115 by %c255_i32 dim 0 : vector<256x256xf32>, i32 -> vector<256x256xf32>
    %145 = vector.extract_strided_slice %94 {offsets = [5, 0], sizes = [1, 256], strides = [1, 1]} : vector<9x256xf32> to vector<1x256xf32>
    %146 = vector.broadcast %145 : vector<1x256xf32> to vector<256x256xf32>
    %147 = arith.mulf %144, %146 : vector<256x256xf32>
    %148 = arith.addf %143, %147 : vector<256x256xf32>
    %149 = arith.addf %135, %148 : vector<256x256xf32>
    %c241_i32 = arith.constant 241 : i32
    %150 = tpu.dynamic_rotate %111 by %c241_i32 dim 0 : vector<256x256xf32>, i32 -> vector<256x256xf32>
    %151 = vector.extract_strided_slice %94 {offsets = [6, 0], sizes = [1, 256], strides = [1, 1]} : vector<9x256xf32> to vector<1x256xf32>
    %152 = vector.broadcast %151 : vector<1x256xf32> to vector<256x256xf32>
    %153 = arith.mulf %150, %152 : vector<256x256xf32>
    %c240_i32 = arith.constant 240 : i32
    %154 = tpu.dynamic_rotate %104 by %c240_i32 dim 0 : vector<256x256xf32>, i32 -> vector<256x256xf32>
    %155 = vector.extract_strided_slice %94 {offsets = [7, 0], sizes = [1, 256], strides = [1, 1]} : vector<9x256xf32> to vector<1x256xf32>
    %156 = vector.broadcast %155 : vector<1x256xf32> to vector<256x256xf32>
    %157 = arith.mulf %154, %156 : vector<256x256xf32>
    %158 = arith.addf %153, %157 : vector<256x256xf32>
    %c239_i32 = arith.constant 239 : i32
    %159 = tpu.dynamic_rotate %115 by %c239_i32 dim 0 : vector<256x256xf32>, i32 -> vector<256x256xf32>
    %160 = vector.extract_strided_slice %94 {offsets = [8, 0], sizes = [1, 256], strides = [1, 1]} : vector<9x256xf32> to vector<1x256xf32>
    %161 = vector.broadcast %160 : vector<1x256xf32> to vector<256x256xf32>
    %162 = arith.mulf %159, %161 : vector<256x256xf32>
    %163 = arith.addf %158, %162 : vector<256x256xf32>
    %c240_i32_44 = arith.constant 240 : i32
    %164 = vector.broadcast %c240_i32_44 : i32 to vector<256x256xi32>
    %165 = arith.cmpi slt, %105, %164 : vector<256x256xi32>
    %cst_45 = arith.constant 0.000000e+00 : f32
    %166 = vector.broadcast %cst_45 : f32 to vector<256x256xf32>
    %167 = arith.select %165, %163, %166 : vector<256x256xi1>, vector<256x256xf32>
    %168 = arith.addf %149, %167 : vector<256x256xf32>
    %169 = vector.extract_strided_slice %3 {offsets = [2, 0], sizes = [1, 256], strides = [1, 1]} : vector<8x256xf32> to vector<1x256xf32>
    %170 = vector.broadcast %169 : vector<1x256xf32> to vector<256x256xf32>
    %171 = arith.mulf %168, %170 : vector<256x256xf32>
    %172 = vector.extract_strided_slice %3 {offsets = [3, 0], sizes = [1, 256], strides = [1, 1]} : vector<8x256xf32> to vector<1x256xf32>
    %173 = vector.broadcast %172 : vector<1x256xf32> to vector<256x256xf32>
    %174 = arith.addf %171, %173 : vector<256x256xf32>
    %cst_46 = arith.constant 0.000000e+00 : f32
    %175 = vector.broadcast %cst_46 : f32 to vector<256x256xf32>
    %176 = arith.maximumf %174, %175 : vector<256x256xf32>
    %177 = arith.truncf %176 : vector<256x256xf32> to vector<256x256xbf16>
    %178 = arith.truncf %88 : vector<256x128xf32> to vector<256x128xbf16>
    %cst_47 = arith.constant dense<0.000000e+00> : vector<256x128xf32>
    %179 = tpu.matmul %177, %178, %cst_47 {dimension_numbers = #tpu.dot_dimension_numbers<[1], [0], [0], [1], [0, 0, 1, 1], [], []>} : vector<256x256xbf16>, vector<256x128xbf16>, vector<256x128xf32> -> vector<256x128xf32>
    %180 = vector.extract_strided_slice %3 {offsets = [4, 0], sizes = [1, 128], strides = [1, 1]} : vector<8x256xf32> to vector<1x128xf32>
    %181 = vector.broadcast %180 : vector<1x128xf32> to vector<256x128xf32>
    %182 = arith.mulf %179, %181 : vector<256x128xf32>
    %183 = vector.extract_strided_slice %3 {offsets = [5, 0], sizes = [1, 128], strides = [1, 1]} : vector<8x256xf32> to vector<1x128xf32>
    %184 = vector.broadcast %183 : vector<1x128xf32> to vector<256x128xf32>
    %185 = arith.addf %182, %184 : vector<256x128xf32>
    %186 = arith.addf %185, %2 : vector<256x128xf32>
    %187 = arith.truncf %186 : vector<256x128xf32> to vector<256x128xbf16>
    %c0_48 = arith.constant 0 : index
    %c0_49 = arith.constant 0 : index
    %c0_50 = arith.constant 0 : index
    %188 = vector.load %arg8[%c0_48, %c0_49, %c0_50] : memref<1x256x128xbf16, #tpu.memory_space<vmem>>, vector<1x256x128xbf16>
    %189 = vector.shape_cast %188 : vector<1x256x128xbf16> to vector<256x128xbf16>
    %190 = vector.shape_cast %187 : vector<256x128xbf16> to vector<1x256x128xbf16>
    tpu.vector_store %arg8[%c0_48, %c0_49, %c0_50], %190 {strides = array<i32>} : memref<1x256x128xbf16, #tpu.memory_space<vmem>>, vector<1x256x128xbf16>,
    return
  }
  func.func @transform_0(%arg0: i32) -> (i32, i32, i32) {
    %c0_i32 = arith.constant 0 : i32
    %c0_i32_0 = arith.constant 0 : i32
    %c0_i32_1 = arith.constant 0 : i32
    return %arg0, %c0_i32, %c0_i32_0 : i32, i32, i32
  }
  func.func @transform_1(%arg0: i32) -> (i32, i32) {
    %c0_i32 = arith.constant 0 : i32
    %c0_i32_0 = arith.constant 0 : i32
    %c0_i32_1 = arith.constant 0 : i32
    return %c0_i32, %c0_i32_0 : i32, i32
  }
  func.func @transform_2(%arg0: i32) -> (i32, i32) {
    %c0_i32 = arith.constant 0 : i32
    %c0_i32_0 = arith.constant 0 : i32
    %c0_i32_1 = arith.constant 0 : i32
    return %c0_i32, %c0_i32_0 : i32, i32
  }
  func.func @transform_3(%arg0: i32) -> (i32, i32) {
    %c0_i32 = arith.constant 0 : i32
    %c0_i32_0 = arith.constant 0 : i32
    %c0_i32_1 = arith.constant 0 : i32
    return %c0_i32, %c0_i32_0 : i32, i32
  }
  func.func @transform_4(%arg0: i32) -> (i32, i32, i32) {
    %c0_i32 = arith.constant 0 : i32
    %c0_i32_0 = arith.constant 0 : i32
    %c0_i32_1 = arith.constant 0 : i32
    %c0_i32_2 = arith.constant 0 : i32
    return %c0_i32, %c0_i32_0, %c0_i32_1 : i32, i32, i32
  }
  func.func @transform_5(%arg0: i32) -> (i32, i32) {
    %c0_i32 = arith.constant 0 : i32
    %c0_i32_0 = arith.constant 0 : i32
    %c0_i32_1 = arith.constant 0 : i32
    return %c0_i32, %c0_i32_0 : i32, i32
  }
  func.func @transform_6(%arg0: i32) -> (i32, i32) {
    %c0_i32 = arith.constant 0 : i32
    %c0_i32_0 = arith.constant 0 : i32
    %c0_i32_1 = arith.constant 0 : i32
    return %c0_i32, %c0_i32_0 : i32, i32
  }
  func.func @transform_7(%arg0: i32) -> (i32, i32, i32) {
    %c0_i32 = arith.constant 0 : i32
    %c0_i32_0 = arith.constant 0 : i32
    %c0_i32_1 = arith.constant 0 : i32
    return %arg0, %c0_i32, %c0_i32_0 : i32, i32, i32
  }
}

</mosaic_0001>

<llo_original>
// kernel: cond_conv_residual.1
$region0: #{cond_conv_residual.1}
  #allocation0 [shape = 'u32[]', space=smem, size = 0x4, offset = 0x4, fixed_abs, tag = 'smem constant byte address 0x4 - core index']
  #allocation1 [shape = 'u32[144,128]{1,0:T(1,128)}', space=vmem, size = 0x12000, scoped, tag = 'internal scratch']
  %s0 = inlined_call_operand.vmem [shape: bf16[2,256,128], index: 0, kind: input, shape index: {}]
  %s1 = inlined_call_operand.vmem [shape: f32[128,32], index: 1, kind: input, shape index: {}]
  %s2 = inlined_call_operand.vmem [shape: bf16[32,1536], index: 2, kind: input, shape index: {}]
  %s3 = inlined_call_operand.vmem [shape: bf16[128,1024], index: 3, kind: input, shape index: {}]
  %s4 = inlined_call_operand.vmem [shape: bf16[4,9,256], index: 4, kind: input, shape index: {}]
  %s5 = inlined_call_operand.vmem [shape: bf16[256,512], index: 5, kind: input, shape index: {}]
  %s6 = inlined_call_operand.vmem [shape: f32[8,256], index: 6, kind: input, shape index: {}]
  %s7 = inlined_call_operand.vmem [shape: bf16[2,256,128], index: 7, kind: output, shape index: {}]
  %s8 = sld [smem:[#allocation0]]
  $region61: #{cond_conv_residual.1} parent=0
    _
  %s10 = ssub.s32 1, %s8
  %s11 = scalar_select 0, %s10, %s8
  loop: start=0, step=1, limit=4
  $region2: #{cond_conv_residual.1} parent=0 // loop_pre_header
    _
  $region3: #{cond_conv_residual.1} parent=0 // loop_header
    %s13 = sphi 0, %s17
    %p14 = scmp.ge.s32.totalorder %s13, 4
    %s23 = sphi 0, %s25
    %s26 = sphi 0, %s23
    %s27 = sphi 0, %s26
    %s43 = sphi 0, %s27
    %s47 = sphi 0, %s47
    %s49 = sphi 0, %s47
    %s50 = sphi 0, %s49
    %s64 = sphi 0, %s50
    %s68 = sphi 0, %s68
    %s70 = sphi 0, %s68
    %s71 = sphi 0, %s70
    %s85 = sphi 0, %s71
    %s89 = sphi 0, %s89
    %s91 = sphi 0, %s89
    %s92 = sphi 0, %s91
    %s106 = sphi 0, %s92
    %s110 = sphi 0, %s110
    %s112 = sphi 0, %s110
    %s113 = sphi 0, %s112
    %s127 = sphi 0, %s113
    %s131 = sphi 0, %s131
    %s133 = sphi 0, %s131
    %s134 = sphi 0, %s133
    %s148 = sphi 0, %s134
    %s152 = sphi 0, %s152
    %s154 = sphi 0, %s152
    %s155 = sphi 0, %s154
    %s169 = sphi 0, %s155
    %s175 = sphi 0, %s177
    %s178 = sphi 0, %s175
    %s179 = sphi 0, %s178
    %s195 = sphi 0, %s179
  $region4: #{cond_conv_residual.1} parent=0 // loop_header_branch
    %16 = sbr.rel (%p14) target = $region8
  $region5: #{cond_conv_residual.1} parent=0 // loop_body
    %s18 = ssub.s32 %s13, 1
    %s19 = ssub.s32 %s13, 2
    %s20 = sadd.s32 %s13, 1
    %s21 = ssub.s32 %s13, %s20
    %p22 = scmp.eq.s32.totalorder %s21, 0
    %s24 = sadd.s32 %s23, 1
    %s25 = scalar_select %p22, %s23, %s24
    %p28 = pneg %p22
    %p29 = scmp.eq.s32.totalorder %s13, 1
    %p30 = por %p28, %p29
    %p31 = scmp.ne.s32.totalorder %s23, %s26
    %p32 = scmp.eq.s32.totalorder %s13, 0
    %p33 = por %p31, %p32
    %p34 = scmp.ne.s32.totalorder %s23, %s26
    %p35 = scmp.eq.s32.totalorder %s18, 1
    %p36 = por %p34, %p35
    %p37 = scmp.ne.s32.totalorder %s26, %s27
    %p38 = scmp.eq.s32.totalorder %s18, 0
    %p39 = por %p37, %p38
    %p40 = scmp.ne.s32.totalorder %s26, %s27
    %p41 = scmp.eq.s32.totalorder %s19, 1
    %p42 = por %p40, %p41
    %p44 = scmp.ne.s32.totalorder %s27, %s43
    %p45 = scmp.eq.s32.totalorder %s19, 0
    %p46 = por %p44, %p45
    %s48 = sadd.s32 %s47, 1
    %p51 = scmp.eq.s32.totalorder %s13, 1
    %p52 = scmp.ne.s32.totalorder %s47, %s49
    %p53 = scmp.eq.s32.totalorder %s13, 0
    %p54 = por %p52, %p53
    %p55 = scmp.ne.s32.totalorder %s47, %s49
    %p56 = scmp.eq.s32.totalorder %s18, 1
    %p57 = por %p55, %p56
    %p58 = scmp.ne.s32.totalorder %s49, %s50
    %p59 = scmp.eq.s32.totalorder %s18, 0
    %p60 = por %p58, %p59
    %p61 = scmp.ne.s32.totalorder %s49, %s50
    %p62 = scmp.eq.s32.totalorder %s19, 1
    %p63 = por %p61, %p62
    %p65 = scmp.ne.s32.totalorder %s50, %s64
    %p66 = scmp.eq.s32.totalorder %s19, 0
    %p67 = por %p65, %p66
    %s69 = sadd.s32 %s68, 1
    %p72 = scmp.eq.s32.totalorder %s13, 1
    %p73 = scmp.ne.s32.totalorder %s68, %s70
    %p74 = scmp.eq.s32.totalorder %s13, 0
    %p75 = por %p73, %p74
    %p76 = scmp.ne.s32.totalorder %s68, %s70
    %p77 = scmp.eq.s32.totalorder %s18, 1
    %p78 = por %p76, %p77
    %p79 = scmp.ne.s32.totalorder %s70, %s71
    %p80 = scmp.eq.s32.totalorder %s18, 0
    %p81 = por %p79, %p80
    %p82 = scmp.ne.s32.totalorder %s70, %s71
    %p83 = scmp.eq.s32.totalorder %s19, 1
    %p84 = por %p82, %p83
    %p86 = scmp.ne.s32.totalorder %s71, %s85
    %p87 = scmp.eq.s32.totalorder %s19, 0
    %p88 = por %p86, %p87
    %s90 = sadd.s32 %s89, 1
    %p93 = scmp.eq.s32.totalorder %s13, 1
    %p94 = scmp.ne.s32.totalorder %s89, %s91
    %p95 = scmp.eq.s32.totalorder %s13, 0
    %p96 = por %p94, %p95
    %p97 = scmp.ne.s32.totalorder %s89, %s91
    %p98 = scmp.eq.s32.totalorder %s18, 1
    %p99 = por %p97, %p98
    %p100 = scmp.ne.s32.totalorder %s91, %s92
    %p101 = scmp.eq.s32.totalorder %s18, 0
    %p102 = por %p100, %p101
    %p103 = scmp.ne.s32.totalorder %s91, %s92
    %p104 = scmp.eq.s32.totalorder %s19, 1
    %p105 = por %p103, %p104
    %p107 = scmp.ne.s32.totalorder %s92, %s106
    %p108 = scmp.eq.s32.totalorder %s19, 0
    %p109 = por %p107, %p108
    %s111 = sadd.s32 %s110, 1
    %p114 = scmp.eq.s32.totalorder %s13, 1
    %p115 = scmp.ne.s32.totalorder %s110, %s112
    %p116 = scmp.eq.s32.totalorder %s13, 0
    %p117 = por %p115, %p116
    %p118 = scmp.ne.s32.totalorder %s110, %s112
    %p119 = scmp.eq.s32.totalorder %s18, 1
    %p120 = por %p118, %p119
    %p121 = scmp.ne.s32.totalorder %s112, %s113
    %p122 = scmp.eq.s32.totalorder %s18, 0
    %p123 = por %p121, %p122
    %p124 = scmp.ne.s32.totalorder %s112, %s113
    %p125 = scmp.eq.s32.totalorder %s19, 1
    %p126 = por %p124, %p125
    %p128 = scmp.ne.s32.totalorder %s113, %s127
    %p129 = scmp.eq.s32.totalorder %s19, 0
    %p130 = por %p128, %p129
    %s132 = sadd.s32 %s131, 1
    %p135 = scmp.eq.s32.totalorder %s13, 1
    %p136 = scmp.ne.s32.totalorder %s131, %s133
    %p137 = scmp.eq.s32.totalorder %s13, 0
    %p138 = por %p136, %p137
    %p139 = scmp.ne.s32.totalorder %s131, %s133
    %p140 = scmp.eq.s32.totalorder %s18, 1
    %p141 = por %p139, %p140
    %p142 = scmp.ne.s32.totalorder %s133, %s134
    %p143 = scmp.eq.s32.totalorder %s18, 0
    %p144 = por %p142, %p143
    %p145 = scmp.ne.s32.totalorder %s133, %s134
    %p146 = scmp.eq.s32.totalorder %s19, 1
    %p147 = por %p145, %p146
    %p149 = scmp.ne.s32.totalorder %s134, %s148
    %p150 = scmp.eq.s32.totalorder %s19, 0
    %p151 = por %p149, %p150
    %s153 = sadd.s32 %s152, 1
    %p156 = scmp.eq.s32.totalorder %s13, 1
    %p157 = scmp.ne.s32.totalorder %s152, %s154
    %p158 = scmp.eq.s32.totalorder %s13, 0
    %p159 = por %p157, %p158
    %p160 = scmp.ne.s32.totalorder %s152, %s154
    %p161 = scmp.eq.s32.totalorder %s18, 1
    %p162 = por %p160, %p161
    %p163 = scmp.ne.s32.totalorder %s154, %s155
    %p164 = scmp.eq.s32.totalorder %s18, 0
    %p165 = por %p163, %p164
    %p166 = scmp.ne.s32.totalorder %s154, %s155
    %p167 = scmp.eq.s32.totalorder %s19, 1
    %p168 = por %p166, %p167
    %p170 = scmp.ne.s32.totalorder %s155, %s169
    %p171 = scmp.eq.s32.totalorder %s19, 0
    %p172 = por %p170, %p171
    %s173 = ssub.s32 %s13, %s20
    %p174 = scmp.eq.s32.totalorder %s173, 0
    %s176 = sadd.s32 %s175, 1
    %s177 = scalar_select %p174, %s175, %s176
    %p180 = pneg %p174
    %p181 = scmp.eq.s32.totalorder %s13, 1
    %p182 = por %p180, %p181
    %p183 = scmp.ne.s32.totalorder %s175, %s178
    %p184 = scmp.eq.s32.totalorder %s13, 0
    %p185 = por %p183, %p184
    %p186 = scmp.ne.s32.totalorder %s175, %s178
    %p187 = scmp.eq.s32.totalorder %s18, 1
    %p188 = por %p186, %p187
    %p189 = scmp.ne.s32.totalorder %s178, %s179
    %p190 = scmp.eq.s32.totalorder %s18, 0
    %p191 = por %p189, %p190
    %p192 = scmp.ne.s32.totalorder %s178, %s179
    %p193 = scmp.eq.s32.totalorder %s19, 1
    %p194 = por %p192, %p193
    %p196 = scmp.ne.s32.totalorder %s179, %s195
    %p197 = scmp.eq.s32.totalorder %s19, 0
    %p198 = por %p196, %p197
    %p199 = scmp.le.s32.totalorder 1, %s13
    %p200 = scmp.lt.s32.totalorder %s13, 3
    %p201 = pnand %p199, %p200
    %p202 = pneg %p201
    // Predicated region
    $region9: #{cond_conv_residual.1} parent=5 // pred_check
      _
    $region10: #{cond_conv_residual.1} parent=5 // pred_check_branch
      %204 = sbr.rel (%p201) target = $region12
    $region11: #{cond_conv_residual.1} parent=5 // pred_region
      %s205 = ssub.s32 %s13, 1
      // Predicated region
      $region13: #{cond_conv_residual.1} parent=11 // pred_check
        %p206 = pneg %p60
      $region14: #{cond_conv_residual.1} parent=11 // pred_check_branch
        %208 = sbr.rel (%p206) target = $region16
      $region15: #{cond_conv_residual.1} parent=11 // pred_region
        _
      $region16: #{cond_conv_residual.1} parent=11 // pred_fallthru
        _
      // Predicated region
      $region17: #{cond_conv_residual.1} parent=11 // pred_check
        %p209 = pneg %p81
      $region18: #{cond_conv_residual.1} parent=11 // pred_check_branch
        %211 = sbr.rel (%p209) target = $region20
      $region19: #{cond_conv_residual.1} parent=11 // pred_region
        _
      $region20: #{cond_conv_residual.1} parent=11 // pred_fallthru
        _
      // Predicated region
      $region21: #{cond_conv_residual.1} parent=11 // pred_check
        %p212 = pneg %p102
      $region22: #{cond_conv_residual.1} parent=11 // pred_check_branch
        %214 = sbr.rel (%p212) target = $region24
      $region23: #{cond_conv_residual.1} parent=11 // pred_region
        _
      $region24: #{cond_conv_residual.1} parent=11 // pred_fallthru
        _
      // Predicated region
      $region25: #{cond_conv_residual.1} parent=11 // pred_check
        %p215 = pneg %p123
      $region26: #{cond_conv_residual.1} parent=11 // pred_check_branch
        %217 = sbr.rel (%p215) target = $region28
      $region27: #{cond_conv_residual.1} parent=11 // pred_region
        _
      $region28: #{cond_conv_residual.1} parent=11 // pred_fallthru
        _
      // Predicated region
      $region29: #{cond_conv_residual.1} parent=11 // pred_check
        %p218 = pneg %p144
      $region30: #{cond_conv_residual.1} parent=11 // pred_check_branch
        %220 = sbr.rel (%p218) target = $region32
      $region31: #{cond_conv_residual.1} parent=11 // pred_region
        _
      $region32: #{cond_conv_residual.1} parent=11 // pred_fallthru
        _
      // Predicated region
      $region33: #{cond_conv_residual.1} parent=11 // pred_check
        %p221 = pneg %p165
      $region34: #{cond_conv_residual.1} parent=11 // pred_check_branch
        %223 = sbr.rel (%p221) target = $region36
      $region35: #{cond_conv_residual.1} parent=11 // pred_region
        _
      $region36: #{cond_conv_residual.1} parent=11 // pred_fallthru
        _
    $region12: #{cond_conv_residual.1} parent=5 // pred_fallthru
      _
    %p224 = scmp.lt.s32.totalorder %s13, 2
    // Predicated region
    $region37: #{cond_conv_residual.1} parent=5 // pred_check
      %p225 = pneg %p224
    $region38: #{cond_conv_residual.1} parent=5 // pred_check_branch
      %227 = sbr.rel (%p225) target = $region40
    $region39: #{cond_conv_residual.1} parent=5 // pred_region
      // Predicated region
      $region41: #{cond_conv_residual.1} parent=39 // pred_check
        %p228 = pneg %p33
      $region42: #{cond_conv_residual.1} parent=39 // pred_check_branch
        %230 = sbr.rel (%p228) target = $region44
      $region43: #{cond_conv_residual.1} parent=39 // pred_region
        %p231 = scmp.lt.s32.totalorder %s13, 1
        %s232 = scalar_select %p231, %s13, 1
        %s233 = smul.addr %s232, 32
        %s234 = smul.addr %s233, 4
        %s235 = scalar_lea.vmem %s0, %s234
      $region44: #{cond_conv_residual.1} parent=39 // pred_fallthru
        _
    $region40: #{cond_conv_residual.1} parent=5 // pred_fallthru
      _
    %p236 = scmp.le.s32.totalorder 1, %s13
    %p237 = scmp.lt.s32.totalorder %s13, 3
    %p238 = pnand %p236, %p237
    %p239 = pneg %p238
    // Predicated region
    $region45: #{cond_conv_residual.1} parent=5 // pred_check
      _
    $region46: #{cond_conv_residual.1} parent=5 // pred_check_branch
      %241 = sbr.rel (%p238) target = $region48
    $region47: #{cond_conv_residual.1} parent=5 // pred_region
      %s242 = ssub.s32 %s13, 1
      %p243 = scmp.lt.s32.totalorder %s18, 1
      %s244 = scalar_select %p243, %s18, 1
      %s245 = smul.addr %s244, 32
      %s246 = smul.addr %s245, 4
      %s247 = scalar_lea.vmem %s0, %s246
      %p248 = pneg %p39
      %p249 = pneg %p36
      %p250 = pneg %p60
      %p251 = pneg %p57
      %p252 = pneg %p81
      %p253 = pneg %p78
      %p254 = pneg %p102
      %p255 = pneg %p99
      %p256 = pneg %p123
      %p257 = pneg %p120
      %p258 = pneg %p144
      %p259 = pneg %p141
      %p260 = pneg %p165
      %p261 = pneg %p162
      %p262 = pneg %p191
      %p263 = pneg %p188
      %p264 = scmp.lt.s32.totalorder %s18, 1
      %s265 = scalar_select %p264, %s18, 1
      %s266 = smul.addr %s265, 32
      %s267 = smul.addr %s266, 4
      %s268 = scalar_lea.vmem %s7, %s267
      %p269 = scmp.lt.s32.totalorder %s18, 1
      %s270 = scalar_select %p269, %s18, 1
      %s271 = smul.addr %s270, 32
      %s272 = smul.addr %s271, 4
      %s273 = scalar_lea.vmem %s0, %s272
      %p274 = scmp.lt.s32.totalorder %s18, 1
      %s275 = scalar_select %p274, %s18, 1
      %s276 = smul.addr %s275, 32
      %s277 = smul.addr %s276, 4
      %s278 = scalar_lea.vmem %s7, %s277
      %v280 = vld [vmem:[%s273] sm:$0xf]
      %v281 = vld [vmem:[%s273 + $0x4] sm:$0xf]
      %v282 = vld [vmem:[%s273 + $0x8] sm:$0xf]
      %v283 = vld [vmem:[%s273 + $0xc] sm:$0xf]
      %v284 = vld [vmem:[%s273 + $0x10] sm:$0xf]
      %v285 = vld [vmem:[%s273 + $0x14] sm:$0xf]
      %v286 = vld [vmem:[%s273 + $0x18] sm:$0xf]
      %v287 = vld [vmem:[%s273 + $0x1c] sm:$0xf]
      %v288 = vld [vmem:[%s273 + $0x20] sm:$0xf]
      %v289 = vld [vmem:[%s273 + $0x24] sm:$0xf]
      %v290 = vld [vmem:[%s273 + $0x28] sm:$0xf]
      %v291 = vld [vmem:[%s273 + $0x2c] sm:$0xf]
      %v292 = vld [vmem:[%s273 + $0x30] sm:$0xf]
      %v293 = vld [vmem:[%s273 + $0x34] sm:$0xf]
      %v294 = vld [vmem:[%s273 + $0x38] sm:$0xf]
      %v295 = vld [vmem:[%s273 + $0x3c] sm:$0xf]
      %v296 = vld [vmem:[%s273 + $0x40] sm:$0xf]
      %v297 = vld [vmem:[%s273 + $0x44] sm:$0xf]
      %v298 = vld [vmem:[%s273 + $0x48] sm:$0xf]
      %v299 = vld [vmem:[%s273 + $0x4c] sm:$0xf]
      %v300 = vld [vmem:[%s273 + $0x50] sm:$0xf]
      %v301 = vld [vmem:[%s273 + $0x54] sm:$0xf]
      %v302 = vld [vmem:[%s273 + $0x58] sm:$0xf]
      %v303 = vld [vmem:[%s273 + $0x5c] sm:$0xf]
      %v304 = vld [vmem:[%s273 + $0x60] sm:$0xf]
      %v305 = vld [vmem:[%s273 + $0x64] sm:$0xf]
      %v306 = vld [vmem:[%s273 + $0x68] sm:$0xf]
      %v307 = vld [vmem:[%s273 + $0x6c] sm:$0xf]
      %v308 = vld [vmem:[%s273 + $0x70] sm:$0xf]
      %v309 = vld [vmem:[%s273 + $0x74] sm:$0xf]
      %v310 = vld [vmem:[%s273 + $0x78] sm:$0xf]
      %v311 = vld [vmem:[%s273 + $0x7c] sm:$0xf]
      %v312 = vunpack.c.l.bf16 %v280
      %v313 = vunpack.c.l.bf16 %v281
      %v314 = vunpack.c.l.bf16 %v282
      %v315 = vunpack.c.l.bf16 %v283
      %v316 = vunpack.c.l.bf16 %v284
      %v317 = vunpack.c.l.bf16 %v285
      %v318 = vunpack.c.l.bf16 %v286
      %v319 = vunpack.c.l.bf16 %v287
      %v320 = vunpack.c.l.bf16 %v288
      %v321 = vunpack.c.l.bf16 %v289
      %v322 = vunpack.c.l.bf16 %v290
      %v323 = vunpack.c.l.bf16 %v291
      %v324 = vunpack.c.l.bf16 %v292
      %v325 = vunpack.c.l.bf16 %v293
      %v326 = vunpack.c.l.bf16 %v294
      %v327 = vunpack.c.l.bf16 %v295
      %v328 = vunpack.c.l.bf16 %v296
      %v329 = vunpack.c.l.bf16 %v297
      %v330 = vunpack.c.l.bf16 %v298
      %v331 = vunpack.c.l.bf16 %v299
      %v332 = vunpack.c.l.bf16 %v300
      %v333 = vunpack.c.l.bf16 %v301
      %v334 = vunpack.c.l.bf16 %v302
      %v335 = vunpack.c.l.bf16 %v303
      %v336 = vunpack.c.l.bf16 %v304
      %v337 = vunpack.c.l.bf16 %v305
      %v338 = vunpack.c.l.bf16 %v306
      %v339 = vunpack.c.l.bf16 %v307
      %v340 = vunpack.c.l.bf16 %v308
      %v341 = vunpack.c.l.bf16 %v309
      %v342 = vunpack.c.l.bf16 %v310
      %v343 = vunpack.c.l.bf16 %v311
      %v344 = vld [vmem:[%s6] sm:$0xff]
      %v345 = vld [vmem:[%s6 + $0x8] sm:$0xff]
      %v346 = vadd.f32 %v312, %v313
      %v347 = vadd.f32 %v346, %v314
      %v348 = vadd.f32 %v347, %v315
      %v349 = vadd.f32 %v348, %v316
      %v350 = vadd.f32 %v349, %v317
      %v351 = vadd.f32 %v350, %v318
      %v352 = vadd.f32 %v351, %v319
      %v353 = vadd.f32 %v352, %v320
      %v354 = vadd.f32 %v353, %v321
      %v355 = vadd.f32 %v354, %v322
      %v356 = vadd.f32 %v355, %v323
      %v357 = vadd.f32 %v356, %v324
      %v358 = vadd.f32 %v357, %v325
      %v359 = vadd.f32 %v358, %v326
      %v360 = vadd.f32 %v359, %v327
      %v361 = vadd.f32 %v360, %v328
      %v362 = vadd.f32 %v361, %v329
      %v363 = vadd.f32 %v362, %v330
      %v364 = vadd.f32 %v363, %v331
      %v365 = vadd.f32 %v364, %v332
      %v366 = vadd.f32 %v365, %v333
      %v367 = vadd.f32 %v366, %v334
      %v368 = vadd.f32 %v367, %v335
      %v369 = vadd.f32 %v368, %v336
      %v370 = vadd.f32 %v369, %v337
      %v371 = vadd.f32 %v370, %v338
      %v372 = vadd.f32 %v371, %v339
      %v373 = vadd.f32 %v372, %v340
      %v374 = vadd.f32 %v373, %v341
      %v375 = vadd.f32 %v374, %v342
      %v376 = vadd.f32 %v375, %v343
      %v377 = vrot.slane %v376, 4
      %v378 = vadd.f32 %v376, %v377
      %v379 = vrot.slane %v378, 2
      %v380 = vadd.f32 %v378, %v379
      %v381 = vrot.slane %v380, 1
      %v382 = vadd.f32 %v380, %v381
      %v383 = vrcp.pop 256.0
      %v384 = vmul.f32 %v382, %v383
      %v385 = vld [vmem:[%s1] sm:$0xff]
      %v386 = vld [vmem:[%s1 + $0x8] sm:$0xff]
      %v387 = vld [vmem:[%s1 + $0x10] sm:$0xff]
      %v388 = vld [vmem:[%s1 + $0x18] sm:$0xff]
      %v389 = vld [vmem:[%s1 + $0x20] sm:$0xff]
      %v390 = vld [vmem:[%s1 + $0x28] sm:$0xff]
      %v391 = vld [vmem:[%s1 + $0x30] sm:$0xff]
      %v392 = vld [vmem:[%s1 + $0x38] sm:$0xff]
      %v393 = vld [vmem:[%s1 + $0x40] sm:$0xff]
      %v394 = vld [vmem:[%s1 + $0x48] sm:$0xff]
      %v395 = vld [vmem:[%s1 + $0x50] sm:$0xff]
      %v396 = vld [vmem:[%s1 + $0x58] sm:$0xff]
      %v397 = vld [vmem:[%s1 + $0x60] sm:$0xff]
      %v398 = vld [vmem:[%s1 + $0x68] sm:$0xff]
      %v399 = vld [vmem:[%s1 + $0x70] sm:$0xff]
      %v400 = vld [vmem:[%s1 + $0x78] sm:$0xff]
      %v402 = vrot.slane %v344, 6
      %404 = vmatprep.subr.mxu0 0.0
      %405 = vmatpush1.msra.mxu0 %v385
      %406 = vmatprep.subr.mxu0 0.0
      %407 = vmatpush1.msra.mxu0 %v386
      %408 = vmatprep.subr.mxu0 0.0
      %409 = vmatpush1.msra.mxu0 %v387
      %410 = vmatprep.subr.mxu0 0.0
      %411 = vmatpush1.msra.mxu0 %v388
      %412 = vmatprep.subr.mxu0 0.0
      %413 = vmatpush1.msra.mxu0 %v389
      %414 = vmatprep.subr.mxu0 0.0
      %415 = vmatpush1.msra.mxu0 %v390
      %416 = vmatprep.subr.mxu0 0.0
      %417 = vmatpush1.msra.mxu0 %v391
      %418 = vmatprep.subr.mxu0 0.0
      %419 = vmatpush1.msra.mxu0 %v392
      %420 = vmatprep.subr.mxu0 0.0
      %421 = vmatpush1.msra.mxu0 %v393
      %422 = vmatprep.subr.mxu0 0.0
      %423 = vmatpush1.msra.mxu0 %v394
      %424 = vmatprep.subr.mxu0 0.0
      %425 = vmatpush1.msra.mxu0 %v395
      %426 = vmatprep.subr.mxu0 0.0
      %427 = vmatpush1.msra.mxu0 %v396
      %428 = vmatprep.subr.mxu0 0.0
      %429 = vmatpush1.msra.mxu0 %v397
      %430 = vmatprep.subr.mxu0 0.0
      %431 = vmatpush1.msra.mxu0 %v398
      %432 = vmatprep.subr.mxu0 0.0
      %433 = vmatpush1.msra.mxu0 %v399
      %434 = vmatprep.subr.mxu0 0.0
      %435 = vmatpush1.msra.mxu0 %v400
      %436 = vmatprep.subr.mxu0 0.0
      %437 = vmatpush1.msra.mxu0 0.0
      %438 = vmatprep.subr.mxu0 0.0
      %439 = vmatpush1.msra.mxu0 0.0
      %440 = vmatprep.subr.mxu0 0.0
      %441 = vmatpush1.msra.mxu0 0.0
      %442 = vmatprep.subr.mxu0 0.0
      %443 = vmatpush1.msra.mxu0 0.0
      %444 = vmatprep.subr.mxu0 0.0
      %445 = vmatpush1.msra.mxu0 0.0
      %446 = vmatprep.subr.mxu0 0.0
      %447 = vmatpush1.msra.mxu0 0.0
      %448 = vmatprep.subr.mxu0 0.0
      %449 = vmatpush1.msra.mxu0 0.0
      %450 = vmatprep.subr.mxu0 0.0
      %451 = vmatpush1.msra.mxu0 0.0
      %452 = vmatprep.subr.mxu0 0.0
      %453 = vmatpush1.msra.mxu0 0.0
      %454 = vmatprep.subr.mxu0 0.0
      %455 = vmatpush1.msra.mxu0 0.0
      %456 = vmatprep.subr.mxu0 0.0
      %457 = vmatpush1.msra.mxu0 0.0
      %458 = vmatprep.subr.mxu0 0.0
      %459 = vmatpush1.msra.mxu0 0.0
      %460 = vmatprep.subr.mxu0 0.0
      %461 = vmatpush1.msra.mxu0 0.0
      %462 = vmatprep.subr.mxu0 0.0
      %463 = vmatpush1.msra.mxu0 0.0
      %464 = vmatprep.subr.mxu0 0.0
      %465 = vmatpush1.msra.mxu0 0.0
      %466 = vmatprep.subr.mxu0 0.0
      %467 = vmatpush1.msra.mxu0 0.0
      %468 = vmatprep.mubr.f32.mxu0 0.0
      %469 = vmatmul.mubr.f32.gmra.mrb[0].mxu0 %v384
      %v470 = vpop.f32.mrb[0].mxu0
      %v471 = vadd.f32 %v402, %v470
      %v472 = vpop.f32.mrb[0].mxu0
      %473 = vdwg.mxu0
      %v474 = vxor.u32 %v471, 2147483648
      %v475 = vmul.f32 %v474, 1.442695
      %v476 = vpow.pop %v475
      %v477 = vadd.f32 %v476, 1.0
      %v478 = vrcp.pop %v477
      %v479 = vmul.f32 1.0, %v478
      %v480 = vpack.c.bf16 %v479, %v479
      %v481 = vld [vmem:[%s2] sm:$0xff]
      %v482 = vld [vmem:[%s2 + $0x8] sm:$0xff]
      %v483 = vld [vmem:[%s2 + $0x10] sm:$0xff]
      %v484 = vld [vmem:[%s2 + $0x18] sm:$0xff]
      %v485 = vld [vmem:[%s2 + $0x20] sm:$0xff]
      %v486 = vld [vmem:[%s2 + $0x28] sm:$0xff]
      %v487 = vld [vmem:[%s2 + $0x30] sm:$0xff]
      %v488 = vld [vmem:[%s2 + $0x38] sm:$0xff]
      %v489 = vld [vmem:[%s2 + $0x40] sm:$0xff]
      %v490 = vld [vmem:[%s2 + $0x48] sm:$0xff]
      %v491 = vld [vmem:[%s2 + $0x50] sm:$0xff]
      %v492 = vld [vmem:[%s2 + $0x58] sm:$0xff]
      %v493 = vld [vmem:[%s2 + $0x60] sm:$0xff]
      %v494 = vld [vmem:[%s2 + $0x68] sm:$0xff]
      %v495 = vld [vmem:[%s2 + $0x70] sm:$0xff]
      %v496 = vld [vmem:[%s2 + $0x78] sm:$0xff]
      %v497 = vld [vmem:[%s2 + $0x80] sm:$0xff]
      %v498 = vld [vmem:[%s2 + $0x88] sm:$0xff]
      %v499 = vld [vmem:[%s2 + $0x90] sm:$0xff]
      %v500 = vld [vmem:[%s2 + $0x98] sm:$0xff]
      %v501 = vld [vmem:[%s2 + $0xa0] sm:$0xff]
      %v502 = vld [vmem:[%s2 + $0xa8] sm:$0xff]
      %v503 = vld [vmem:[%s2 + $0xb0] sm:$0xff]
      %v504 = vld [vmem:[%s2 + $0xb8] sm:$0xff]
      %v529 = vunpack.c.l.b16 %v481
      %v530 = vunpack.c.h.b16 %v481
      %v531 = vunpack.c.l.b16 %v482
      %v532 = vunpack.c.h.b16 %v482
      %v533 = vunpack.c.l.b16 %v483
      %v534 = vunpack.c.h.b16 %v483
      %v535 = vunpack.c.l.b16 %v484
      %v536 = vunpack.c.h.b16 %v484
      %v537 = vunpack.c.l.b16 %v485
      %v538 = vunpack.c.h.b16 %v485
      %v539 = vunpack.c.l.b16 %v486
      %v540 = vunpack.c.h.b16 %v486
      %v541 = vunpack.c.l.b16 %v487
      %v542 = vunpack.c.h.b16 %v487
      %v543 = vunpack.c.l.b16 %v488
      %v544 = vunpack.c.h.b16 %v488
      %v545 = vunpack.c.l.b16 %v489
      %v546 = vunpack.c.h.b16 %v489
      %v547 = vunpack.c.l.b16 %v490
      %v548 = vunpack.c.h.b16 %v490
      %v549 = vunpack.c.l.b16 %v491
      %v550 = vunpack.c.h.b16 %v491
      %v551 = vunpack.c.l.b16 %v492
      %v552 = vunpack.c.h.b16 %v492
      %v553 = vunpack.c.l.b16 %v493
      %v554 = vunpack.c.h.b16 %v493
      %v555 = vunpack.c.l.b16 %v494
      %v556 = vunpack.c.h.b16 %v494
      %v557 = vunpack.c.l.b16 %v495
      %v558 = vunpack.c.h.b16 %v495
      %v559 = vunpack.c.l.b16 %v496
      %v560 = vunpack.c.h.b16 %v496
      %v561 = vunpack.c.l.b16 %v497
      %v562 = vunpack.c.h.b16 %v497
      %v563 = vunpack.c.l.b16 %v498
      %v564 = vunpack.c.h.b16 %v498
      %v565 = vunpack.c.l.b16 %v499
      %v566 = vunpack.c.h.b16 %v499
      %v567 = vunpack.c.l.b16 %v500
      %v568 = vunpack.c.h.b16 %v500
      %v569 = vunpack.c.l.b16 %v501
      %v570 = vunpack.c.h.b16 %v501
      %v571 = vunpack.c.l.b16 %v502
      %v572 = vunpack.c.h.b16 %v502
      %v573 = vunpack.c.l.b16 %v503
      %v574 = vunpack.c.h.b16 %v503
      %v575 = vunpack.c.l.b16 %v504
      %v576 = vunpack.c.h.b16 %v504
      %v577 = vpack.c.b16 %v541, %v529
      %v578 = vpack.c.b16 %v542, %v530
      %v579 = vpack.c.b16 %v543, %v531
      %v580 = vpack.c.b16 %v544, %v532
      %v581 = vpack.c.b16 %v545, %v533
      %v582 = vpack.c.b16 %v546, %v534
      %v583 = vpack.c.b16 %v547, %v535
      %v584 = vpack.c.b16 %v548, %v536
      %v585 = vpack.c.b16 %v549, %v537
      %v586 = vpack.c.b16 %v550, %v538
      %v587 = vpack.c.b16 %v551, %v539
      %v588 = vpack.c.b16 %v552, %v540
      %v589 = vpack.c.b16 %v565, %v553
      %v590 = vpack.c.b16 %v566, %v554
      %v591 = vpack.c.b16 %v567, %v555
      %v592 = vpack.c.b16 %v568, %v556
      %v593 = vpack.c.b16 %v569, %v557
      %v594 = vpack.c.b16 %v570, %v558
      %v595 = vpack.c.b16 %v571, %v559
      %v596 = vpack.c.b16 %v572, %v560
      %v597 = vpack.c.b16 %v573, %v561
      %v598 = vpack.c.b16 %v574, %v562
      %v599 = vpack.c.b16 %v575, %v563
      %v600 = vpack.c.b16 %v576, %v564
      %vm625 = vcmask 261120
      %v627 = vsel %vm625, %v480, 0
      %629 = vmatprep.subr.bf16.mxu0 %v578
      %630 = vmatpush1.bf16.msra.mxu0 %v577
      %631 = vmatprep.subr.bf16.mxu0 %v590
      %632 = vmatpush1.bf16.msra.mxu0 %v589
      %633 = vmatprep.subr.bf16.mxu0 0
      %634 = vmatpush1.bf16.msra.mxu0 0
      %635 = vmatprep.subr.bf16.mxu0 0
      %636 = vmatpush1.bf16.msra.mxu0 0
      %637 = vmatprep.subr.bf16.mxu0 0
      %638 = vmatpush1.bf16.msra.mxu0 0
      %639 = vmatprep.subr.bf16.mxu0 0
      %640 = vmatpush1.bf16.msra.mxu0 0
      %641 = vmatprep.subr.bf16.mxu0 0
      %642 = vmatpush1.bf16.msra.mxu0 0
      %643 = vmatprep.subr.bf16.mxu0 0
      %644 = vmatpush1.bf16.msra.mxu0 0
      %645 = vmatprep.subr.bf16.mxu0 0
      %646 = vmatpush1.bf16.msra.mxu0 0
      %647 = vmatprep.subr.bf16.mxu0 0
      %648 = vmatpush1.bf16.msra.mxu0 0
      %649 = vmatprep.subr.bf16.mxu0 0
      %650 = vmatpush1.bf16.msra.mxu0 0
      %651 = vmatprep.subr.bf16.mxu0 0
      %652 = vmatpush1.bf16.msra.mxu0 0
      %653 = vmatprep.subr.bf16.mxu0 0
      %654 = vmatpush1.bf16.msra.mxu0 0
      %655 = vmatprep.subr.bf16.mxu0 0
      %656 = vmatpush1.bf16.msra.mxu0 0
      %657 = vmatprep.subr.bf16.mxu0 0
      %658 = vmatpush1.bf16.msra.mxu0 0
      %659 = vmatprep.subr.bf16.mxu0 0
      %660 = vmatpush1.bf16.msra.mxu0 0
      %661 = vmatprep.mubr.bf16.mxu0 0
      %662 = vmatmul.mubr.bf16.gmra.mrb[0].mxu0 %v627
      %v663 = vpop.f32.mrb[0].mxu0
      %v664 = vadd.f32 0.0, %v663
      %v665 = vpop.f32.mrb[0].mxu0
      %v666 = vadd.f32 0.0, %v665
      %v667 = vpop.f32.mrb[0].mxu0
      %v668 = vpop.f32.mrb[0].mxu0
      %669 = vdwg.mxu0
      %670 = vmatprep.subr.bf16.mxu0 %v580
      %671 = vmatpush1.bf16.msra.mxu0 %v579
      %672 = vmatprep.subr.bf16.mxu0 %v592
      %673 = vmatpush1.bf16.msra.mxu0 %v591
      %674 = vmatprep.subr.bf16.mxu0 0
      %675 = vmatpush1.bf16.msra.mxu0 0
      %676 = vmatprep.subr.bf16.mxu0 0
      %677 = vmatpush1.bf16.msra.mxu0 0
      %678 = vmatprep.subr.bf16.mxu0 0
      %679 = vmatpush1.bf16.msra.mxu0 0
      %680 = vmatprep.subr.bf16.mxu0 0
      %681 = vmatpush1.bf16.msra.mxu0 0
      %682 = vmatprep.subr.bf16.mxu0 0
      %683 = vmatpush1.bf16.msra.mxu0 0
      %684 = vmatprep.subr.bf16.mxu0 0
      %685 = vmatpush1.bf16.msra.mxu0 0
      %686 = vmatprep.subr.bf16.mxu0 0
      %687 = vmatpush1.bf16.msra.mxu0 0
      %688 = vmatprep.subr.bf16.mxu0 0
      %689 = vmatpush1.bf16.msra.mxu0 0
      %690 = vmatprep.subr.bf16.mxu0 0
      %691 = vmatpush1.bf16.msra.mxu0 0
      %692 = vmatprep.subr.bf16.mxu0 0
      %693 = vmatpush1.bf16.msra.mxu0 0
      %694 = vmatprep.subr.bf16.mxu0 0
      %695 = vmatpush1.bf16.msra.mxu0 0
      %696 = vmatprep.subr.bf16.mxu0 0
      %697 = vmatpush1.bf16.msra.mxu0 0
      %698 = vmatprep.subr.bf16.mxu0 0
      %699 = vmatpush1.bf16.msra.mxu0 0
      %700 = vmatprep.subr.bf16.mxu0 0
      %701 = vmatpush1.bf16.msra.mxu0 0
      %702 = vmatprep.mubr.bf16.mxu0 0
      %703 = vmatmul.mubr.bf16.gmra.mrb[0].mxu0 %v627
      %v704 = vpop.f32.mrb[0].mxu0
      %v705 = vadd.f32 0.0, %v704
      %v706 = vpop.f32.mrb[0].mxu0
      %v707 = vadd.f32 0.0, %v706
      %v708 = vpop.f32.mrb[0].mxu0
      %v709 = vpop.f32.mrb[0].mxu0
      %710 = vdwg.mxu0
      %711 = vmatprep.subr.bf16.mxu0 %v582
      %712 = vmatpush1.bf16.msra.mxu0 %v581
      %713 = vmatprep.subr.bf16.mxu0 %v594
      %714 = vmatpush1.bf16.msra.mxu0 %v593
      %715 = vmatprep.subr.bf16.mxu0 0
      %716 = vmatpush1.bf16.msra.mxu0 0
      %717 = vmatprep.subr.bf16.mxu0 0
      %718 = vmatpush1.bf16.msra.mxu0 0
      %719 = vmatprep.subr.bf16.mxu0 0
      %720 = vmatpush1.bf16.msra.mxu0 0
      %721 = vmatprep.subr.bf16.mxu0 0
      %722 = vmatpush1.bf16.msra.mxu0 0
      %723 = vmatprep.subr.bf16.mxu0 0
      %724 = vmatpush1.bf16.msra.mxu0 0
      %725 = vmatprep.subr.bf16.mxu0 0
      %726 = vmatpush1.bf16.msra.mxu0 0
      %727 = vmatprep.subr.bf16.mxu0 0
      %728 = vmatpush1.bf16.msra.mxu0 0
      %729 = vmatprep.subr.bf16.mxu0 0
      %730 = vmatpush1.bf16.msra.mxu0 0
      %731 = vmatprep.subr.bf16.mxu0 0
      %732 = vmatpush1.bf16.msra.mxu0 0
      %733 = vmatprep.subr.bf16.mxu0 0
      %734 = vmatpush1.bf16.msra.mxu0 0
      %735 = vmatprep.subr.bf16.mxu0 0
      %736 = vmatpush1.bf16.msra.mxu0 0
      %737 = vmatprep.subr.bf16.mxu0 0
      %738 = vmatpush1.bf16.msra.mxu0 0
      %739 = vmatprep.subr.bf16.mxu0 0
      %740 = vmatpush1.bf16.msra.mxu0 0
      %741 = vmatprep.subr.bf16.mxu0 0
      %742 = vmatpush1.bf16.msra.mxu0 0
      %743 = vmatprep.mubr.bf16.mxu0 0
      %744 = vmatmul.mubr.bf16.gmra.mrb[0].mxu0 %v627
      %v745 = vpop.f32.mrb[0].mxu0
      %v746 = vadd.f32 0.0, %v745
      %v747 = vpop.f32.mrb[0].mxu0
      %v748 = vadd.f32 0.0, %v747
      %v749 = vpop.f32.mrb[0].mxu0
      %v750 = vpop.f32.mrb[0].mxu0
      %751 = vdwg.mxu0
      %752 = vmatprep.subr.bf16.mxu0 %v584
      %753 = vmatpush1.bf16.msra.mxu0 %v583
      %754 = vmatprep.subr.bf16.mxu0 %v596
      %755 = vmatpush1.bf16.msra.mxu0 %v595
      %756 = vmatprep.subr.bf16.mxu0 0
      %757 = vmatpush1.bf16.msra.mxu0 0
      %758 = vmatprep.subr.bf16.mxu0 0
      %759 = vmatpush1.bf16.msra.mxu0 0
      %760 = vmatprep.subr.bf16.mxu0 0
      %761 = vmatpush1.bf16.msra.mxu0 0
      %762 = vmatprep.subr.bf16.mxu0 0
      %763 = vmatpush1.bf16.msra.mxu0 0
      %764 = vmatprep.subr.bf16.mxu0 0
      %765 = vmatpush1.bf16.msra.mxu0 0
      %766 = vmatprep.subr.bf16.mxu0 0
      %767 = vmatpush1.bf16.msra.mxu0 0
      %768 = vmatprep.subr.bf16.mxu0 0
      %769 = vmatpush1.bf16.msra.mxu0 0
      %770 = vmatprep.subr.bf16.mxu0 0
      %771 = vmatpush1.bf16.msra.mxu0 0
      %772 = vmatprep.subr.bf16.mxu0 0
      %773 = vmatpush1.bf16.msra.mxu0 0
      %774 = vmatprep.subr.bf16.mxu0 0
      %775 = vmatpush1.bf16.msra.mxu0 0
      %776 = vmatprep.subr.bf16.mxu0 0
      %777 = vmatpush1.bf16.msra.mxu0 0
      %778 = vmatprep.subr.bf16.mxu0 0
      %779 = vmatpush1.bf16.msra.mxu0 0
      %780 = vmatprep.subr.bf16.mxu0 0
      %781 = vmatpush1.bf16.msra.mxu0 0
      %782 = vmatprep.subr.bf16.mxu0 0
      %783 = vmatpush1.bf16.msra.mxu0 0
      %784 = vmatprep.mubr.bf16.mxu0 0
      %785 = vmatmul.mubr.bf16.gmra.mrb[0].mxu0 %v627
      %v786 = vpop.f32.mrb[0].mxu0
      %v787 = vadd.f32 0.0, %v786
      %v788 = vpop.f32.mrb[0].mxu0
      %v789 = vadd.f32 0.0, %v788
      %v790 = vpop.f32.mrb[0].mxu0
      %v791 = vpop.f32.mrb[0].mxu0
      %792 = vdwg.mxu0
      %793 = vmatprep.subr.bf16.mxu0 %v586
      %794 = vmatpush1.bf16.msra.mxu0 %v585
      %795 = vmatprep.subr.bf16.mxu0 %v598
      %796 = vmatpush1.bf16.msra.mxu0 %v597
      %797 = vmatprep.subr.bf16.mxu0 0
      %798 = vmatpush1.bf16.msra.mxu0 0
      %799 = vmatprep.subr.bf16.mxu0 0
      %800 = vmatpush1.bf16.msra.mxu0 0
      %801 = vmatprep.subr.bf16.mxu0 0
      %802 = vmatpush1.bf16.msra.mxu0 0
      %803 = vmatprep.subr.bf16.mxu0 0
      %804 = vmatpush1.bf16.msra.mxu0 0
      %805 = vmatprep.subr.bf16.mxu0 0
      %806 = vmatpush1.bf16.msra.mxu0 0
      %807 = vmatprep.subr.bf16.mxu0 0
      %808 = vmatpush1.bf16.msra.mxu0 0
      %809 = vmatprep.subr.bf16.mxu0 0
      %810 = vmatpush1.bf16.msra.mxu0 0
      %811 = vmatprep.subr.bf16.mxu0 0
      %812 = vmatpush1.bf16.msra.mxu0 0
      %813 = vmatprep.subr.bf16.mxu0 0
      %814 = vmatpush1.bf16.msra.mxu0 0
      %815 = vmatprep.subr.bf16.mxu0 0
      %816 = vmatpush1.bf16.msra.mxu0 0
      %817 = vmatprep.subr.bf16.mxu0 0
      %818 = vmatpush1.bf16.msra.mxu0 0
      %819 = vmatprep.subr.bf16.mxu0 0
      %820 = vmatpush1.bf16.msra.mxu0 0
      %821 = vmatprep.subr.bf16.mxu0 0
      %822 = vmatpush1.bf16.msra.mxu0 0
      %823 = vmatprep.subr.bf16.mxu0 0
      %824 = vmatpush1.bf16.msra.mxu0 0
      %825 = vmatprep.mubr.bf16.mxu0 0
      %826 = vmatmul.mubr.bf16.gmra.mrb[0].mxu0 %v627
      %v827 = vpop.f32.mrb[0].mxu0
      %v828 = vadd.f32 0.0, %v827
      %v829 = vpop.f32.mrb[0].mxu0
      %v830 = vadd.f32 0.0, %v829
      %v831 = vpop.f32.mrb[0].mxu0
      %v832 = vpop.f32.mrb[0].mxu0
      %833 = vdwg.mxu0
      %834 = vmatprep.subr.bf16.mxu0 %v588
      %835 = vmatpush1.bf16.msra.mxu0 %v587
      %836 = vmatprep.subr.bf16.mxu0 %v600
      %837 = vmatpush1.bf16.msra.mxu0 %v599
      %838 = vmatprep.subr.bf16.mxu0 0
      %839 = vmatpush1.bf16.msra.mxu0 0
      %840 = vmatprep.subr.bf16.mxu0 0
      %841 = vmatpush1.bf16.msra.mxu0 0
      %842 = vmatprep.subr.bf16.mxu0 0
      %843 = vmatpush1.bf16.msra.mxu0 0
      %844 = vmatprep.subr.bf16.mxu0 0
      %845 = vmatpush1.bf16.msra.mxu0 0
      %846 = vmatprep.subr.bf16.mxu0 0
      %847 = vmatpush1.bf16.msra.mxu0 0
      %848 = vmatprep.subr.bf16.mxu0 0
      %849 = vmatpush1.bf16.msra.mxu0 0
      %850 = vmatprep.subr.bf16.mxu0 0
      %851 = vmatpush1.bf16.msra.mxu0 0
      %852 = vmatprep.subr.bf16.mxu0 0
      %853 = vmatpush1.bf16.msra.mxu0 0
      %854 = vmatprep.subr.bf16.mxu0 0
      %855 = vmatpush1.bf16.msra.mxu0 0
      %856 = vmatprep.subr.bf16.mxu0 0
      %857 = vmatpush1.bf16.msra.mxu0 0
      %858 = vmatprep.subr.bf16.mxu0 0
      %859 = vmatpush1.bf16.msra.mxu0 0
      %860 = vmatprep.subr.bf16.mxu0 0
      %861 = vmatpush1.bf16.msra.mxu0 0
      %862 = vmatprep.subr.bf16.mxu0 0
      %863 = vmatpush1.bf16.msra.mxu0 0
      %864 = vmatprep.subr.bf16.mxu0 0
      %865 = vmatpush1.bf16.msra.mxu0 0
      %866 = vmatprep.mubr.bf16.mxu0 0
      %867 = vmatmul.mubr.bf16.gmra.mrb[0].mxu0 %v627
      %v868 = vpop.f32.mrb[0].mxu0
      %v869 = vadd.f32 0.0, %v868
      %v870 = vpop.f32.mrb[0].mxu0
      %v871 = vadd.f32 0.0, %v870
      %v872 = vpop.f32.mrb[0].mxu0
      %v873 = vpop.f32.mrb[0].mxu0
      %874 = vdwg.mxu0
      %v875 = vld [vmem:[%s3] sm:$0xff]
      %v876 = vld [vmem:[%s3 + $0x20] sm:$0xff]
      %v877 = vld [vmem:[%s3 + $0x40] sm:$0xff]
      %v878 = vld [vmem:[%s3 + $0x60] sm:$0xff]
      %v879 = vld [vmem:[%s3 + $0x80] sm:$0xff]
      %v880 = vld [vmem:[%s3 + $0xa0] sm:$0xff]
      %v881 = vld [vmem:[%s3 + $0xc0] sm:$0xff]
      %v882 = vld [vmem:[%s3 + $0xe0] sm:$0xff]
      %v883 = vld [vmem:[%s3 + $0x100] sm:$0xff]
      %v884 = vld [vmem:[%s3 + $0x120] sm:$0xff]
      %v885 = vld [vmem:[%s3 + $0x140] sm:$0xff]
      %v886 = vld [vmem:[%s3 + $0x160] sm:$0xff]
      %v887 = vld [vmem:[%s3 + $0x180] sm:$0xff]
      %v888 = vld [vmem:[%s3 + $0x1a0] sm:$0xff]
      %v889 = vld [vmem:[%s3 + $0x1c0] sm:$0xff]
      %v890 = vld [vmem:[%s3 + $0x1e0] sm:$0xff]
      %v891 = vunpack.c.l.bf16 %v875
      %v892 = vunpack.c.h.bf16 %v875
      %v893 = vunpack.c.l.bf16 %v876
      %v894 = vunpack.c.h.bf16 %v876
      %v895 = vunpack.c.l.bf16 %v877
      %v896 = vunpack.c.h.bf16 %v877
      %v897 = vunpack.c.l.bf16 %v878
      %v898 = vunpack.c.h.bf16 %v878
      %v899 = vunpack.c.l.bf16 %v879
      %v900 = vunpack.c.h.bf16 %v879
      %v901 = vunpack.c.l.bf16 %v880
      %v902 = vunpack.c.h.bf16 %v880
      %v903 = vunpack.c.l.bf16 %v881
      %v904 = vunpack.c.h.bf16 %v881
      %v905 = vunpack.c.l.bf16 %v882
      %v906 = vunpack.c.h.bf16 %v882
      %v907 = vunpack.c.l.bf16 %v883
      %v908 = vunpack.c.h.bf16 %v883
      %v909 = vunpack.c.l.bf16 %v884
      %v910 = vunpack.c.h.bf16 %v884
      %v911 = vunpack.c.l.bf16 %v885
      %v912 = vunpack.c.h.bf16 %v885
      %v913 = vunpack.c.l.bf16 %v886
      %v914 = vunpack.c.h.bf16 %v886
      %v915 = vunpack.c.l.bf16 %v887
      %v916 = vunpack.c.h.bf16 %v887
      %v917 = vunpack.c.l.bf16 %v888
      %v918 = vunpack.c.h.bf16 %v888
      %v919 = vunpack.c.l.bf16 %v889
      %v920 = vunpack.c.h.bf16 %v889
      %v921 = vunpack.c.l.bf16 %v890
      %v922 = vunpack.c.h.bf16 %v890
      %v923 = vlaneseq
      %v924 = vshrl.u32 %v923, 7
      %v925 = vsub.s32 0, %v924
      %v926 = vrot.slane %v664, %v925
      %v927 = vlaneseq
      %v928 = vshrl.u32 %v927, 7
      %v929 = vsub.s32 0, %v928
      %v930 = vrot.slane %v666, %v929
      %v931 = vmul.f32 %v891, %v926
      %v932 = vmul.f32 %v892, %v930
      %v933 = vmul.f32 %v893, %v926
      %v934 = vmul.f32 %v894, %v930
      %v935 = vmul.f32 %v895, %v926
      %v936 = vmul.f32 %v896, %v930
      %v937 = vmul.f32 %v897, %v926
      %v938 = vmul.f32 %v898, %v930
      %v939 = vmul.f32 %v899, %v926
      %v940 = vmul.f32 %v900, %v930
      %v941 = vmul.f32 %v901, %v926
      %v942 = vmul.f32 %v902, %v930
      %v943 = vmul.f32 %v903, %v926
      %v944 = vmul.f32 %v904, %v930
      %v945 = vmul.f32 %v905, %v926
      %v946 = vmul.f32 %v906, %v930
      %v947 = vmul.f32 %v907, %v926
      %v948 = vmul.f32 %v908, %v930
      %v949 = vmul.f32 %v909, %v926
      %v950 = vmul.f32 %v910, %v930
      %v951 = vmul.f32 %v911, %v926
      %v952 = vmul.f32 %v912, %v930
      %v953 = vmul.f32 %v913, %v926
      %v954 = vmul.f32 %v914, %v930
      %v955 = vmul.f32 %v915, %v926
      %v956 = vmul.f32 %v916, %v930
      %v957 = vmul.f32 %v917, %v926
      %v958 = vmul.f32 %v918, %v930
      %v959 = vmul.f32 %v919, %v926
      %v960 = vmul.f32 %v920, %v930
      %v961 = vmul.f32 %v921, %v926
      %v962 = vmul.f32 %v922, %v930
      %v963 = vadd.f32 %v931, 0.0
      %v964 = vadd.f32 %v932, 0.0
      %v965 = vadd.f32 %v933, 0.0
      %v966 = vadd.f32 %v934, 0.0
      %v967 = vadd.f32 %v935, 0.0
      %v968 = vadd.f32 %v936, 0.0
      %v969 = vadd.f32 %v937, 0.0
      %v970 = vadd.f32 %v938, 0.0
      %v971 = vadd.f32 %v939, 0.0
      %v972 = vadd.f32 %v940, 0.0
      %v973 = vadd.f32 %v941, 0.0
      %v974 = vadd.f32 %v942, 0.0
      %v975 = vadd.f32 %v943, 0.0
      %v976 = vadd.f32 %v944, 0.0
      %v977 = vadd.f32 %v945, 0.0
      %v978 = vadd.f32 %v946, 0.0
      %v979 = vadd.f32 %v947, 0.0
      %v980 = vadd.f32 %v948, 0.0
      %v981 = vadd.f32 %v949, 0.0
      %v982 = vadd.f32 %v950, 0.0
      %v983 = vadd.f32 %v951, 0.0
      %v984 = vadd.f32 %v952, 0.0
      %v985 = vadd.f32 %v953, 0.0
      %v986 = vadd.f32 %v954, 0.0
      %v987 = vadd.f32 %v955, 0.0
      %v988 = vadd.f32 %v956, 0.0
      %v989 = vadd.f32 %v957, 0.0
      %v990 = vadd.f32 %v958, 0.0
      %v991 = vadd.f32 %v959, 0.0
      %v992 = vadd.f32 %v960, 0.0
      %v993 = vadd.f32 %v961, 0.0
      %v994 = vadd.f32 %v962, 0.0
      %v995 = vld [vmem:[%s5] sm:$0xf]
      %v996 = vld [vmem:[%s5 + $0x10] sm:$0xf]
      %v997 = vld [vmem:[%s5 + $0x20] sm:$0xf]
      %v998 = vld [vmem:[%s5 + $0x30] sm:$0xf]
      %v999 = vld [vmem:[%s5 + $0x40] sm:$0xf]
      %v1000 = vld [vmem:[%s5 + $0x50] sm:$0xf]
      %v1001 = vld [vmem:[%s5 + $0x60] sm:$0xf]
      %v1002 = vld [vmem:[%s5 + $0x70] sm:$0xf]
      %v1003 = vld [vmem:[%s5 + $0x80] sm:$0xf]
      %v1004 = vld [vmem:[%s5 + $0x90] sm:$0xf]
      %v1005 = vld [vmem:[%s5 + $0xa0] sm:$0xf]
      %v1006 = vld [vmem:[%s5 + $0xb0] sm:$0xf]
      %v1007 = vld [vmem:[%s5 + $0xc0] sm:$0xf]
      %v1008 = vld [vmem:[%s5 + $0xd0] sm:$0xf]
      %v1009 = vld [vmem:[%s5 + $0xe0] sm:$0xf]
      %v1010 = vld [vmem:[%s5 + $0xf0] sm:$0xf]
      %v1011 = vld [vmem:[%s5 + $0x100] sm:$0xf]
      %v1012 = vld [vmem:[%s5 + $0x110] sm:$0xf]
      %v1013 = vld [vmem:[%s5 + $0x120] sm:$0xf]
      %v1014 = vld [vmem:[%s5 + $0x130] sm:$0xf]
      %v1015 = vld [vmem:[%s5 + $0x140] sm:$0xf]
      %v1016 = vld [vmem:[%s5 + $0x150] sm:$0xf]
      %v1017 = vld [vmem:[%s5 + $0x160] sm:$0xf]
      %v1018 = vld [vmem:[%s5 + $0x170] sm:$0xf]
      %v1019 = vld [vmem:[%s5 + $0x180] sm:$0xf]
      %v1020 = vld [vmem:[%s5 + $0x190] sm:$0xf]
      %v1021 = vld [vmem:[%s5 + $0x1a0] sm:$0xf]
      %v1022 = vld [vmem:[%s5 + $0x1b0] sm:$0xf]
      %v1023 = vld [vmem:[%s5 + $0x1c0] sm:$0xf]
      %v1024 = vld [vmem:[%s5 + $0x1d0] sm:$0xf]
      %v1025 = vld [vmem:[%s5 + $0x1e0] sm:$0xf]
      %v1026 = vld [vmem:[%s5 + $0x1f0] sm:$0xf]
      %v1027 = vunpack.c.l.bf16 %v995
      %v1028 = vunpack.c.l.bf16 %v996
      %v1029 = vunpack.c.l.bf16 %v997
      %v1030 = vunpack.c.l.bf16 %v998
      %v1031 = vunpack.c.l.bf16 %v999
      %v1032 = vunpack.c.l.bf16 %v1000
      %v1033 = vunpack.c.l.bf16 %v1001
      %v1034 = vunpack.c.l.bf16 %v1002
      %v1035 = vunpack.c.l.bf16 %v1003
      %v1036 = vunpack.c.l.bf16 %v1004
      %v1037 = vunpack.c.l.bf16 %v1005
      %v1038 = vunpack.c.l.bf16 %v1006
      %v1039 = vunpack.c.l.bf16 %v1007
      %v1040 = vunpack.c.l.bf16 %v1008
      %v1041 = vunpack.c.l.bf16 %v1009
      %v1042 = vunpack.c.l.bf16 %v1010
      %v1043 = vunpack.c.l.bf16 %v1011
      %v1044 = vunpack.c.l.bf16 %v1012
      %v1045 = vunpack.c.l.bf16 %v1013
      %v1046 = vunpack.c.l.bf16 %v1014
      %v1047 = vunpack.c.l.bf16 %v1015
      %v1048 = vunpack.c.l.bf16 %v1016
      %v1049 = vunpack.c.l.bf16 %v1017
      %v1050 = vunpack.c.l.bf16 %v1018
      %v1051 = vunpack.c.l.bf16 %v1019
      %v1052 = vunpack.c.l.bf16 %v1020
      %v1053 = vunpack.c.l.bf16 %v1021
      %v1054 = vunpack.c.l.bf16 %v1022
      %v1055 = vunpack.c.l.bf16 %v1023
      %v1056 = vunpack.c.l.bf16 %v1024
      %v1057 = vunpack.c.l.bf16 %v1025
      %v1058 = vunpack.c.l.bf16 %v1026
      %v1059 = vlaneseq
      %v1060 = vshrl.u32 %v1059, 7
      %v1061 = vsub.s32 0, %v1060
      %v1062 = vrot.slane %v828, %v1061
      %v1063 = vmul.f32 %v1027, %v1062
      %v1064 = vmul.f32 %v1028, %v1062
      %v1065 = vmul.f32 %v1029, %v1062
      %v1066 = vmul.f32 %v1030, %v1062
      %v1067 = vmul.f32 %v1031, %v1062
      %v1068 = vmul.f32 %v1032, %v1062
      %v1069 = vmul.f32 %v1033, %v1062
      %v1070 = vmul.f32 %v1034, %v1062
      %v1071 = vmul.f32 %v1035, %v1062
      %v1072 = vmul.f32 %v1036, %v1062
      %v1073 = vmul.f32 %v1037, %v1062
      %v1074 = vmul.f32 %v1038, %v1062
      %v1075 = vmul.f32 %v1039, %v1062
      %v1076 = vmul.f32 %v1040, %v1062
      %v1077 = vmul.f32 %v1041, %v1062
      %v1078 = vmul.f32 %v1042, %v1062
      %v1079 = vmul.f32 %v1043, %v1062
      %v1080 = vmul.f32 %v1044, %v1062
      %v1081 = vmul.f32 %v1045, %v1062
      %v1082 = vmul.f32 %v1046, %v1062
      %v1083 = vmul.f32 %v1047, %v1062
      %v1084 = vmul.f32 %v1048, %v1062
      %v1085 = vmul.f32 %v1049, %v1062
      %v1086 = vmul.f32 %v1050, %v1062
      %v1087 = vmul.f32 %v1051, %v1062
      %v1088 = vmul.f32 %v1052, %v1062
      %v1089 = vmul.f32 %v1053, %v1062
      %v1090 = vmul.f32 %v1054, %v1062
      %v1091 = vmul.f32 %v1055, %v1062
      %v1092 = vmul.f32 %v1056, %v1062
      %v1093 = vmul.f32 %v1057, %v1062
      %v1094 = vmul.f32 %v1058, %v1062
      %v1095 = vadd.f32 %v1063, 0.0
      %v1096 = vadd.f32 %v1064, 0.0
      %v1097 = vadd.f32 %v1065, 0.0
      %v1098 = vadd.f32 %v1066, 0.0
      %v1099 = vadd.f32 %v1067, 0.0
      %v1100 = vadd.f32 %v1068, 0.0
      %v1101 = vadd.f32 %v1069, 0.0
      %v1102 = vadd.f32 %v1070, 0.0
      %v1103 = vadd.f32 %v1071, 0.0
      %v1104 = vadd.f32 %v1072, 0.0
      %v1105 = vadd.f32 %v1073, 0.0
      %v1106 = vadd.f32 %v1074, 0.0
      %v1107 = vadd.f32 %v1075, 0.0
      %v1108 = vadd.f32 %v1076, 0.0
      %v1109 = vadd.f32 %v1077, 0.0
      %v1110 = vadd.f32 %v1078, 0.0
      %v1111 = vadd.f32 %v1079, 0.0
      %v1112 = vadd.f32 %v1080, 0.0
      %v1113 = vadd.f32 %v1081, 0.0
      %v1114 = vadd.f32 %v1082, 0.0
      %v1115 = vadd.f32 %v1083, 0.0
      %v1116 = vadd.f32 %v1084, 0.0
      %v1117 = vadd.f32 %v1085, 0.0
      %v1118 = vadd.f32 %v1086, 0.0
      %v1119 = vadd.f32 %v1087, 0.0
      %v1120 = vadd.f32 %v1088, 0.0
      %v1121 = vadd.f32 %v1089, 0.0
      %v1122 = vadd.f32 %v1090, 0.0
      %v1123 = vadd.f32 %v1091, 0.0
      %v1124 = vadd.f32 %v1092, 0.0
      %v1125 = vadd.f32 %v1093, 0.0
      %v1126 = vadd.f32 %v1094, 0.0
      %v1127 = vld [vmem:[%s4] sm:$0xff]
      %v1128 = vld [vmem:[%s4 + $0x8] sm:$0x11]
      %v1129 = vunpack.c.l.bf16 %v1127
      %v1130 = vunpack.c.h.bf16 %v1127
      %v1131 = vunpack.c.l.bf16 %v1128
      %v1132 = vunpack.c.h.bf16 %v1128
      %v1133 = vmul.f32 %v1129, %v926
      %v1134 = vmul.f32 %v1130, %v930
      %v1135 = vmul.f32 %v1131, %v926
      %v1136 = vmul.f32 %v1132, %v930
      %v1137 = vadd.f32 %v1133, 0.0
      %v1138 = vadd.f32 %v1134, 0.0
      %v1139 = vadd.f32 %v1135, 0.0
      %v1140 = vadd.f32 %v1136, 0.0
      %v1141 = vld [vmem:[%s3 + $0x8] sm:$0xff]
      %v1142 = vld [vmem:[%s3 + $0x28] sm:$0xff]
      %v1143 = vld [vmem:[%s3 + $0x48] sm:$0xff]
      %v1144 = vld [vmem:[%s3 + $0x68] sm:$0xff]
      %v1145 = vld [vmem:[%s3 + $0x88] sm:$0xff]
      %v1146 = vld [vmem:[%s3 + $0xa8] sm:$0xff]
      %v1147 = vld [vmem:[%s3 + $0xc8] sm:$0xff]
      %v1148 = vld [vmem:[%s3 + $0xe8] sm:$0xff]
      %v1149 = vld [vmem:[%s3 + $0x108] sm:$0xff]
      %v1150 = vld [vmem:[%s3 + $0x128] sm:$0xff]
      %v1151 = vld [vmem:[%s3 + $0x148] sm:$0xff]
      %v1152 = vld [vmem:[%s3 + $0x168] sm:$0xff]
      %v1153 = vld [vmem:[%s3 + $0x188] sm:$0xff]
      %v1154 = vld [vmem:[%s3 + $0x1a8] sm:$0xff]
      %v1155 = vld [vmem:[%s3 + $0x1c8] sm:$0xff]
      %v1156 = vld [vmem:[%s3 + $0x1e8] sm:$0xff]
      %v1157 = vunpack.c.l.bf16 %v1141
      %v1158 = vunpack.c.h.bf16 %v1141
      %v1159 = vunpack.c.l.bf16 %v1142
      %v1160 = vunpack.c.h.bf16 %v1142
      %v1161 = vunpack.c.l.bf16 %v1143
      %v1162 = vunpack.c.h.bf16 %v1143
      %v1163 = vunpack.c.l.bf16 %v1144
      %v1164 = vunpack.c.h.bf16 %v1144
      %v1165 = vunpack.c.l.bf16 %v1145
      %v1166 = vunpack.c.h.bf16 %v1145
      %v1167 = vunpack.c.l.bf16 %v1146
      %v1168 = vunpack.c.h.bf16 %v1146
      %v1169 = vunpack.c.l.bf16 %v1147
      %v1170 = vunpack.c.h.bf16 %v1147
      %v1171 = vunpack.c.l.bf16 %v1148
      %v1172 = vunpack.c.h.bf16 %v1148
      %v1173 = vunpack.c.l.bf16 %v1149
      %v1174 = vunpack.c.h.bf16 %v1149
      %v1175 = vunpack.c.l.bf16 %v1150
      %v1176 = vunpack.c.h.bf16 %v1150
      %v1177 = vunpack.c.l.bf16 %v1151
      %v1178 = vunpack.c.h.bf16 %v1151
      %v1179 = vunpack.c.l.bf16 %v1152
      %v1180 = vunpack.c.h.bf16 %v1152
      %v1181 = vunpack.c.l.bf16 %v1153
      %v1182 = vunpack.c.h.bf16 %v1153
      %v1183 = vunpack.c.l.bf16 %v1154
      %v1184 = vunpack.c.h.bf16 %v1154
      %v1185 = vunpack.c.l.bf16 %v1155
      %v1186 = vunpack.c.h.bf16 %v1155
      %v1187 = vunpack.c.l.bf16 %v1156
      %v1188 = vunpack.c.h.bf16 %v1156
      %v1189 = vlaneseq
      %v1190 = vshrl.u32 %v1189, 7
      %v1191 = vsub.s32 0, %v1190
      %v1192 = vrot.slane %v705, %v1191
      %v1193 = vlaneseq
      %v1194 = vshrl.u32 %v1193, 7
      %v1195 = vsub.s32 0, %v1194
      %v1196 = vrot.slane %v707, %v1195
      %v1197 = vmul.f32 %v1157, %v1192
      %v1198 = vmul.f32 %v1158, %v1196
      %v1199 = vmul.f32 %v1159, %v1192
      %v1200 = vmul.f32 %v1160, %v1196
      %v1201 = vmul.f32 %v1161, %v1192
      %v1202 = vmul.f32 %v1162, %v1196
      %v1203 = vmul.f32 %v1163, %v1192
      %v1204 = vmul.f32 %v1164, %v1196
      %v1205 = vmul.f32 %v1165, %v1192
      %v1206 = vmul.f32 %v1166, %v1196
      %v1207 = vmul.f32 %v1167, %v1192
      %v1208 = vmul.f32 %v1168, %v1196
      %v1209 = vmul.f32 %v1169, %v1192
      %v1210 = vmul.f32 %v1170, %v1196
      %v1211 = vmul.f32 %v1171, %v1192
      %v1212 = vmul.f32 %v1172, %v1196
      %v1213 = vmul.f32 %v1173, %v1192
      %v1214 = vmul.f32 %v1174, %v1196
      %v1215 = vmul.f32 %v1175, %v1192
      %v1216 = vmul.f32 %v1176, %v1196
      %v1217 = vmul.f32 %v1177, %v1192
      %v1218 = vmul.f32 %v1178, %v1196
      %v1219 = vmul.f32 %v1179, %v1192
      %v1220 = vmul.f32 %v1180, %v1196
      %v1221 = vmul.f32 %v1181, %v1192
      %v1222 = vmul.f32 %v1182, %v1196
      %v1223 = vmul.f32 %v1183, %v1192
      %v1224 = vmul.f32 %v1184, %v1196
      %v1225 = vmul.f32 %v1185, %v1192
      %v1226 = vmul.f32 %v1186, %v1196
      %v1227 = vmul.f32 %v1187, %v1192
      %v1228 = vmul.f32 %v1188, %v1196
      %v1229 = vadd.f32 %v963, %v1197
      %v1230 = vadd.f32 %v964, %v1198
      %v1231 = vadd.f32 %v965, %v1199
      %v1232 = vadd.f32 %v966, %v1200
      %v1233 = vadd.f32 %v967, %v1201
      %v1234 = vadd.f32 %v968, %v1202
      %v1235 = vadd.f32 %v969, %v1203
      %v1236 = vadd.f32 %v970, %v1204
      %v1237 = vadd.f32 %v971, %v1205
      %v1238 = vadd.f32 %v972, %v1206
      %v1239 = vadd.f32 %v973, %v1207
      %v1240 = vadd.f32 %v974, %v1208
      %v1241 = vadd.f32 %v975, %v1209
      %v1242 = vadd.f32 %v976, %v1210
      %v1243 = vadd.f32 %v977, %v1211
      %v1244 = vadd.f32 %v978, %v1212
      %v1245 = vadd.f32 %v979, %v1213
      %v1246 = vadd.f32 %v980, %v1214
      %v1247 = vadd.f32 %v981, %v1215
      %v1248 = vadd.f32 %v982, %v1216
      %v1249 = vadd.f32 %v983, %v1217
      %v1250 = vadd.f32 %v984, %v1218
      %v1251 = vadd.f32 %v985, %v1219
      %v1252 = vadd.f32 %v986, %v1220
      %v1253 = vadd.f32 %v987, %v1221
      %v1254 = vadd.f32 %v988, %v1222
      %v1255 = vadd.f32 %v989, %v1223
      %v1256 = vadd.f32 %v990, %v1224
      %v1257 = vadd.f32 %v991, %v1225
      %v1258 = vadd.f32 %v992, %v1226
      %v1259 = vadd.f32 %v993, %v1227
      %v1260 = vadd.f32 %v994, %v1228
      %v1261 = vld [vmem:[%s5 + $0x4] sm:$0xf]
      %v1262 = vld [vmem:[%s5 + $0x14] sm:$0xf]
      %v1263 = vld [vmem:[%s5 + $0x24] sm:$0xf]
      %v1264 = vld [vmem:[%s5 + $0x34] sm:$0xf]
      %v1265 = vld [vmem:[%s5 + $0x44] sm:$0xf]
      %v1266 = vld [vmem:[%s5 + $0x54] sm:$0xf]
      %v1267 = vld [vmem:[%s5 + $0x64] sm:$0xf]
      %v1268 = vld [vmem:[%s5 + $0x74] sm:$0xf]
      %v1269 = vld [vmem:[%s5 + $0x84] sm:$0xf]
      %v1270 = vld [vmem:[%s5 + $0x94] sm:$0xf]
      %v1271 = vld [vmem:[%s5 + $0xa4] sm:$0xf]
      %v1272 = vld [vmem:[%s5 + $0xb4] sm:$0xf]
      %v1273 = vld [vmem:[%s5 + $0xc4] sm:$0xf]
      %v1274 = vld [vmem:[%s5 + $0xd4] sm:$0xf]
      %v1275 = vld [vmem:[%s5 + $0xe4] sm:$0xf]
      %v1276 = vld [vmem:[%s5 + $0xf4] sm:$0xf]
      %v1277 = vld [vmem:[%s5 + $0x104] sm:$0xf]
      %v1278 = vld [vmem:[%s5 + $0x114] sm:$0xf]
      %v1279 = vld [vmem:[%s5 + $0x124] sm:$0xf]
      %v1280 = vld [vmem:[%s5 + $0x134] sm:$0xf]
      %v1281 = vld [vmem:[%s5 + $0x144] sm:$0xf]
      %v1282 = vld [vmem:[%s5 + $0x154] sm:$0xf]
      %v1283 = vld [vmem:[%s5 + $0x164] sm:$0xf]
      %v1284 = vld [vmem:[%s5 + $0x174] sm:$0xf]
      %v1285 = vld [vmem:[%s5 + $0x184] sm:$0xf]
      %v1286 = vld [vmem:[%s5 + $0x194] sm:$0xf]
      %v1287 = vld [vmem:[%s5 + $0x1a4] sm:$0xf]
      %v1288 = vld [vmem:[%s5 + $0x1b4] sm:$0xf]
      %v1289 = vld [vmem:[%s5 + $0x1c4] sm:$0xf]
      %v1290 = vld [vmem:[%s5 + $0x1d4] sm:$0xf]
      %v1291 = vld [vmem:[%s5 + $0x1e4] sm:$0xf]
      %v1292 = vld [vmem:[%s5 + $0x1f4] sm:$0xf]
      %v1293 = vunpack.c.l.bf16 %v1261
      %v1294 = vunpack.c.l.bf16 %v1262
      %v1295 = vunpack.c.l.bf16 %v1263
      %v1296 = vunpack.c.l.bf16 %v1264
      %v1297 = vunpack.c.l.bf16 %v1265
      %v1298 = vunpack.c.l.bf16 %v1266
      %v1299 = vunpack.c.l.bf16 %v1267
      %v1300 = vunpack.c.l.bf16 %v1268
      %v1301 = vunpack.c.l.bf16 %v1269
      %v1302 = vunpack.c.l.bf16 %v1270
      %v1303 = vunpack.c.l.bf16 %v1271
      %v1304 = vunpack.c.l.bf16 %v1272
      %v1305 = vunpack.c.l.bf16 %v1273
      %v1306 = vunpack.c.l.bf16 %v1274
      %v1307 = vunpack.c.l.bf16 %v1275
      %v1308 = vunpack.c.l.bf16 %v1276
      %v1309 = vunpack.c.l.bf16 %v1277
      %v1310 = vunpack.c.l.bf16 %v1278
      %v1311 = vunpack.c.l.bf16 %v1279
      %v1312 = vunpack.c.l.bf16 %v1280
      %v1313 = vunpack.c.l.bf16 %v1281
      %v1314 = vunpack.c.l.bf16 %v1282
      %v1315 = vunpack.c.l.bf16 %v1283
      %v1316 = vunpack.c.l.bf16 %v1284
      %v1317 = vunpack.c.l.bf16 %v1285
      %v1318 = vunpack.c.l.bf16 %v1286
      %v1319 = vunpack.c.l.bf16 %v1287
      %v1320 = vunpack.c.l.bf16 %v1288
      %v1321 = vunpack.c.l.bf16 %v1289
      %v1322 = vunpack.c.l.bf16 %v1290
      %v1323 = vunpack.c.l.bf16 %v1291
      %v1324 = vunpack.c.l.bf16 %v1292
      %v1325 = vlaneseq
      %v1326 = vshrl.u32 %v1325, 7
      %v1327 = vsub.s32 0, %v1326
      %v1328 = vrot.slane %v830, %v1327
      %v1329 = vmul.f32 %v1293, %v1328
      %v1330 = vmul.f32 %v1294, %v1328
      %v1331 = vmul.f32 %v1295, %v1328
      %v1332 = vmul.f32 %v1296, %v1328
      %v1333 = vmul.f32 %v1297, %v1328
      %v1334 = vmul.f32 %v1298, %v1328
      %v1335 = vmul.f32 %v1299, %v1328
      %v1336 = vmul.f32 %v1300, %v1328
      %v1337 = vmul.f32 %v1301, %v1328
      %v1338 = vmul.f32 %v1302, %v1328
      %v1339 = vmul.f32 %v1303, %v1328
      %v1340 = vmul.f32 %v1304, %v1328
      %v1341 = vmul.f32 %v1305, %v1328
      %v1342 = vmul.f32 %v1306, %v1328
      %v1343 = vmul.f32 %v1307, %v1328
      %v1344 = vmul.f32 %v1308, %v1328
      %v1345 = vmul.f32 %v1309, %v1328
      %v1346 = vmul.f32 %v1310, %v1328
      %v1347 = vmul.f32 %v1311, %v1328
      %v1348 = vmul.f32 %v1312, %v1328
      %v1349 = vmul.f32 %v1313, %v1328
      %v1350 = vmul.f32 %v1314, %v1328
      %v1351 = vmul.f32 %v1315, %v1328
      %v1352 = vmul.f32 %v1316, %v1328
      %v1353 = vmul.f32 %v1317, %v1328
      %v1354 = vmul.f32 %v1318, %v1328
      %v1355 = vmul.f32 %v1319, %v1328
      %v1356 = vmul.f32 %v1320, %v1328
      %v1357 = vmul.f32 %v1321, %v1328
      %v1358 = vmul.f32 %v1322, %v1328
      %v1359 = vmul.f32 %v1323, %v1328
      %v1360 = vmul.f32 %v1324, %v1328
      %v1361 = vadd.f32 %v1095, %v1329
      %v1362 = vadd.f32 %v1096, %v1330
      %v1363 = vadd.f32 %v1097, %v1331
      %v1364 = vadd.f32 %v1098, %v1332
      %v1365 = vadd.f32 %v1099, %v1333
      %v1366 = vadd.f32 %v1100, %v1334
      %v1367 = vadd.f32 %v1101, %v1335
      %v1368 = vadd.f32 %v1102, %v1336
      %v1369 = vadd.f32 %v1103, %v1337
      %v1370 = vadd.f32 %v1104, %v1338
      %v1371 = vadd.f32 %v1105, %v1339
      %v1372 = vadd.f32 %v1106, %v1340
      %v1373 = vadd.f32 %v1107, %v1341
      %v1374 = vadd.f32 %v1108, %v1342
      %v1375 = vadd.f32 %v1109, %v1343
      %v1376 = vadd.f32 %v1110, %v1344
      %v1377 = vadd.f32 %v1111, %v1345
      %v1378 = vadd.f32 %v1112, %v1346
      %v1379 = vadd.f32 %v1113, %v1347
      %v1380 = vadd.f32 %v1114, %v1348
      %v1381 = vadd.f32 %v1115, %v1349
      %v1382 = vadd.f32 %v1116, %v1350
      %v1383 = vadd.f32 %v1117, %v1351
      %v1384 = vadd.f32 %v1118, %v1352
      %v1385 = vadd.f32 %v1119, %v1353
      %v1386 = vadd.f32 %v1120, %v1354
      %v1387 = vadd.f32 %v1121, %v1355
      %v1388 = vadd.f32 %v1122, %v1356
      %v1389 = vadd.f32 %v1123, %v1357
      %v1390 = vadd.f32 %v1124, %v1358
      %v1391 = vadd.f32 %v1125, %v1359
      %v1392 = vadd.f32 %v1126, %v1360
      %s1393 = scalar_lea.vmem %s4, 16
      %v1394 = vld [vmem:[%s1393] sm:$0xff]
      %v1395 = vld [vmem:[%s1393 + $0x8] sm:$0x11]
      %v1396 = vunpack.c.l.bf16 %v1394
      %v1397 = vunpack.c.h.bf16 %v1394
      %v1398 = vunpack.c.l.bf16 %v1395
      %v1399 = vunpack.c.h.bf16 %v1395
      %v1400 = vmul.f32 %v1396, %v1192
      %v1401 = vmul.f32 %v1397, %v1196
      %v1402 = vmul.f32 %v1398, %v1192
      %v1403 = vmul.f32 %v1399, %v1196
      %v1404 = vadd.f32 %v1137, %v1400
      %v1405 = vadd.f32 %v1138, %v1401
      %v1406 = vadd.f32 %v1139, %v1402
      %v1407 = vadd.f32 %v1140, %v1403
      %v1408 = vld [vmem:[%s3 + $0x10] sm:$0xff]
      %v1409 = vld [vmem:[%s3 + $0x30] sm:$0xff]
      %v1410 = vld [vmem:[%s3 + $0x50] sm:$0xff]
      %v1411 = vld [vmem:[%s3 + $0x70] sm:$0xff]
      %v1412 = vld [vmem:[%s3 + $0x90] sm:$0xff]
      %v1413 = vld [vmem:[%s3 + $0xb0] sm:$0xff]
      %v1414 = vld [vmem:[%s3 + $0xd0] sm:$0xff]
      %v1415 = vld [vmem:[%s3 + $0xf0] sm:$0xff]
      %v1416 = vld [vmem:[%s3 + $0x110] sm:$0xff]
      %v1417 = vld [vmem:[%s3 + $0x130] sm:$0xff]
      %v1418 = vld [vmem:[%s3 + $0x150] sm:$0xff]
      %v1419 = vld [vmem:[%s3 + $0x170] sm:$0xff]
      %v1420 = vld [vmem:[%s3 + $0x190] sm:$0xff]
      %v1421 = vld [vmem:[%s3 + $0x1b0] sm:$0xff]
      %v1422 = vld [vmem:[%s3 + $0x1d0] sm:$0xff]
      %v1423 = vld [vmem:[%s3 + $0x1f0] sm:$0xff]
      %v1424 = vunpack.c.l.bf16 %v1408
      %v1425 = vunpack.c.h.bf16 %v1408
      %v1426 = vunpack.c.l.bf16 %v1409
      %v1427 = vunpack.c.h.bf16 %v1409
      %v1428 = vunpack.c.l.bf16 %v1410
      %v1429 = vunpack.c.h.bf16 %v1410
      %v1430 = vunpack.c.l.bf16 %v1411
      %v1431 = vunpack.c.h.bf16 %v1411
      %v1432 = vunpack.c.l.bf16 %v1412
      %v1433 = vunpack.c.h.bf16 %v1412
      %v1434 = vunpack.c.l.bf16 %v1413
      %v1435 = vunpack.c.h.bf16 %v1413
      %v1436 = vunpack.c.l.bf16 %v1414
      %v1437 = vunpack.c.h.bf16 %v1414
      %v1438 = vunpack.c.l.bf16 %v1415
      %v1439 = vunpack.c.h.bf16 %v1415
      %v1440 = vunpack.c.l.bf16 %v1416
      %v1441 = vunpack.c.h.bf16 %v1416
      %v1442 = vunpack.c.l.bf16 %v1417
      %v1443 = vunpack.c.h.bf16 %v1417
      %v1444 = vunpack.c.l.bf16 %v1418
      %v1445 = vunpack.c.h.bf16 %v1418
      %v1446 = vunpack.c.l.bf16 %v1419
      %v1447 = vunpack.c.h.bf16 %v1419
      %v1448 = vunpack.c.l.bf16 %v1420
      %v1449 = vunpack.c.h.bf16 %v1420
      %v1450 = vunpack.c.l.bf16 %v1421
      %v1451 = vunpack.c.h.bf16 %v1421
      %v1452 = vunpack.c.l.bf16 %v1422
      %v1453 = vunpack.c.h.bf16 %v1422
      %v1454 = vunpack.c.l.bf16 %v1423
      %v1455 = vunpack.c.h.bf16 %v1423
      %v1456 = vlaneseq
      %v1457 = vshrl.u32 %v1456, 7
      %v1458 = vsub.s32 0, %v1457
      %v1459 = vrot.slane %v746, %v1458
      %v1460 = vlaneseq
      %v1461 = vshrl.u32 %v1460, 7
      %v1462 = vsub.s32 0, %v1461
      %v1463 = vrot.slane %v748, %v1462
      %v1464 = vmul.f32 %v1424, %v1459
      %v1465 = vmul.f32 %v1425, %v1463
      %v1466 = vmul.f32 %v1426, %v1459
      %v1467 = vmul.f32 %v1427, %v1463
      %v1468 = vmul.f32 %v1428, %v1459
      %v1469 = vmul.f32 %v1429, %v1463
      %v1470 = vmul.f32 %v1430, %v1459
      %v1471 = vmul.f32 %v1431, %v1463
      %v1472 = vmul.f32 %v1432, %v1459
      %v1473 = vmul.f32 %v1433, %v1463
      %v1474 = vmul.f32 %v1434, %v1459
      %v1475 = vmul.f32 %v1435, %v1463
      %v1476 = vmul.f32 %v1436, %v1459
      %v1477 = vmul.f32 %v1437, %v1463
      %v1478 = vmul.f32 %v1438, %v1459
      %v1479 = vmul.f32 %v1439, %v1463
      %v1480 = vmul.f32 %v1440, %v1459
      %v1481 = vmul.f32 %v1441, %v1463
      %v1482 = vmul.f32 %v1442, %v1459
      %v1483 = vmul.f32 %v1443, %v1463
      %v1484 = vmul.f32 %v1444, %v1459
      %v1485 = vmul.f32 %v1445, %v1463
      %v1486 = vmul.f32 %v1446, %v1459
      %v1487 = vmul.f32 %v1447, %v1463
      %v1488 = vmul.f32 %v1448, %v1459
      %v1489 = vmul.f32 %v1449, %v1463
      %v1490 = vmul.f32 %v1450, %v1459
      %v1491 = vmul.f32 %v1451, %v1463
      %v1492 = vmul.f32 %v1452, %v1459
      %v1493 = vmul.f32 %v1453, %v1463
      %v1494 = vmul.f32 %v1454, %v1459
      %v1495 = vmul.f32 %v1455, %v1463
      %v1496 = vadd.f32 %v1229, %v1464
      %v1497 = vadd.f32 %v1230, %v1465
      %v1498 = vadd.f32 %v1231, %v1466
      %v1499 = vadd.f32 %v1232, %v1467
      %v1500 = vadd.f32 %v1233, %v1468
      %v1501 = vadd.f32 %v1234, %v1469
      %v1502 = vadd.f32 %v1235, %v1470
      %v1503 = vadd.f32 %v1236, %v1471
      %v1504 = vadd.f32 %v1237, %v1472
      %v1505 = vadd.f32 %v1238, %v1473
      %v1506 = vadd.f32 %v1239, %v1474
      %v1507 = vadd.f32 %v1240, %v1475
      %v1508 = vadd.f32 %v1241, %v1476
      %v1509 = vadd.f32 %v1242, %v1477
      %v1510 = vadd.f32 %v1243, %v1478
      %v1511 = vadd.f32 %v1244, %v1479
      %v1512 = vadd.f32 %v1245, %v1480
      %v1513 = vadd.f32 %v1246, %v1481
      %v1514 = vadd.f32 %v1247, %v1482
      %v1515 = vadd.f32 %v1248, %v1483
      %v1516 = vadd.f32 %v1249, %v1484
      %v1517 = vadd.f32 %v1250, %v1485
      %v1518 = vadd.f32 %v1251, %v1486
      %v1519 = vadd.f32 %v1252, %v1487
      %v1520 = vadd.f32 %v1253, %v1488
      %v1521 = vadd.f32 %v1254, %v1489
      %v1522 = vadd.f32 %v1255, %v1490
      %v1523 = vadd.f32 %v1256, %v1491
      %v1524 = vadd.f32 %v1257, %v1492
      %v1525 = vadd.f32 %v1258, %v1493
      %v1526 = vadd.f32 %v1259, %v1494
      %v1527 = vadd.f32 %v1260, %v1495
      %v1528 = vld [vmem:[%s5 + $0x8] sm:$0xf]
      %v1529 = vld [vmem:[%s5 + $0x18] sm:$0xf]
      %v1530 = vld [vmem:[%s5 + $0x28] sm:$0xf]
      %v1531 = vld [vmem:[%s5 + $0x38] sm:$0xf]
      %v1532 = vld [vmem:[%s5 + $0x48] sm:$0xf]
      %v1533 = vld [vmem:[%s5 + $0x58] sm:$0xf]
      %v1534 = vld [vmem:[%s5 + $0x68] sm:$0xf]
      %v1535 = vld [vmem:[%s5 + $0x78] sm:$0xf]
      %v1536 = vld [vmem:[%s5 + $0x88] sm:$0xf]
      %v1537 = vld [vmem:[%s5 + $0x98] sm:$0xf]
      %v1538 = vld [vmem:[%s5 + $0xa8] sm:$0xf]
      %v1539 = vld [vmem:[%s5 + $0xb8] sm:$0xf]
      %v1540 = vld [vmem:[%s5 + $0xc8] sm:$0xf]
      %v1541 = vld [vmem:[%s5 + $0xd8] sm:$0xf]
      %v1542 = vld [vmem:[%s5 + $0xe8] sm:$0xf]
      %v1543 = vld [vmem:[%s5 + $0xf8] sm:$0xf]
      %v1544 = vld [vmem:[%s5 + $0x108] sm:$0xf]
      %v1545 = vld [vmem:[%s5 + $0x118] sm:$0xf]
      %v1546 = vld [vmem:[%s5 + $0x128] sm:$0xf]
      %v1547 = vld [vmem:[%s5 + $0x138] sm:$0xf]
      %v1548 = vld [vmem:[%s5 + $0x148] sm:$0xf]
      %v1549 = vld [vmem:[%s5 + $0x158] sm:$0xf]
      %v1550 = vld [vmem:[%s5 + $0x168] sm:$0xf]
      %v1551 = vld [vmem:[%s5 + $0x178] sm:$0xf]
      %v1552 = vld [vmem:[%s5 + $0x188] sm:$0xf]
      %v1553 = vld [vmem:[%s5 + $0x198] sm:$0xf]
      %v1554 = vld [vmem:[%s5 + $0x1a8] sm:$0xf]
      %v1555 = vld [vmem:[%s5 + $0x1b8] sm:$0xf]
      %v1556 = vld [vmem:[%s5 + $0x1c8] sm:$0xf]
      %v1557 = vld [vmem:[%s5 + $0x1d8] sm:$0xf]
      %v1558 = vld [vmem:[%s5 + $0x1e8] sm:$0xf]
      %v1559 = vld [vmem:[%s5 + $0x1f8] sm:$0xf]
      %v1560 = vunpack.c.l.bf16 %v1528
      %v1561 = vunpack.c.l.bf16 %v1529
      %v1562 = vunpack.c.l.bf16 %v1530
      %v1563 = vunpack.c.l.bf16 %v1531
      %v1564 = vunpack.c.l.bf16 %v1532
      %v1565 = vunpack.c.l.bf16 %v1533
      %v1566 = vunpack.c.l.bf16 %v1534
      %v1567 = vunpack.c.l.bf16 %v1535
      %v1568 = vunpack.c.l.bf16 %v1536
      %v1569 = vunpack.c.l.bf16 %v1537
      %v1570 = vunpack.c.l.bf16 %v1538
      %v1571 = vunpack.c.l.bf16 %v1539
      %v1572 = vunpack.c.l.bf16 %v1540
      %v1573 = vunpack.c.l.bf16 %v1541
      %v1574 = vunpack.c.l.bf16 %v1542
      %v1575 = vunpack.c.l.bf16 %v1543
      %v1576 = vunpack.c.l.bf16 %v1544
      %v1577 = vunpack.c.l.bf16 %v1545
      %v1578 = vunpack.c.l.bf16 %v1546
      %v1579 = vunpack.c.l.bf16 %v1547
      %v1580 = vunpack.c.l.bf16 %v1548
      %v1581 = vunpack.c.l.bf16 %v1549
      %v1582 = vunpack.c.l.bf16 %v1550
      %v1583 = vunpack.c.l.bf16 %v1551
      %v1584 = vunpack.c.l.bf16 %v1552
      %v1585 = vunpack.c.l.bf16 %v1553
      %v1586 = vunpack.c.l.bf16 %v1554
      %v1587 = vunpack.c.l.bf16 %v1555
      %v1588 = vunpack.c.l.bf16 %v1556
      %v1589 = vunpack.c.l.bf16 %v1557
      %v1590 = vunpack.c.l.bf16 %v1558
      %v1591 = vunpack.c.l.bf16 %v1559
      %v1592 = vlaneseq
      %v1593 = vshrl.u32 %v1592, 7
      %v1594 = vsub.s32 0, %v1593
      %v1595 = vrot.slane %v869, %v1594
      %v1596 = vmul.f32 %v1560, %v1595
      %v1597 = vmul.f32 %v1561, %v1595
      %v1598 = vmul.f32 %v1562, %v1595
      %v1599 = vmul.f32 %v1563, %v1595
      %v1600 = vmul.f32 %v1564, %v1595
      %v1601 = vmul.f32 %v1565, %v1595
      %v1602 = vmul.f32 %v1566, %v1595
      %v1603 = vmul.f32 %v1567, %v1595
      %v1604 = vmul.f32 %v1568, %v1595
      %v1605 = vmul.f32 %v1569, %v1595
      %v1606 = vmul.f32 %v1570, %v1595
      %v1607 = vmul.f32 %v1571, %v1595
      %v1608 = vmul.f32 %v1572, %v1595
      %v1609 = vmul.f32 %v1573, %v1595
      %v1610 = vmul.f32 %v1574, %v1595
      %v1611 = vmul.f32 %v1575, %v1595
      %v1612 = vmul.f32 %v1576, %v1595
      %v1613 = vmul.f32 %v1577, %v1595
      %v1614 = vmul.f32 %v1578, %v1595
      %v1615 = vmul.f32 %v1579, %v1595
      %v1616 = vmul.f32 %v1580, %v1595
      %v1617 = vmul.f32 %v1581, %v1595
      %v1618 = vmul.f32 %v1582, %v1595
      %v1619 = vmul.f32 %v1583, %v1595
      %v1620 = vmul.f32 %v1584, %v1595
      %v1621 = vmul.f32 %v1585, %v1595
      %v1622 = vmul.f32 %v1586, %v1595
      %v1623 = vmul.f32 %v1587, %v1595
      %v1624 = vmul.f32 %v1588, %v1595
      %v1625 = vmul.f32 %v1589, %v1595
      %v1626 = vmul.f32 %v1590, %v1595
      %v1627 = vmul.f32 %v1591, %v1595
      %v1628 = vadd.f32 %v1361, %v1596
      %v1629 = vadd.f32 %v1362, %v1597
      %v1630 = vadd.f32 %v1363, %v1598
      %v1631 = vadd.f32 %v1364, %v1599
      %v1632 = vadd.f32 %v1365, %v1600
      %v1633 = vadd.f32 %v1366, %v1601
      %v1634 = vadd.f32 %v1367, %v1602
      %v1635 = vadd.f32 %v1368, %v1603
      %v1636 = vadd.f32 %v1369, %v1604
      %v1637 = vadd.f32 %v1370, %v1605
      %v1638 = vadd.f32 %v1371, %v1606
      %v1639 = vadd.f32 %v1372, %v1607
      %v1640 = vadd.f32 %v1373, %v1608
      %v1641 = vadd.f32 %v1374, %v1609
      %v1642 = vadd.f32 %v1375, %v1610
      %v1643 = vadd.f32 %v1376, %v1611
      %v1644 = vadd.f32 %v1377, %v1612
      %v1645 = vadd.f32 %v1378, %v1613
      %v1646 = vadd.f32 %v1379, %v1614
      %v1647 = vadd.f32 %v1380, %v1615
      %v1648 = vadd.f32 %v1381, %v1616
      %v1649 = vadd.f32 %v1382, %v1617
      %v1650 = vadd.f32 %v1383, %v1618
      %v1651 = vadd.f32 %v1384, %v1619
      %v1652 = vadd.f32 %v1385, %v1620
      %v1653 = vadd.f32 %v1386, %v1621
      %v1654 = vadd.f32 %v1387, %v1622
      %v1655 = vadd.f32 %v1388, %v1623
      %v1656 = vadd.f32 %v1389, %v1624
      %v1657 = vadd.f32 %v1390, %v1625
      %v1658 = vadd.f32 %v1391, %v1626
      %v1659 = vadd.f32 %v1392, %v1627
      %s1660 = scalar_lea.vmem %s4, 32
      %v1661 = vld [vmem:[%s1660] sm:$0xff]
      %v1662 = vld [vmem:[%s1660 + $0x8] sm:$0x11]
      %v1663 = vunpack.c.l.bf16 %v1661
      %v1664 = vunpack.c.h.bf16 %v1661
      %v1665 = vunpack.c.l.bf16 %v1662
      %v1666 = vunpack.c.h.bf16 %v1662
      %v1667 = vmul.f32 %v1663, %v1459
      %v1668 = vmul.f32 %v1664, %v1463
      %v1669 = vmul.f32 %v1665, %v1459
      %v1670 = vmul.f32 %v1666, %v1463
      %v1671 = vadd.f32 %v1404, %v1667
      %v1672 = vadd.f32 %v1405, %v1668
      %v1673 = vadd.f32 %v1406, %v1669
      %v1674 = vadd.f32 %v1407, %v1670
      %v1675 = vld [vmem:[%s3 + $0x18] sm:$0xff]
      %v1676 = vld [vmem:[%s3 + $0x38] sm:$0xff]
      %v1677 = vld [vmem:[%s3 + $0x58] sm:$0xff]
      %v1678 = vld [vmem:[%s3 + $0x78] sm:$0xff]
      %v1679 = vld [vmem:[%s3 + $0x98] sm:$0xff]
      %v1680 = vld [vmem:[%s3 + $0xb8] sm:$0xff]
      %v1681 = vld [vmem:[%s3 + $0xd8] sm:$0xff]
      %v1682 = vld [vmem:[%s3 + $0xf8] sm:$0xff]
      %v1683 = vld [vmem:[%s3 + $0x118] sm:$0xff]
      %v1684 = vld [vmem:[%s3 + $0x138] sm:$0xff]
      %v1685 = vld [vmem:[%s3 + $0x158] sm:$0xff]
      %v1686 = vld [vmem:[%s3 + $0x178] sm:$0xff]
      %v1687 = vld [vmem:[%s3 + $0x198] sm:$0xff]
      %v1688 = vld [vmem:[%s3 + $0x1b8] sm:$0xff]
      %v1689 = vld [vmem:[%s3 + $0x1d8] sm:$0xff]
      %v1690 = vld [vmem:[%s3 + $0x1f8] sm:$0xff]
      %v1691 = vunpack.c.l.bf16 %v1675
      %v1692 = vunpack.c.h.bf16 %v1675
      %v1693 = vunpack.c.l.bf16 %v1676
      %v1694 = vunpack.c.h.bf16 %v1676
      %v1695 = vunpack.c.l.bf16 %v1677
      %v1696 = vunpack.c.h.bf16 %v1677
      %v1697 = vunpack.c.l.bf16 %v1678
      %v1698 = vunpack.c.h.bf16 %v1678
      %v1699 = vunpack.c.l.bf16 %v1679
      %v1700 = vunpack.c.h.bf16 %v1679
      %v1701 = vunpack.c.l.bf16 %v1680
      %v1702 = vunpack.c.h.bf16 %v1680
      %v1703 = vunpack.c.l.bf16 %v1681
      %v1704 = vunpack.c.h.bf16 %v1681
      %v1705 = vunpack.c.l.bf16 %v1682
      %v1706 = vunpack.c.h.bf16 %v1682
      %v1707 = vunpack.c.l.bf16 %v1683
      %v1708 = vunpack.c.h.bf16 %v1683
      %v1709 = vunpack.c.l.bf16 %v1684
      %v1710 = vunpack.c.h.bf16 %v1684
      %v1711 = vunpack.c.l.bf16 %v1685
      %v1712 = vunpack.c.h.bf16 %v1685
      %v1713 = vunpack.c.l.bf16 %v1686
      %v1714 = vunpack.c.h.bf16 %v1686
      %v1715 = vunpack.c.l.bf16 %v1687
      %v1716 = vunpack.c.h.bf16 %v1687
      %v1717 = vunpack.c.l.bf16 %v1688
      %v1718 = vunpack.c.h.bf16 %v1688
      %v1719 = vunpack.c.l.bf16 %v1689
      %v1720 = vunpack.c.h.bf16 %v1689
      %v1721 = vunpack.c.l.bf16 %v1690
      %v1722 = vunpack.c.h.bf16 %v1690
      %v1723 = vlaneseq
      %v1724 = vshrl.u32 %v1723, 7
      %v1725 = vsub.s32 0, %v1724
      %v1726 = vrot.slane %v787, %v1725
      %v1727 = vlaneseq
      %v1728 = vshrl.u32 %v1727, 7
      %v1729 = vsub.s32 0, %v1728
      %v1730 = vrot.slane %v789, %v1729
      %v1731 = vmul.f32 %v1691, %v1726
      %v1732 = vmul.f32 %v1692, %v1730
      %v1733 = vmul.f32 %v1693, %v1726
      %v1734 = vmul.f32 %v1694, %v1730
      %v1735 = vmul.f32 %v1695, %v1726
      %v1736 = vmul.f32 %v1696, %v1730
      %v1737 = vmul.f32 %v1697, %v1726
      %v1738 = vmul.f32 %v1698, %v1730
      %v1739 = vmul.f32 %v1699, %v1726
      %v1740 = vmul.f32 %v1700, %v1730
      %v1741 = vmul.f32 %v1701, %v1726
      %v1742 = vmul.f32 %v1702, %v1730
      %v1743 = vmul.f32 %v1703, %v1726
      %v1744 = vmul.f32 %v1704, %v1730
      %v1745 = vmul.f32 %v1705, %v1726
      %v1746 = vmul.f32 %v1706, %v1730
      %v1747 = vmul.f32 %v1707, %v1726
      %v1748 = vmul.f32 %v1708, %v1730
      %v1749 = vmul.f32 %v1709, %v1726
      %v1750 = vmul.f32 %v1710, %v1730
      %v1751 = vmul.f32 %v1711, %v1726
      %v1752 = vmul.f32 %v1712, %v1730
      %v1753 = vmul.f32 %v1713, %v1726
      %v1754 = vmul.f32 %v1714, %v1730
      %v1755 = vmul.f32 %v1715, %v1726
      %v1756 = vmul.f32 %v1716, %v1730
      %v1757 = vmul.f32 %v1717, %v1726
      %v1758 = vmul.f32 %v1718, %v1730
      %v1759 = vmul.f32 %v1719, %v1726
      %v1760 = vmul.f32 %v1720, %v1730
      %v1761 = vmul.f32 %v1721, %v1726
      %v1762 = vmul.f32 %v1722, %v1730
      %v1763 = vadd.f32 %v1496, %v1731
      %v1764 = vadd.f32 %v1497, %v1732
      %v1765 = vadd.f32 %v1498, %v1733
      %v1766 = vadd.f32 %v1499, %v1734
      %v1767 = vadd.f32 %v1500, %v1735
      %v1768 = vadd.f32 %v1501, %v1736
      %v1769 = vadd.f32 %v1502, %v1737
      %v1770 = vadd.f32 %v1503, %v1738
      %v1771 = vadd.f32 %v1504, %v1739
      %v1772 = vadd.f32 %v1505, %v1740
      %v1773 = vadd.f32 %v1506, %v1741
      %v1774 = vadd.f32 %v1507, %v1742
      %v1775 = vadd.f32 %v1508, %v1743
      %v1776 = vadd.f32 %v1509, %v1744
      %v1777 = vadd.f32 %v1510, %v1745
      %v1778 = vadd.f32 %v1511, %v1746
      %v1779 = vadd.f32 %v1512, %v1747
      %v1780 = vadd.f32 %v1513, %v1748
      %v1781 = vadd.f32 %v1514, %v1749
      %v1782 = vadd.f32 %v1515, %v1750
      %v1783 = vadd.f32 %v1516, %v1751
      %v1784 = vadd.f32 %v1517, %v1752
      %v1785 = vadd.f32 %v1518, %v1753
      %v1786 = vadd.f32 %v1519, %v1754
      %v1787 = vadd.f32 %v1520, %v1755
      %v1788 = vadd.f32 %v1521, %v1756
      %v1789 = vadd.f32 %v1522, %v1757
      %v1790 = vadd.f32 %v1523, %v1758
      %v1791 = vadd.f32 %v1524, %v1759
      %v1792 = vadd.f32 %v1525, %v1760
      %v1793 = vadd.f32 %v1526, %v1761
      %v1794 = vadd.f32 %v1527, %v1762
      %v1795 = vld [vmem:[%s5 + $0xc] sm:$0xf]
      %v1796 = vld [vmem:[%s5 + $0x1c] sm:$0xf]
      %v1797 = vld [vmem:[%s5 + $0x2c] sm:$0xf]
      %v1798 = vld [vmem:[%s5 + $0x3c] sm:$0xf]
      %v1799 = vld [vmem:[%s5 + $0x4c] sm:$0xf]
      %v1800 = vld [vmem:[%s5 + $0x5c] sm:$0xf]
      %v1801 = vld [vmem:[%s5 + $0x6c] sm:$0xf]
      %v1802 = vld [vmem:[%s5 + $0x7c] sm:$0xf]
      %v1803 = vld [vmem:[%s5 + $0x8c] sm:$0xf]
      %v1804 = vld [vmem:[%s5 + $0x9c] sm:$0xf]
      %v1805 = vld [vmem:[%s5 + $0xac] sm:$0xf]
      %v1806 = vld [vmem:[%s5 + $0xbc] sm:$0xf]
      %v1807 = vld [vmem:[%s5 + $0xcc] sm:$0xf]
      %v1808 = vld [vmem:[%s5 + $0xdc] sm:$0xf]
      %v1809 = vld [vmem:[%s5 + $0xec] sm:$0xf]
      %v1810 = vld [vmem:[%s5 + $0xfc] sm:$0xf]
      %v1811 = vld [vmem:[%s5 + $0x10c] sm:$0xf]
      %v1812 = vld [vmem:[%s5 + $0x11c] sm:$0xf]
      %v1813 = vld [vmem:[%s5 + $0x12c] sm:$0xf]
      %v1814 = vld [vmem:[%s5 + $0x13c] sm:$0xf]
      %v1815 = vld [vmem:[%s5 + $0x14c] sm:$0xf]
      %v1816 = vld [vmem:[%s5 + $0x15c] sm:$0xf]
      %v1817 = vld [vmem:[%s5 + $0x16c] sm:$0xf]
      %v1818 = vld [vmem:[%s5 + $0x17c] sm:$0xf]
      %v1819 = vld [vmem:[%s5 + $0x18c] sm:$0xf]
      %v1820 = vld [vmem:[%s5 + $0x19c] sm:$0xf]
      %v1821 = vld [vmem:[%s5 + $0x1ac] sm:$0xf]
      %v1822 = vld [vmem:[%s5 + $0x1bc] sm:$0xf]
      %v1823 = vld [vmem:[%s5 + $0x1cc] sm:$0xf]
      %v1824 = vld [vmem:[%s5 + $0x1dc] sm:$0xf]
      %v1825 = vld [vmem:[%s5 + $0x1ec] sm:$0xf]
      %v1826 = vld [vmem:[%s5 + $0x1fc] sm:$0xf]
      %v1827 = vunpack.c.l.bf16 %v1795
      %v1828 = vunpack.c.l.bf16 %v1796
      %v1829 = vunpack.c.l.bf16 %v1797
      %v1830 = vunpack.c.l.bf16 %v1798
      %v1831 = vunpack.c.l.bf16 %v1799
      %v1832 = vunpack.c.l.bf16 %v1800
      %v1833 = vunpack.c.l.bf16 %v1801
      %v1834 = vunpack.c.l.bf16 %v1802
      %v1835 = vunpack.c.l.bf16 %v1803
      %v1836 = vunpack.c.l.bf16 %v1804
      %v1837 = vunpack.c.l.bf16 %v1805
      %v1838 = vunpack.c.l.bf16 %v1806
      %v1839 = vunpack.c.l.bf16 %v1807
      %v1840 = vunpack.c.l.bf16 %v1808
      %v1841 = vunpack.c.l.bf16 %v1809
      %v1842 = vunpack.c.l.bf16 %v1810
      %v1843 = vunpack.c.l.bf16 %v1811
      %v1844 = vunpack.c.l.bf16 %v1812
      %v1845 = vunpack.c.l.bf16 %v1813
      %v1846 = vunpack.c.l.bf16 %v1814
      %v1847 = vunpack.c.l.bf16 %v1815
      %v1848 = vunpack.c.l.bf16 %v1816
      %v1849 = vunpack.c.l.bf16 %v1817
      %v1850 = vunpack.c.l.bf16 %v1818
      %v1851 = vunpack.c.l.bf16 %v1819
      %v1852 = vunpack.c.l.bf16 %v1820
      %v1853 = vunpack.c.l.bf16 %v1821
      %v1854 = vunpack.c.l.bf16 %v1822
      %v1855 = vunpack.c.l.bf16 %v1823
      %v1856 = vunpack.c.l.bf16 %v1824
      %v1857 = vunpack.c.l.bf16 %v1825
      %v1858 = vunpack.c.l.bf16 %v1826
      %v1859 = vlaneseq
      %v1860 = vshrl.u32 %v1859, 7
      %v1861 = vsub.s32 0, %v1860
      %v1862 = vrot.slane %v871, %v1861
      %v1863 = vmul.f32 %v1827, %v1862
      %v1864 = vmul.f32 %v1828, %v1862
      %v1865 = vmul.f32 %v1829, %v1862
      %v1866 = vmul.f32 %v1830, %v1862
      %v1867 = vmul.f32 %v1831, %v1862
      %v1868 = vmul.f32 %v1832, %v1862
      %v1869 = vmul.f32 %v1833, %v1862
      %v1870 = vmul.f32 %v1834, %v1862
      %v1871 = vmul.f32 %v1835, %v1862
      %v1872 = vmul.f32 %v1836, %v1862
      %v1873 = vmul.f32 %v1837, %v1862
      %v1874 = vmul.f32 %v1838, %v1862
      %v1875 = vmul.f32 %v1839, %v1862
      %v1876 = vmul.f32 %v1840, %v1862
      %v1877 = vmul.f32 %v1841, %v1862
      %v1878 = vmul.f32 %v1842, %v1862
      %v1879 = vmul.f32 %v1843, %v1862
      %v1880 = vmul.f32 %v1844, %v1862
      %v1881 = vmul.f32 %v1845, %v1862
      %v1882 = vmul.f32 %v1846, %v1862
      %v1883 = vmul.f32 %v1847, %v1862
      %v1884 = vmul.f32 %v1848, %v1862
      %v1885 = vmul.f32 %v1849, %v1862
      %v1886 = vmul.f32 %v1850, %v1862
      %v1887 = vmul.f32 %v1851, %v1862
      %v1888 = vmul.f32 %v1852, %v1862
      %v1889 = vmul.f32 %v1853, %v1862
      %v1890 = vmul.f32 %v1854, %v1862
      %v1891 = vmul.f32 %v1855, %v1862
      %v1892 = vmul.f32 %v1856, %v1862
      %v1893 = vmul.f32 %v1857, %v1862
      %v1894 = vmul.f32 %v1858, %v1862
      %v1895 = vadd.f32 %v1628, %v1863
      %v1896 = vadd.f32 %v1629, %v1864
      %v1897 = vadd.f32 %v1630, %v1865
      %v1898 = vadd.f32 %v1631, %v1866
      %v1899 = vadd.f32 %v1632, %v1867
      %v1900 = vadd.f32 %v1633, %v1868
      %v1901 = vadd.f32 %v1634, %v1869
      %v1902 = vadd.f32 %v1635, %v1870
      %v1903 = vadd.f32 %v1636, %v1871
      %v1904 = vadd.f32 %v1637, %v1872
      %v1905 = vadd.f32 %v1638, %v1873
      %v1906 = vadd.f32 %v1639, %v1874
      %v1907 = vadd.f32 %v1640, %v1875
      %v1908 = vadd.f32 %v1641, %v1876
      %v1909 = vadd.f32 %v1642, %v1877
      %v1910 = vadd.f32 %v1643, %v1878
      %v1911 = vadd.f32 %v1644, %v1879
      %v1912 = vadd.f32 %v1645, %v1880
      %v1913 = vadd.f32 %v1646, %v1881
      %v1914 = vadd.f32 %v1647, %v1882
      %v1915 = vadd.f32 %v1648, %v1883
      %v1916 = vadd.f32 %v1649, %v1884
      %v1917 = vadd.f32 %v1650, %v1885
      %v1918 = vadd.f32 %v1651, %v1886
      %v1919 = vadd.f32 %v1652, %v1887
      %v1920 = vadd.f32 %v1653, %v1888
      %v1921 = vadd.f32 %v1654, %v1889
      %v1922 = vadd.f32 %v1655, %v1890
      %v1923 = vadd.f32 %v1656, %v1891
      %v1924 = vadd.f32 %v1657, %v1892
      %v1925 = vadd.f32 %v1658, %v1893
      %v1926 = vadd.f32 %v1659, %v1894
      %s1927 = scalar_lea.vmem %s4, 48
      %v1928 = vld [vmem:[%s1927] sm:$0xff]
      %v1929 = vld [vmem:[%s1927 + $0x8] sm:$0x11]
      %v1930 = vunpack.c.l.bf16 %v1928
      %v1931 = vunpack.c.h.bf16 %v1928
      %v1932 = vunpack.c.l.bf16 %v1929
      %v1933 = vunpack.c.h.bf16 %v1929
      %v1934 = vmul.f32 %v1930, %v1726
      %v1935 = vmul.f32 %v1931, %v1730
      %v1936 = vmul.f32 %v1932, %v1726
      %v1937 = vmul.f32 %v1933, %v1730
      %v1938 = vadd.f32 %v1671, %v1934
      %v1939 = vadd.f32 %v1672, %v1935
      %v1940 = vadd.f32 %v1673, %v1936
      %v1941 = vadd.f32 %v1674, %v1937
      %v1942 = vpack.c.bf16 %v1765, %v1763
      %v1943 = vpack.c.bf16 %v1766, %v1764
      %v1944 = vpack.c.bf16 %v1769, %v1767
      %v1945 = vpack.c.bf16 %v1770, %v1768
      %v1946 = vpack.c.bf16 %v1773, %v1771
      %v1947 = vpack.c.bf16 %v1774, %v1772
      %v1948 = vpack.c.bf16 %v1777, %v1775
      %v1949 = vpack.c.bf16 %v1778, %v1776
      %v1950 = vpack.c.bf16 %v1781, %v1779
      %v1951 = vpack.c.bf16 %v1782, %v1780
      %v1952 = vpack.c.bf16 %v1785, %v1783
      %v1953 = vpack.c.bf16 %v1786, %v1784
      %v1954 = vpack.c.bf16 %v1789, %v1787
      %v1955 = vpack.c.bf16 %v1790, %v1788
      %v1956 = vpack.c.bf16 %v1793, %v1791
      %v1957 = vpack.c.bf16 %v1794, %v1792
      %v1990 = vunpack.c.l.b16 %v280
      %v1991 = vunpack.c.l.b16 %v281
      %v1992 = vunpack.c.l.b16 %v282
      %v1993 = vunpack.c.l.b16 %v283
      %v1994 = vunpack.c.l.b16 %v284
      %v1995 = vunpack.c.l.b16 %v285
      %v1996 = vunpack.c.l.b16 %v286
      %v1997 = vunpack.c.l.b16 %v287
      %v1998 = vunpack.c.l.b16 %v288
      %v1999 = vunpack.c.l.b16 %v289
      %v2000 = vunpack.c.l.b16 %v290
      %v2001 = vunpack.c.l.b16 %v291
      %v2002 = vunpack.c.l.b16 %v292
      %v2003 = vunpack.c.l.b16 %v293
      %v2004 = vunpack.c.l.b16 %v294
      %v2005 = vunpack.c.l.b16 %v295
      %v2006 = vunpack.c.l.b16 %v296
      %v2007 = vunpack.c.l.b16 %v297
      %v2008 = vunpack.c.l.b16 %v298
      %v2009 = vunpack.c.l.b16 %v299
      %v2010 = vunpack.c.l.b16 %v300
      %v2011 = vunpack.c.l.b16 %v301
      %v2012 = vunpack.c.l.b16 %v302
      %v2013 = vunpack.c.l.b16 %v303
      %v2014 = vunpack.c.l.b16 %v304
      %v2015 = vunpack.c.l.b16 %v305
      %v2016 = vunpack.c.l.b16 %v306
      %v2017 = vunpack.c.l.b16 %v307
      %v2018 = vunpack.c.l.b16 %v308
      %v2019 = vunpack.c.l.b16 %v309
      %v2020 = vunpack.c.l.b16 %v310
      %v2021 = vunpack.c.l.b16 %v311
      %v2022 = vpack.c.b16 %v1991, %v1990
      %v2023 = vpack.c.b16 %v1993, %v1992
      %v2024 = vpack.c.b16 %v1995, %v1994
      %v2025 = vpack.c.b16 %v1997, %v1996
      %v2026 = vpack.c.b16 %v1999, %v1998
      %v2027 = vpack.c.b16 %v2001, %v2000
      %v2028 = vpack.c.b16 %v2003, %v2002
      %v2029 = vpack.c.b16 %v2005, %v2004
      %v2030 = vpack.c.b16 %v2007, %v2006
      %v2031 = vpack.c.b16 %v2009, %v2008
      %v2032 = vpack.c.b16 %v2011, %v2010
      %v2033 = vpack.c.b16 %v2013, %v2012
      %v2034 = vpack.c.b16 %v2015, %v2014
      %v2035 = vpack.c.b16 %v2017, %v2016
      %v2036 = vpack.c.b16 %v2019, %v2018
      %v2037 = vpack.c.b16 %v2021, %v2020
      %2054 = vmatprep.subr.bf16.mxu0 %v1943
      %2055 = vmatpush1.bf16.msra.mxu0 %v1942
      %2056 = vmatprep.subr.bf16.mxu0 %v1945
      %2057 = vmatpush1.bf16.msra.mxu0 %v1944
      %2058 = vmatprep.subr.bf16.mxu0 %v1947
      %2059 = vmatpush1.bf16.msra.mxu0 %v1946
      %2060 = vmatprep.subr.bf16.mxu0 %v1949
      %2061 = vmatpush1.bf16.msra.mxu0 %v1948
      %2062 = vmatprep.subr.bf16.mxu0 %v1951
      %2063 = vmatpush1.bf16.msra.mxu0 %v1950
      %2064 = vmatprep.subr.bf16.mxu0 %v1953
      %2065 = vmatpush1.bf16.msra.mxu0 %v1952
      %2066 = vmatprep.subr.bf16.mxu0 %v1955
      %2067 = vmatpush1.bf16.msra.mxu0 %v1954
      %2068 = vmatprep.subr.bf16.mxu0 %v1957
      %2069 = vmatpush1.bf16.msra.mxu0 %v1956
      %2070 = vmatprep.subr.bf16.mxu0 0
      %2071 = vmatpush1.bf16.msra.mxu0 0
      %2072 = vmatprep.subr.bf16.mxu0 0
      %2073 = vmatpush1.bf16.msra.mxu0 0
      %2074 = vmatprep.subr.bf16.mxu0 0
      %2075 = vmatpush1.bf16.msra.mxu0 0
      %2076 = vmatprep.subr.bf16.mxu0 0
      %2077 = vmatpush1.bf16.msra.mxu0 0
      %2078 = vmatprep.subr.bf16.mxu0 0
      %2079 = vmatpush1.bf16.msra.mxu0 0
      %2080 = vmatprep.subr.bf16.mxu0 0
      %2081 = vmatpush1.bf16.msra.mxu0 0
      %2082 = vmatprep.subr.bf16.mxu0 0
      %2083 = vmatpush1.bf16.msra.mxu0 0
      %2084 = vmatprep.subr.bf16.mxu0 0
      %2085 = vmatpush1.bf16.msra.mxu0 0
      %2086 = vmatprep.mubr.bf16.mxu0 0
      %2087 = vmatmul.mubr.bf16.gmra.mrb[0].mxu0 %v2022
      %v2088 = vpop.f32.mrb[0].mxu0
      %v2089 = vadd.f32 0.0, %v2088
      %v2090 = vpop.f32.mrb[0].mxu0
      %v2091 = vadd.f32 0.0, %v2090
      %v2092 = vpop.f32.mrb[0].mxu0
      %v2093 = vadd.f32 0.0, %v2092
      %v2094 = vpop.f32.mrb[0].mxu0
      %v2095 = vadd.f32 0.0, %v2094
      %2096 = vmatprep.mubr.bf16.mxu0 0
      %2097 = vmatmul.mubr.bf16.gmra.mrb[0].mxu0 %v2023
      %v2098 = vpop.f32.mrb[0].mxu0
      %v2099 = vadd.f32 0.0, %v2098
      %v2100 = vpop.f32.mrb[0].mxu0
      %v2101 = vadd.f32 0.0, %v2100
      %v2102 = vpop.f32.mrb[0].mxu0
      %v2103 = vadd.f32 0.0, %v2102
      %v2104 = vpop.f32.mrb[0].mxu0
      %v2105 = vadd.f32 0.0, %v2104
      %2106 = vmatprep.mubr.bf16.mxu0 0
      %2107 = vmatmul.mubr.bf16.gmra.mrb[0].mxu0 %v2024
      %v2108 = vpop.f32.mrb[0].mxu0
      %v2109 = vadd.f32 0.0, %v2108
      %v2110 = vpop.f32.mrb[0].mxu0
      %v2111 = vadd.f32 0.0, %v2110
      %v2112 = vpop.f32.mrb[0].mxu0
      %v2113 = vadd.f32 0.0, %v2112
      %v2114 = vpop.f32.mrb[0].mxu0
      %v2115 = vadd.f32 0.0, %v2114
      %2116 = vmatprep.mubr.bf16.mxu0 0
      %2117 = vmatmul.mubr.bf16.gmra.mrb[0].mxu0 %v2025
      %v2118 = vpop.f32.mrb[0].mxu0
      %v2119 = vadd.f32 0.0, %v2118
      %v2120 = vpop.f32.mrb[0].mxu0
      %v2121 = vadd.f32 0.0, %v2120
      %v2122 = vpop.f32.mrb[0].mxu0
      %v2123 = vadd.f32 0.0, %v2122
      %v2124 = vpop.f32.mrb[0].mxu0
      %v2125 = vadd.f32 0.0, %v2124
      %2126 = vmatprep.mubr.bf16.mxu0 0
      %2127 = vmatmul.mubr.bf16.gmra.mrb[0].mxu0 %v2026
      %v2128 = vpop.f32.mrb[0].mxu0
      %v2129 = vadd.f32 0.0, %v2128
      %v2130 = vpop.f32.mrb[0].mxu0
      %v2131 = vadd.f32 0.0, %v2130
      %v2132 = vpop.f32.mrb[0].mxu0
      %v2133 = vadd.f32 0.0, %v2132
      %v2134 = vpop.f32.mrb[0].mxu0
      %v2135 = vadd.f32 0.0, %v2134
      %2136 = vmatprep.mubr.bf16.mxu0 0
      %2137 = vmatmul.mubr.bf16.gmra.mrb[0].mxu0 %v2027
      %v2138 = vpop.f32.mrb[0].mxu0
      %v2139 = vadd.f32 0.0, %v2138
      %v2140 = vpop.f32.mrb[0].mxu0
      %v2141 = vadd.f32 0.0, %v2140
      %v2142 = vpop.f32.mrb[0].mxu0
      %v2143 = vadd.f32 0.0, %v2142
      %v2144 = vpop.f32.mrb[0].mxu0
      %v2145 = vadd.f32 0.0, %v2144
      %2146 = vmatprep.mubr.bf16.mxu0 0
      %2147 = vmatmul.mubr.bf16.gmra.mrb[0].mxu0 %v2028
      %v2148 = vpop.f32.mrb[0].mxu0
      %v2149 = vadd.f32 0.0, %v2148
      %v2150 = vpop.f32.mrb[0].mxu0
      %v2151 = vadd.f32 0.0, %v2150
      %v2152 = vpop.f32.mrb[0].mxu0
      %v2153 = vadd.f32 0.0, %v2152
      %v2154 = vpop.f32.mrb[0].mxu0
      %v2155 = vadd.f32 0.0, %v2154
      %2156 = vmatprep.mubr.bf16.mxu0 0
      %2157 = vmatmul.mubr.bf16.gmra.mrb[0].mxu0 %v2029
      %v2158 = vpop.f32.mrb[0].mxu0
      %v2159 = vadd.f32 0.0, %v2158
      %v2160 = vpop.f32.mrb[0].mxu0
      %v2161 = vadd.f32 0.0, %v2160
      %v2162 = vpop.f32.mrb[0].mxu0
      %v2163 = vadd.f32 0.0, %v2162
      %v2164 = vpop.f32.mrb[0].mxu0
      %v2165 = vadd.f32 0.0, %v2164
      %2166 = vmatprep.mubr.bf16.mxu0 0
      %2167 = vmatmul.mubr.bf16.gmra.mrb[0].mxu0 %v2030
      %v2168 = vpop.f32.mrb[0].mxu0
      %v2169 = vadd.f32 0.0, %v2168
      %v2170 = vpop.f32.mrb[0].mxu0
      %v2171 = vadd.f32 0.0, %v2170
      %v2172 = vpop.f32.mrb[0].mxu0
      %v2173 = vadd.f32 0.0, %v2172
      %v2174 = vpop.f32.mrb[0].mxu0
      %v2175 = vadd.f32 0.0, %v2174
      %2176 = vmatprep.mubr.bf16.mxu0 0
      %2177 = vmatmul.mubr.bf16.gmra.mrb[0].mxu0 %v2031
      %v2178 = vpop.f32.mrb[0].mxu0
      %v2179 = vadd.f32 0.0, %v2178
      %v2180 = vpop.f32.mrb[0].mxu0
      %v2181 = vadd.f32 0.0, %v2180
      %v2182 = vpop.f32.mrb[0].mxu0
      %v2183 = vadd.f32 0.0, %v2182
      %v2184 = vpop.f32.mrb[0].mxu0
      %v2185 = vadd.f32 0.0, %v2184
      %2186 = vmatprep.mubr.bf16.mxu0 0
      %2187 = vmatmul.mubr.bf16.gmra.mrb[0].mxu0 %v2032
      %v2188 = vpop.f32.mrb[0].mxu0
      %v2189 = vadd.f32 0.0, %v2188
      %v2190 = vpop.f32.mrb[0].mxu0
      %v2191 = vadd.f32 0.0, %v2190
      %v2192 = vpop.f32.mrb[0].mxu0
      %v2193 = vadd.f32 0.0, %v2192
      %v2194 = vpop.f32.mrb[0].mxu0
      %v2195 = vadd.f32 0.0, %v2194
      %2196 = vmatprep.mubr.bf16.mxu0 0
      %2197 = vmatmul.mubr.bf16.gmra.mrb[0].mxu0 %v2033
      %v2198 = vpop.f32.mrb[0].mxu0
      %v2199 = vadd.f32 0.0, %v2198
      %v2200 = vpop.f32.mrb[0].mxu0
      %v2201 = vadd.f32 0.0, %v2200
      %v2202 = vpop.f32.mrb[0].mxu0
      %v2203 = vadd.f32 0.0, %v2202
      %v2204 = vpop.f32.mrb[0].mxu0
      %v2205 = vadd.f32 0.0, %v2204
      %2206 = vmatprep.mubr.bf16.mxu0 0
      %2207 = vmatmul.mubr.bf16.gmra.mrb[0].mxu0 %v2034
      %v2208 = vpop.f32.mrb[0].mxu0
      %v2209 = vadd.f32 0.0, %v2208
      %v2210 = vpop.f32.mrb[0].mxu0
      %v2211 = vadd.f32 0.0, %v2210
      %v2212 = vpop.f32.mrb[0].mxu0
      %v2213 = vadd.f32 0.0, %v2212
      %v2214 = vpop.f32.mrb[0].mxu0
      %v2215 = vadd.f32 0.0, %v2214
      %2216 = vmatprep.mubr.bf16.mxu0 0
      %2217 = vmatmul.mubr.bf16.gmra.mrb[0].mxu0 %v2035
      %v2218 = vpop.f32.mrb[0].mxu0
      %v2219 = vadd.f32 0.0, %v2218
      %v2220 = vpop.f32.mrb[0].mxu0
      %v2221 = vadd.f32 0.0, %v2220
      %v2222 = vpop.f32.mrb[0].mxu0
      %v2223 = vadd.f32 0.0, %v2222
      %v2224 = vpop.f32.mrb[0].mxu0
      %v2225 = vadd.f32 0.0, %v2224
      %2226 = vmatprep.mubr.bf16.mxu0 0
      %2227 = vmatmul.mubr.bf16.gmra.mrb[0].mxu0 %v2036
      %v2228 = vpop.f32.mrb[0].mxu0
      %v2229 = vadd.f32 0.0, %v2228
      %v2230 = vpop.f32.mrb[0].mxu0
      %v2231 = vadd.f32 0.0, %v2230
      %v2232 = vpop.f32.mrb[0].mxu0
      %v2233 = vadd.f32 0.0, %v2232
      %v2234 = vpop.f32.mrb[0].mxu0
      %v2235 = vadd.f32 0.0, %v2234
      %2236 = vmatprep.mubr.bf16.mxu0 0
      %2237 = vmatmul.mubr.bf16.gmra.mrb[0].mxu0 %v2037
      %v2238 = vpop.f32.mrb[0].mxu0
      %v2239 = vadd.f32 0.0, %v2238
      %v2240 = vpop.f32.mrb[0].mxu0
      %v2241 = vadd.f32 0.0, %v2240
      %v2242 = vpop.f32.mrb[0].mxu0
      %v2243 = vadd.f32 0.0, %v2242
      %v2244 = vpop.f32.mrb[0].mxu0
      %v2245 = vadd.f32 0.0, %v2244
      %2246 = vdwg.mxu0
      %v2247 = vlaneseq
      %v2248 = vshrl.u32 %v2247, 7
      %v2249 = vsub.s32 0, %v2248
      %v2250 = vrot.slane %v344, %v2249
      %v2251 = vlaneseq
      %v2252 = vshrl.u32 %v2251, 7
      %v2253 = vsub.s32 0, %v2252
      %v2254 = vrot.slane %v345, %v2253
      %v2255 = vmul.f32 %v2089, %v2250
      %v2256 = vmul.f32 %v2091, %v2254
      %v2257 = vmul.f32 %v2093, %v2250
      %v2258 = vmul.f32 %v2095, %v2254
      %v2259 = vmul.f32 %v2099, %v2250
      %v2260 = vmul.f32 %v2101, %v2254
      %v2261 = vmul.f32 %v2103, %v2250
      %v2262 = vmul.f32 %v2105, %v2254
      %v2263 = vmul.f32 %v2109, %v2250
      %v2264 = vmul.f32 %v2111, %v2254
      %v2265 = vmul.f32 %v2113, %v2250
      %v2266 = vmul.f32 %v2115, %v2254
      %v2267 = vmul.f32 %v2119, %v2250
      %v2268 = vmul.f32 %v2121, %v2254
      %v2269 = vmul.f32 %v2123, %v2250
      %v2270 = vmul.f32 %v2125, %v2254
      %v2271 = vmul.f32 %v2129, %v2250
      %v2272 = vmul.f32 %v2131, %v2254
      %v2273 = vmul.f32 %v2133, %v2250
      %v2274 = vmul.f32 %v2135, %v2254
      %v2275 = vmul.f32 %v2139, %v2250
      %v2276 = vmul.f32 %v2141, %v2254
      %v2277 = vmul.f32 %v2143, %v2250
      %v2278 = vmul.f32 %v2145, %v2254
      %v2279 = vmul.f32 %v2149, %v2250
      %v2280 = vmul.f32 %v2151, %v2254
      %v2281 = vmul.f32 %v2153, %v2250
      %v2282 = vmul.f32 %v2155, %v2254
      %v2283 = vmul.f32 %v2159, %v2250
      %v2284 = vmul.f32 %v2161, %v2254
      %v2285 = vmul.f32 %v2163, %v2250
      %v2286 = vmul.f32 %v2165, %v2254
      %v2287 = vmul.f32 %v2169, %v2250
      %v2288 = vmul.f32 %v2171, %v2254
      %v2289 = vmul.f32 %v2173, %v2250
      %v2290 = vmul.f32 %v2175, %v2254
      %v2291 = vmul.f32 %v2179, %v2250
      %v2292 = vmul.f32 %v2181, %v2254
      %v2293 = vmul.f32 %v2183, %v2250
      %v2294 = vmul.f32 %v2185, %v2254
      %v2295 = vmul.f32 %v2189, %v2250
      %v2296 = vmul.f32 %v2191, %v2254
      %v2297 = vmul.f32 %v2193, %v2250
      %v2298 = vmul.f32 %v2195, %v2254
      %v2299 = vmul.f32 %v2199, %v2250
      %v2300 = vmul.f32 %v2201, %v2254
      %v2301 = vmul.f32 %v2203, %v2250
      %v2302 = vmul.f32 %v2205, %v2254
      %v2303 = vmul.f32 %v2209, %v2250
      %v2304 = vmul.f32 %v2211, %v2254
      %v2305 = vmul.f32 %v2213, %v2250
      %v2306 = vmul.f32 %v2215, %v2254
      %v2307 = vmul.f32 %v2219, %v2250
      %v2308 = vmul.f32 %v2221, %v2254
      %v2309 = vmul.f32 %v2223, %v2250
      %v2310 = vmul.f32 %v2225, %v2254
      %v2311 = vmul.f32 %v2229, %v2250
      %v2312 = vmul.f32 %v2231, %v2254
      %v2313 = vmul.f32 %v2233, %v2250
      %v2314 = vmul.f32 %v2235, %v2254
      %v2315 = vmul.f32 %v2239, %v2250
      %v2316 = vmul.f32 %v2241, %v2254
      %v2317 = vmul.f32 %v2243, %v2250
      %v2318 = vmul.f32 %v2245, %v2254
      %v2319 = vlaneseq
      %v2320 = vshrl.u32 %v2319, 7
      %v2321 = vsub.s32 1, %v2320
      %v2322 = vrot.slane %v344, %v2321
      %v2323 = vlaneseq
      %v2324 = vshrl.u32 %v2323, 7
      %v2325 = vsub.s32 1, %v2324
      %v2326 = vrot.slane %v345, %v2325
      %v2327 = vadd.f32 %v2255, %v2322
      %v2328 = vadd.f32 %v2256, %v2326
      %v2329 = vadd.f32 %v2257, %v2322
      %v2330 = vadd.f32 %v2258, %v2326
      %v2331 = vadd.f32 %v2259, %v2322
      %v2332 = vadd.f32 %v2260, %v2326
      %v2333 = vadd.f32 %v2261, %v2322
      %v2334 = vadd.f32 %v2262, %v2326
      %v2335 = vadd.f32 %v2263, %v2322
      %v2336 = vadd.f32 %v2264, %v2326
      %v2337 = vadd.f32 %v2265, %v2322
      %v2338 = vadd.f32 %v2266, %v2326
      %v2339 = vadd.f32 %v2267, %v2322
      %v2340 = vadd.f32 %v2268, %v2326
      %v2341 = vadd.f32 %v2269, %v2322
      %v2342 = vadd.f32 %v2270, %v2326
      %v2343 = vadd.f32 %v2271, %v2322
      %v2344 = vadd.f32 %v2272, %v2326
      %v2345 = vadd.f32 %v2273, %v2322
      %v2346 = vadd.f32 %v2274, %v2326
      %v2347 = vadd.f32 %v2275, %v2322
      %v2348 = vadd.f32 %v2276, %v2326
      %v2349 = vadd.f32 %v2277, %v2322
      %v2350 = vadd.f32 %v2278, %v2326
      %v2351 = vadd.f32 %v2279, %v2322
      %v2352 = vadd.f32 %v2280, %v2326
      %v2353 = vadd.f32 %v2281, %v2322
      %v2354 = vadd.f32 %v2282, %v2326
      %v2355 = vadd.f32 %v2283, %v2322
      %v2356 = vadd.f32 %v2284, %v2326
      %v2357 = vadd.f32 %v2285, %v2322
      %v2358 = vadd.f32 %v2286, %v2326
      %v2359 = vadd.f32 %v2287, %v2322
      %v2360 = vadd.f32 %v2288, %v2326
      %v2361 = vadd.f32 %v2289, %v2322
      %v2362 = vadd.f32 %v2290, %v2326
      %v2363 = vadd.f32 %v2291, %v2322
      %v2364 = vadd.f32 %v2292, %v2326
      %v2365 = vadd.f32 %v2293, %v2322
      %v2366 = vadd.f32 %v2294, %v2326
      %v2367 = vadd.f32 %v2295, %v2322
      %v2368 = vadd.f32 %v2296, %v2326
      %v2369 = vadd.f32 %v2297, %v2322
      %v2370 = vadd.f32 %v2298, %v2326
      %v2371 = vadd.f32 %v2299, %v2322
      %v2372 = vadd.f32 %v2300, %v2326
      %v2373 = vadd.f32 %v2301, %v2322
      %v2374 = vadd.f32 %v2302, %v2326
      %v2375 = vadd.f32 %v2303, %v2322
      %v2376 = vadd.f32 %v2304, %v2326
      %v2377 = vadd.f32 %v2305, %v2322
      %v2378 = vadd.f32 %v2306, %v2326
      %v2379 = vadd.f32 %v2307, %v2322
      %v2380 = vadd.f32 %v2308, %v2326
      %v2381 = vadd.f32 %v2309, %v2322
      %v2382 = vadd.f32 %v2310, %v2326
      %v2383 = vadd.f32 %v2311, %v2322
      %v2384 = vadd.f32 %v2312, %v2326
      %v2385 = vadd.f32 %v2313, %v2322
      %v2386 = vadd.f32 %v2314, %v2326
      %v2387 = vadd.f32 %v2315, %v2322
      %v2388 = vadd.f32 %v2316, %v2326
      %v2389 = vadd.f32 %v2317, %v2322
      %v2390 = vadd.f32 %v2318, %v2326
      %v2391 = vmax.f32 %v2327, 0.0
      %v2392 = vmax.f32 %v2328, 0.0
      %v2393 = vmax.f32 %v2329, 0.0
      %v2394 = vmax.f32 %v2330, 0.0
      %v2395 = vmax.f32 %v2331, 0.0
      %v2396 = vmax.f32 %v2332, 0.0
      %v2397 = vmax.f32 %v2333, 0.0
      %v2398 = vmax.f32 %v2334, 0.0
      %v2399 = vmax.f32 %v2335, 0.0
      %v2400 = vmax.f32 %v2336, 0.0
      %v2401 = vmax.f32 %v2337, 0.0
      %v2402 = vmax.f32 %v2338, 0.0
      %v2403 = vmax.f32 %v2339, 0.0
      %v2404 = vmax.f32 %v2340, 0.0
      %v2405 = vmax.f32 %v2341, 0.0
      %v2406 = vmax.f32 %v2342, 0.0
      %v2407 = vmax.f32 %v2343, 0.0
      %v2408 = vmax.f32 %v2344, 0.0
      %v2409 = vmax.f32 %v2345, 0.0
      %v2410 = vmax.f32 %v2346, 0.0
      %v2411 = vmax.f32 %v2347, 0.0
      %v2412 = vmax.f32 %v2348, 0.0
      %v2413 = vmax.f32 %v2349, 0.0
      %v2414 = vmax.f32 %v2350, 0.0
      %v2415 = vmax.f32 %v2351, 0.0
      %v2416 = vmax.f32 %v2352, 0.0
      %v2417 = vmax.f32 %v2353, 0.0
      %v2418 = vmax.f32 %v2354, 0.0
      %v2419 = vmax.f32 %v2355, 0.0
      %v2420 = vmax.f32 %v2356, 0.0
      %v2421 = vmax.f32 %v2357, 0.0
      %v2422 = vmax.f32 %v2358, 0.0
      %v2423 = vmax.f32 %v2359, 0.0
      %v2424 = vmax.f32 %v2360, 0.0
      %v2425 = vmax.f32 %v2361, 0.0
      %v2426 = vmax.f32 %v2362, 0.0
      %v2427 = vmax.f32 %v2363, 0.0
      %v2428 = vmax.f32 %v2364, 0.0
      %v2429 = vmax.f32 %v2365, 0.0
      %v2430 = vmax.f32 %v2366, 0.0
      %v2431 = vmax.f32 %v2367, 0.0
      %v2432 = vmax.f32 %v2368, 0.0
      %v2433 = vmax.f32 %v2369, 0.0
      %v2434 = vmax.f32 %v2370, 0.0
      %v2435 = vmax.f32 %v2371, 0.0
      %v2436 = vmax.f32 %v2372, 0.0
      %v2437 = vmax.f32 %v2373, 0.0
      %v2438 = vmax.f32 %v2374, 0.0
      %v2439 = vmax.f32 %v2375, 0.0
      %v2440 = vmax.f32 %v2376, 0.0
      %v2441 = vmax.f32 %v2377, 0.0
      %v2442 = vmax.f32 %v2378, 0.0
      %v2443 = vmax.f32 %v2379, 0.0
      %v2444 = vmax.f32 %v2380, 0.0
      %v2445 = vmax.f32 %v2381, 0.0
      %v2446 = vmax.f32 %v2382, 0.0
      %v2447 = vmax.f32 %v2383, 0.0
      %v2448 = vmax.f32 %v2384, 0.0
      %v2449 = vmax.f32 %v2385, 0.0
      %v2450 = vmax.f32 %v2386, 0.0
      %v2451 = vmax.f32 %v2387, 0.0
      %v2452 = vmax.f32 %v2388, 0.0
      %v2453 = vmax.f32 %v2389, 0.0
      %v2454 = vmax.f32 %v2390, 0.0
      %v2455 = vlaneseq
      %v2456 = vshrl.u32 %v2455, 7
      %v2457 = vadd.s32 %v2456, 8
      %v2458 = vadd.s32 %v2456, 16
      %v2459 = vadd.s32 %v2456, 24
      %v2460 = vadd.s32 %v2456, 32
      %v2461 = vadd.s32 %v2456, 40
      %v2462 = vadd.s32 %v2456, 48
      %v2463 = vadd.s32 %v2456, 56
      %v2464 = vadd.s32 %v2456, 64
      %v2465 = vadd.s32 %v2456, 72
      %v2466 = vadd.s32 %v2456, 80
      %v2467 = vadd.s32 %v2456, 88
      %v2468 = vadd.s32 %v2456, 96
      %v2469 = vadd.s32 %v2456, 104
      %v2470 = vadd.s32 %v2456, 112
      %v2471 = vadd.s32 %v2456, 120
      %v2472 = vadd.s32 %v2456, 128
      %v2473 = vadd.s32 %v2456, 136
      %v2474 = vadd.s32 %v2456, 144
      %v2475 = vadd.s32 %v2456, 152
      %v2476 = vadd.s32 %v2456, 160
      %v2477 = vadd.s32 %v2456, 168
      %v2478 = vadd.s32 %v2456, 176
      %v2479 = vadd.s32 %v2456, 184
      %v2480 = vadd.s32 %v2456, 192
      %v2481 = vadd.s32 %v2456, 200
      %v2482 = vadd.s32 %v2456, 208
      %v2483 = vadd.s32 %v2456, 216
      %v2484 = vadd.s32 %v2456, 224
      %v2485 = vadd.s32 %v2456, 232
      %v2486 = vadd.s32 %v2456, 240
      %v2487 = vadd.s32 %v2456, 248
      %v2488 = vand.u32 %v2456, 15
      %v2489 = vand.u32 %v2457, 15
      %v2490 = vand.u32 %v2458, 15
      %v2491 = vand.u32 %v2459, 15
      %v2492 = vand.u32 %v2460, 15
      %v2493 = vand.u32 %v2461, 15
      %v2494 = vand.u32 %v2462, 15
      %v2495 = vand.u32 %v2463, 15
      %v2496 = vand.u32 %v2464, 15
      %v2497 = vand.u32 %v2465, 15
      %v2498 = vand.u32 %v2466, 15
      %v2499 = vand.u32 %v2467, 15
      %v2500 = vand.u32 %v2468, 15
      %v2501 = vand.u32 %v2469, 15
      %v2502 = vand.u32 %v2470, 15
      %v2503 = vand.u32 %v2471, 15
      %v2504 = vand.u32 %v2472, 15
      %v2505 = vand.u32 %v2473, 15
      %v2506 = vand.u32 %v2474, 15
      %v2507 = vand.u32 %v2475, 15
      %v2508 = vand.u32 %v2476, 15
      %v2509 = vand.u32 %v2477, 15
      %v2510 = vand.u32 %v2478, 15
      %v2511 = vand.u32 %v2479, 15
      %v2512 = vand.u32 %v2480, 15
      %v2513 = vand.u32 %v2481, 15
      %v2514 = vand.u32 %v2482, 15
      %v2515 = vand.u32 %v2483, 15
      %v2516 = vand.u32 %v2484, 15
      %v2517 = vand.u32 %v2485, 15
      %v2518 = vand.u32 %v2486, 15
      %v2519 = vand.u32 %v2487, 15
      %vm2520 = vcmp.ne.s32.totalorder %v2488, 15
      %vm2521 = vcmp.ne.s32.totalorder %v2489, 15
      %vm2522 = vcmp.ne.s32.totalorder %v2490, 15
      %vm2523 = vcmp.ne.s32.totalorder %v2491, 15
      %vm2524 = vcmp.ne.s32.totalorder %v2492, 15
      %vm2525 = vcmp.ne.s32.totalorder %v2493, 15
      %vm2526 = vcmp.ne.s32.totalorder %v2494, 15
      %vm2527 = vcmp.ne.s32.totalorder %v2495, 15
      %vm2528 = vcmp.ne.s32.totalorder %v2496, 15
      %vm2529 = vcmp.ne.s32.totalorder %v2497, 15
      %vm2530 = vcmp.ne.s32.totalorder %v2498, 15
      %vm2531 = vcmp.ne.s32.totalorder %v2499, 15
      %vm2532 = vcmp.ne.s32.totalorder %v2500, 15
      %vm2533 = vcmp.ne.s32.totalorder %v2501, 15
      %vm2534 = vcmp.ne.s32.totalorder %v2502, 15
      %vm2535 = vcmp.ne.s32.totalorder %v2503, 15
      %vm2536 = vcmp.ne.s32.totalorder %v2504, 15
      %vm2537 = vcmp.ne.s32.totalorder %v2505, 15
      %vm2538 = vcmp.ne.s32.totalorder %v2506, 15
      %vm2539 = vcmp.ne.s32.totalorder %v2507, 15
      %vm2540 = vcmp.ne.s32.totalorder %v2508, 15
      %vm2541 = vcmp.ne.s32.totalorder %v2509, 15
      %vm2542 = vcmp.ne.s32.totalorder %v2510, 15
      %vm2543 = vcmp.ne.s32.totalorder %v2511, 15
      %vm2544 = vcmp.ne.s32.totalorder %v2512, 15
      %vm2545 = vcmp.ne.s32.totalorder %v2513, 15
      %vm2546 = vcmp.ne.s32.totalorder %v2514, 15
      %vm2547 = vcmp.ne.s32.totalorder %v2515, 15
      %vm2548 = vcmp.ne.s32.totalorder %v2516, 15
      %vm2549 = vcmp.ne.s32.totalorder %v2517, 15
      %vm2550 = vcmp.ne.s32.totalorder %v2518, 15
      %vm2551 = vcmp.ne.s32.totalorder %v2519, 15
      %v2552 = vsel %vm2520, %v2391, 0.0
      %v2553 = vsel %vm2520, %v2392, 0.0
      %v2554 = vsel %vm2521, %v2393, 0.0
      %v2555 = vsel %vm2521, %v2394, 0.0
      %v2556 = vsel %vm2522, %v2395, 0.0
      %v2557 = vsel %vm2522, %v2396, 0.0
      %v2558 = vsel %vm2523, %v2397, 0.0
      %v2559 = vsel %vm2523, %v2398, 0.0
      %v2560 = vsel %vm2524, %v2399, 0.0
      %v2561 = vsel %vm2524, %v2400, 0.0
      %v2562 = vsel %vm2525, %v2401, 0.0
      %v2563 = vsel %vm2525, %v2402, 0.0
      %v2564 = vsel %vm2526, %v2403, 0.0
      %v2565 = vsel %vm2526, %v2404, 0.0
      %v2566 = vsel %vm2527, %v2405, 0.0
      %v2567 = vsel %vm2527, %v2406, 0.0
      %v2568 = vsel %vm2528, %v2407, 0.0
      %v2569 = vsel %vm2528, %v2408, 0.0
      %v2570 = vsel %vm2529, %v2409, 0.0
      %v2571 = vsel %vm2529, %v2410, 0.0
      %v2572 = vsel %vm2530, %v2411, 0.0
      %v2573 = vsel %vm2530, %v2412, 0.0
      %v2574 = vsel %vm2531, %v2413, 0.0
      %v2575 = vsel %vm2531, %v2414, 0.0
      %v2576 = vsel %vm2532, %v2415, 0.0
      %v2577 = vsel %vm2532, %v2416, 0.0
      %v2578 = vsel %vm2533, %v2417, 0.0
      %v2579 = vsel %vm2533, %v2418, 0.0
      %v2580 = vsel %vm2534, %v2419, 0.0
      %v2581 = vsel %vm2534, %v2420, 0.0
      %v2582 = vsel %vm2535, %v2421, 0.0
      %v2583 = vsel %vm2535, %v2422, 0.0
      %v2584 = vsel %vm2536, %v2423, 0.0
      %v2585 = vsel %vm2536, %v2424, 0.0
      %v2586 = vsel %vm2537, %v2425, 0.0
      %v2587 = vsel %vm2537, %v2426, 0.0
      %v2588 = vsel %vm2538, %v2427, 0.0
      %v2589 = vsel %vm2538, %v2428, 0.0
      %v2590 = vsel %vm2539, %v2429, 0.0
      %v2591 = vsel %vm2539, %v2430, 0.0
      %v2592 = vsel %vm2540, %v2431, 0.0
      %v2593 = vsel %vm2540, %v2432, 0.0
      %v2594 = vsel %vm2541, %v2433, 0.0
      %v2595 = vsel %vm2541, %v2434, 0.0
      %v2596 = vsel %vm2542, %v2435, 0.0
      %v2597 = vsel %vm2542, %v2436, 0.0
      %v2598 = vsel %vm2543, %v2437, 0.0
      %v2599 = vsel %vm2543, %v2438, 0.0
      %v2600 = vsel %vm2544, %v2439, 0.0
      %v2601 = vsel %vm2544, %v2440, 0.0
      %v2602 = vsel %vm2545, %v2441, 0.0
      %v2603 = vsel %vm2545, %v2442, 0.0
      %v2604 = vsel %vm2546, %v2443, 0.0
      %v2605 = vsel %vm2546, %v2444, 0.0
      %v2606 = vsel %vm2547, %v2445, 0.0
      %v2607 = vsel %vm2547, %v2446, 0.0
      %v2608 = vsel %vm2548, %v2447, 0.0
      %v2609 = vsel %vm2548, %v2448, 0.0
      %v2610 = vsel %vm2549, %v2449, 0.0
      %v2611 = vsel %vm2549, %v2450, 0.0
      %v2612 = vsel %vm2550, %v2451, 0.0
      %v2613 = vsel %vm2550, %v2452, 0.0
      %v2614 = vsel %vm2551, %v2453, 0.0
      %v2615 = vsel %vm2551, %v2454, 0.0
      %vm2616 = vcmp.ne.s32.totalorder %v2488, 0
      %vm2617 = vcmp.ne.s32.totalorder %v2489, 0
      %vm2618 = vcmp.ne.s32.totalorder %v2490, 0
      %vm2619 = vcmp.ne.s32.totalorder %v2491, 0
      %vm2620 = vcmp.ne.s32.totalorder %v2492, 0
      %vm2621 = vcmp.ne.s32.totalorder %v2493, 0
      %vm2622 = vcmp.ne.s32.totalorder %v2494, 0
      %vm2623 = vcmp.ne.s32.totalorder %v2495, 0
      %vm2624 = vcmp.ne.s32.totalorder %v2496, 0
      %vm2625 = vcmp.ne.s32.totalorder %v2497, 0
      %vm2626 = vcmp.ne.s32.totalorder %v2498, 0
      %vm2627 = vcmp.ne.s32.totalorder %v2499, 0
      %vm2628 = vcmp.ne.s32.totalorder %v2500, 0
      %vm2629 = vcmp.ne.s32.totalorder %v2501, 0
      %vm2630 = vcmp.ne.s32.totalorder %v2502, 0
      %vm2631 = vcmp.ne.s32.totalorder %v2503, 0
      %vm2632 = vcmp.ne.s32.totalorder %v2504, 0
      %vm2633 = vcmp.ne.s32.totalorder %v2505, 0
      %vm2634 = vcmp.ne.s32.totalorder %v2506, 0
      %vm2635 = vcmp.ne.s32.totalorder %v2507, 0
      %vm2636 = vcmp.ne.s32.totalorder %v2508, 0
      %vm2637 = vcmp.ne.s32.totalorder %v2509, 0
      %vm2638 = vcmp.ne.s32.totalorder %v2510, 0
      %vm2639 = vcmp.ne.s32.totalorder %v2511, 0
      %vm2640 = vcmp.ne.s32.totalorder %v2512, 0
      %vm2641 = vcmp.ne.s32.totalorder %v2513, 0
      %vm2642 = vcmp.ne.s32.totalorder %v2514, 0
      %vm2643 = vcmp.ne.s32.totalorder %v2515, 0
      %vm2644 = vcmp.ne.s32.totalorder %v2516, 0
      %vm2645 = vcmp.ne.s32.totalorder %v2517, 0
      %vm2646 = vcmp.ne.s32.totalorder %v2518, 0
      %vm2647 = vcmp.ne.s32.totalorder %v2519, 0
      %v2648 = vsel %vm2616, %v2391, 0.0
      %v2649 = vsel %vm2616, %v2392, 0.0
      %v2650 = vsel %vm2617, %v2393, 0.0
      %v2651 = vsel %vm2617, %v2394, 0.0
      %v2652 = vsel %vm2618, %v2395, 0.0
      %v2653 = vsel %vm2618, %v2396, 0.0
      %v2654 = vsel %vm2619, %v2397, 0.0
      %v2655 = vsel %vm2619, %v2398, 0.0
      %v2656 = vsel %vm2620, %v2399, 0.0
      %v2657 = vsel %vm2620, %v2400, 0.0
      %v2658 = vsel %vm2621, %v2401, 0.0
      %v2659 = vsel %vm2621, %v2402, 0.0
      %v2660 = vsel %vm2622, %v2403, 0.0
      %v2661 = vsel %vm2622, %v2404, 0.0
      %v2662 = vsel %vm2623, %v2405, 0.0
      %v2663 = vsel %vm2623, %v2406, 0.0
      %v2664 = vsel %vm2624, %v2407, 0.0
      %v2665 = vsel %vm2624, %v2408, 0.0
      %v2666 = vsel %vm2625, %v2409, 0.0
      %v2667 = vsel %vm2625, %v2410, 0.0
      %v2668 = vsel %vm2626, %v2411, 0.0
      %v2669 = vsel %vm2626, %v2412, 0.0
      %v2670 = vsel %vm2627, %v2413, 0.0
      %v2671 = vsel %vm2627, %v2414, 0.0
      %v2672 = vsel %vm2628, %v2415, 0.0
      %v2673 = vsel %vm2628, %v2416, 0.0
      %v2674 = vsel %vm2629, %v2417, 0.0
      %v2675 = vsel %vm2629, %v2418, 0.0
      %v2676 = vsel %vm2630, %v2419, 0.0
      %v2677 = vsel %vm2630, %v2420, 0.0
      %v2678 = vsel %vm2631, %v2421, 0.0
      %v2679 = vsel %vm2631, %v2422, 0.0
      %v2680 = vsel %vm2632, %v2423, 0.0
      %v2681 = vsel %vm2632, %v2424, 0.0
      %v2682 = vsel %vm2633, %v2425, 0.0
      %v2683 = vsel %vm2633, %v2426, 0.0
      %v2684 = vsel %vm2634, %v2427, 0.0
      %v2685 = vsel %vm2634, %v2428, 0.0
      %v2686 = vsel %vm2635, %v2429, 0.0
      %v2687 = vsel %vm2635, %v2430, 0.0
      %v2688 = vsel %vm2636, %v2431, 0.0
      %v2689 = vsel %vm2636, %v2432, 0.0
      %v2690 = vsel %vm2637, %v2433, 0.0
      %v2691 = vsel %vm2637, %v2434, 0.0
      %v2692 = vsel %vm2638, %v2435, 0.0
      %v2693 = vsel %vm2638, %v2436, 0.0
      %v2694 = vsel %vm2639, %v2437, 0.0
      %v2695 = vsel %vm2639, %v2438, 0.0
      %v2696 = vsel %vm2640, %v2439, 0.0
      %v2697 = vsel %vm2640, %v2440, 0.0
      %v2698 = vsel %vm2641, %v2441, 0.0
      %v2699 = vsel %vm2641, %v2442, 0.0
      %v2700 = vsel %vm2642, %v2443, 0.0
      %v2701 = vsel %vm2642, %v2444, 0.0
      %v2702 = vsel %vm2643, %v2445, 0.0
      %v2703 = vsel %vm2643, %v2446, 0.0
      %v2704 = vsel %vm2644, %v2447, 0.0
      %v2705 = vsel %vm2644, %v2448, 0.0
      %v2706 = vsel %vm2645, %v2449, 0.0
      %v2707 = vsel %vm2645, %v2450, 0.0
      %v2708 = vsel %vm2646, %v2451, 0.0
      %v2709 = vsel %vm2646, %v2452, 0.0
      %v2710 = vsel %vm2647, %v2453, 0.0
      %v2711 = vsel %vm2647, %v2454, 0.0
      %v2712 = vrot.slane %v2552, 7
      %v2713 = vrot.slane %v2553, 7
      %v2714 = vrot.slane %v2554, 7
      %v2715 = vrot.slane %v2555, 7
      %v2716 = vrot.slane %v2556, 7
      %v2717 = vrot.slane %v2557, 7
      %v2718 = vrot.slane %v2558, 7
      %v2719 = vrot.slane %v2559, 7
      %v2720 = vrot.slane %v2560, 7
      %v2721 = vrot.slane %v2561, 7
      %v2722 = vrot.slane %v2562, 7
      %v2723 = vrot.slane %v2563, 7
      %v2724 = vrot.slane %v2564, 7
      %v2725 = vrot.slane %v2565, 7
      %v2726 = vrot.slane %v2566, 7
      %v2727 = vrot.slane %v2567, 7
      %v2728 = vrot.slane %v2568, 7
      %v2729 = vrot.slane %v2569, 7
      %v2730 = vrot.slane %v2570, 7
      %v2731 = vrot.slane %v2571, 7
      %v2732 = vrot.slane %v2572, 7
      %v2733 = vrot.slane %v2573, 7
      %v2734 = vrot.slane %v2574, 7
      %v2735 = vrot.slane %v2575, 7
      %v2736 = vrot.slane %v2576, 7
      %v2737 = vrot.slane %v2577, 7
      %v2738 = vrot.slane %v2578, 7
      %v2739 = vrot.slane %v2579, 7
      %v2740 = vrot.slane %v2580, 7
      %v2741 = vrot.slane %v2581, 7
      %v2742 = vrot.slane %v2582, 7
      %v2743 = vrot.slane %v2583, 7
      %v2744 = vrot.slane %v2584, 7
      %v2745 = vrot.slane %v2585, 7
      %v2746 = vrot.slane %v2586, 7
      %v2747 = vrot.slane %v2587, 7
      %v2748 = vrot.slane %v2588, 7
      %v2749 = vrot.slane %v2589, 7
      %v2750 = vrot.slane %v2590, 7
      %v2751 = vrot.slane %v2591, 7
      %v2752 = vrot.slane %v2592, 7
      %v2753 = vrot.slane %v2593, 7
      %v2754 = vrot.slane %v2594, 7
      %v2755 = vrot.slane %v2595, 7
      %v2756 = vrot.slane %v2596, 7
      %v2757 = vrot.slane %v2597, 7
      %v2758 = vrot.slane %v2598, 7
      %v2759 = vrot.slane %v2599, 7
      %v2760 = vrot.slane %v2600, 7
      %v2761 = vrot.slane %v2601, 7
      %v2762 = vrot.slane %v2602, 7
      %v2763 = vrot.slane %v2603, 7
      %v2764 = vrot.slane %v2604, 7
      %v2765 = vrot.slane %v2605, 7
      %v2766 = vrot.slane %v2606, 7
      %v2767 = vrot.slane %v2607, 7
      %v2768 = vrot.slane %v2608, 7
      %v2769 = vrot.slane %v2609, 7
      %v2770 = vrot.slane %v2610, 7
      %v2771 = vrot.slane %v2611, 7
      %v2772 = vrot.slane %v2612, 7
      %v2773 = vrot.slane %v2613, 7
      %v2774 = vrot.slane %v2614, 7
      %v2775 = vrot.slane %v2615, 7
      %vm2776 = vcmp.lt.s32.totalorder %v2456, 1
      %v2777 = vsel %vm2776, %v2772, %v2774
      %v2778 = vsel %vm2776, %v2773, %v2775
      %v2779 = vsel %vm2776, %v2770, %v2772
      %v2780 = vsel %vm2776, %v2771, %v2773
      %v2781 = vsel %vm2776, %v2768, %v2770
      %v2782 = vsel %vm2776, %v2769, %v2771
      %v2783 = vsel %vm2776, %v2766, %v2768
      %v2784 = vsel %vm2776, %v2767, %v2769
      %v2785 = vsel %vm2776, %v2764, %v2766
      %v2786 = vsel %vm2776, %v2765, %v2767
      %v2787 = vsel %vm2776, %v2762, %v2764
      %v2788 = vsel %vm2776, %v2763, %v2765
      %v2789 = vsel %vm2776, %v2760, %v2762
      %v2790 = vsel %vm2776, %v2761, %v2763
      %v2791 = vsel %vm2776, %v2758, %v2760
      %v2792 = vsel %vm2776, %v2759, %v2761
      %v2793 = vsel %vm2776, %v2756, %v2758
      %v2794 = vsel %vm2776, %v2757, %v2759
      %v2795 = vsel %vm2776, %v2754, %v2756
      %v2796 = vsel %vm2776, %v2755, %v2757
      %v2797 = vsel %vm2776, %v2752, %v2754
      %v2798 = vsel %vm2776, %v2753, %v2755
      %v2799 = vsel %vm2776, %v2750, %v2752
      %v2800 = vsel %vm2776, %v2751, %v2753
      %v2801 = vsel %vm2776, %v2748, %v2750
      %v2802 = vsel %vm2776, %v2749, %v2751
      %v2803 = vsel %vm2776, %v2746, %v2748
      %v2804 = vsel %vm2776, %v2747, %v2749
      %v2805 = vsel %vm2776, %v2744, %v2746
      %v2806 = vsel %vm2776, %v2745, %v2747
      %v2807 = vsel %vm2776, %v2742, %v2744
      %v2808 = vsel %vm2776, %v2743, %v2745
      %v2809 = vsel %vm2776, %v2740, %v2742
      %v2810 = vsel %vm2776, %v2741, %v2743
      %v2811 = vsel %vm2776, %v2738, %v2740
      %v2812 = vsel %vm2776, %v2739, %v2741
      %v2813 = vsel %vm2776, %v2736, %v2738
      %v2814 = vsel %vm2776, %v2737, %v2739
      %v2815 = vsel %vm2776, %v2734, %v2736
      %v2816 = vsel %vm2776, %v2735, %v2737
      %v2817 = vsel %vm2776, %v2732, %v2734
      %v2818 = vsel %vm2776, %v2733, %v2735
      %v2819 = vsel %vm2776, %v2730, %v2732
      %v2820 = vsel %vm2776, %v2731, %v2733
      %v2821 = vsel %vm2776, %v2728, %v2730
      %v2822 = vsel %vm2776, %v2729, %v2731
      %v2823 = vsel %vm2776, %v2726, %v2728
      %v2824 = vsel %vm2776, %v2727, %v2729
      %v2825 = vsel %vm2776, %v2724, %v2726
      %v2826 = vsel %vm2776, %v2725, %v2727
      %v2827 = vsel %vm2776, %v2722, %v2724
      %v2828 = vsel %vm2776, %v2723, %v2725
      %v2829 = vsel %vm2776, %v2720, %v2722
      %v2830 = vsel %vm2776, %v2721, %v2723
      %v2831 = vsel %vm2776, %v2718, %v2720
      %v2832 = vsel %vm2776, %v2719, %v2721
      %v2833 = vsel %vm2776, %v2716, %v2718
      %v2834 = vsel %vm2776, %v2717, %v2719
      %v2835 = vsel %vm2776, %v2714, %v2716
      %v2836 = vsel %vm2776, %v2715, %v2717
      %v2837 = vsel %vm2776, %v2712, %v2714
      %v2838 = vsel %vm2776, %v2713, %v2715
      %v2839 = vsel %vm2776, %v2774, %v2712
      %v2840 = vsel %vm2776, %v2775, %v2713
      %v2841 = vlaneseq
      %v2842 = vshrl.u32 %v2841, 7
      %v2843 = vsub.s32 0, %v2842
      %v2844 = vrot.slane %v1938, %v2843
      %v2845 = vlaneseq
      %v2846 = vshrl.u32 %v2845, 7
      %v2847 = vsub.s32 0, %v2846
      %v2848 = vrot.slane %v1939, %v2847
      %v2849 = vmul.f32 %v2779, %v2844
      %v2850 = vmul.f32 %v2780, %v2848
      %v2851 = vmul.f32 %v2777, %v2844
      %v2852 = vmul.f32 %v2778, %v2848
      %v2853 = vmul.f32 %v2839, %v2844
      %v2854 = vmul.f32 %v2840, %v2848
      %v2855 = vmul.f32 %v2837, %v2844
      %v2856 = vmul.f32 %v2838, %v2848
      %v2857 = vmul.f32 %v2835, %v2844
      %v2858 = vmul.f32 %v2836, %v2848
      %v2859 = vmul.f32 %v2833, %v2844
      %v2860 = vmul.f32 %v2834, %v2848
      %v2861 = vmul.f32 %v2831, %v2844
      %v2862 = vmul.f32 %v2832, %v2848
      %v2863 = vmul.f32 %v2829, %v2844
      %v2864 = vmul.f32 %v2830, %v2848
      %v2865 = vmul.f32 %v2827, %v2844
      %v2866 = vmul.f32 %v2828, %v2848
      %v2867 = vmul.f32 %v2825, %v2844
      %v2868 = vmul.f32 %v2826, %v2848
      %v2869 = vmul.f32 %v2823, %v2844
      %v2870 = vmul.f32 %v2824, %v2848
      %v2871 = vmul.f32 %v2821, %v2844
      %v2872 = vmul.f32 %v2822, %v2848
      %v2873 = vmul.f32 %v2819, %v2844
      %v2874 = vmul.f32 %v2820, %v2848
      %v2875 = vmul.f32 %v2817, %v2844
      %v2876 = vmul.f32 %v2818, %v2848
      %v2877 = vmul.f32 %v2815, %v2844
      %v2878 = vmul.f32 %v2816, %v2848
      %v2879 = vmul.f32 %v2813, %v2844
      %v2880 = vmul.f32 %v2814, %v2848
      %v2881 = vmul.f32 %v2811, %v2844
      %v2882 = vmul.f32 %v2812, %v2848
      %v2883 = vmul.f32 %v2809, %v2844
      %v2884 = vmul.f32 %v2810, %v2848
      %v2885 = vmul.f32 %v2807, %v2844
      %v2886 = vmul.f32 %v2808, %v2848
      %v2887 = vmul.f32 %v2805, %v2844
      %v2888 = vmul.f32 %v2806, %v2848
      %v2889 = vmul.f32 %v2803, %v2844
      %v2890 = vmul.f32 %v2804, %v2848
      %v2891 = vmul.f32 %v2801, %v2844
      %v2892 = vmul.f32 %v2802, %v2848
      %v2893 = vmul.f32 %v2799, %v2844
      %v2894 = vmul.f32 %v2800, %v2848
      %v2895 = vmul.f32 %v2797, %v2844
      %v2896 = vmul.f32 %v2798, %v2848
      %v2897 = vmul.f32 %v2795, %v2844
      %v2898 = vmul.f32 %v2796, %v2848
      %v2899 = vmul.f32 %v2793, %v2844
      %v2900 = vmul.f32 %v2794, %v2848
      %v2901 = vmul.f32 %v2791, %v2844
      %v2902 = vmul.f32 %v2792, %v2848
      %v2903 = vmul.f32 %v2789, %v2844
      %v2904 = vmul.f32 %v2790, %v2848
      %v2905 = vmul.f32 %v2787, %v2844
      %v2906 = vmul.f32 %v2788, %v2848
      %v2907 = vmul.f32 %v2785, %v2844
      %v2908 = vmul.f32 %v2786, %v2848
      %v2909 = vmul.f32 %v2783, %v2844
      %v2910 = vmul.f32 %v2784, %v2848
      %v2911 = vmul.f32 %v2781, %v2844
      %v2912 = vmul.f32 %v2782, %v2848
      %v2913 = vlaneseq
      %v2914 = vshrl.u32 %v2913, 7
      %v2915 = vsub.s32 1, %v2914
      %v2916 = vrot.slane %v1938, %v2915
      %v2917 = vlaneseq
      %v2918 = vshrl.u32 %v2917, 7
      %v2919 = vsub.s32 1, %v2918
      %v2920 = vrot.slane %v1939, %v2919
      %v2921 = vmul.f32 %v2451, %v2916
      %v2922 = vmul.f32 %v2452, %v2920
      %v2923 = vmul.f32 %v2453, %v2916
      %v2924 = vmul.f32 %v2454, %v2920
      %v2925 = vmul.f32 %v2391, %v2916
      %v2926 = vmul.f32 %v2392, %v2920
      %v2927 = vmul.f32 %v2393, %v2916
      %v2928 = vmul.f32 %v2394, %v2920
      %v2929 = vmul.f32 %v2395, %v2916
      %v2930 = vmul.f32 %v2396, %v2920
      %v2931 = vmul.f32 %v2397, %v2916
      %v2932 = vmul.f32 %v2398, %v2920
      %v2933 = vmul.f32 %v2399, %v2916
      %v2934 = vmul.f32 %v2400, %v2920
      %v2935 = vmul.f32 %v2401, %v2916
      %v2936 = vmul.f32 %v2402, %v2920
      %v2937 = vmul.f32 %v2403, %v2916
      %v2938 = vmul.f32 %v2404, %v2920
      %v2939 = vmul.f32 %v2405, %v2916
      %v2940 = vmul.f32 %v2406, %v2920
      %v2941 = vmul.f32 %v2407, %v2916
      %v2942 = vmul.f32 %v2408, %v2920
      %v2943 = vmul.f32 %v2409, %v2916
      %v2944 = vmul.f32 %v2410, %v2920
      %v2945 = vmul.f32 %v2411, %v2916
      %v2946 = vmul.f32 %v2412, %v2920
      %v2947 = vmul.f32 %v2413, %v2916
      %v2948 = vmul.f32 %v2414, %v2920
      %v2949 = vmul.f32 %v2415, %v2916
      %v2950 = vmul.f32 %v2416, %v2920
      %v2951 = vmul.f32 %v2417, %v2916
      %v2952 = vmul.f32 %v2418, %v2920
      %v2953 = vmul.f32 %v2419, %v2916
      %v2954 = vmul.f32 %v2420, %v2920
      %v2955 = vmul.f32 %v2421, %v2916
      %v2956 = vmul.f32 %v2422, %v2920
      %v2957 = vmul.f32 %v2423, %v2916
      %v2958 = vmul.f32 %v2424, %v2920
      %v2959 = vmul.f32 %v2425, %v2916
      %v2960 = vmul.f32 %v2426, %v2920
      %v2961 = vmul.f32 %v2427, %v2916
      %v2962 = vmul.f32 %v2428, %v2920
      %v2963 = vmul.f32 %v2429, %v2916
      %v2964 = vmul.f32 %v2430, %v2920
      %v2965 = vmul.f32 %v2431, %v2916
      %v2966 = vmul.f32 %v2432, %v2920
      %v2967 = vmul.f32 %v2433, %v2916
      %v2968 = vmul.f32 %v2434, %v2920
      %v2969 = vmul.f32 %v2435, %v2916
      %v2970 = vmul.f32 %v2436, %v2920
      %v2971 = vmul.f32 %v2437, %v2916
      %v2972 = vmul.f32 %v2438, %v2920
      %v2973 = vmul.f32 %v2439, %v2916
      %v2974 = vmul.f32 %v2440, %v2920
      %v2975 = vmul.f32 %v2441, %v2916
      %v2976 = vmul.f32 %v2442, %v2920
      %v2977 = vmul.f32 %v2443, %v2916
      %v2978 = vmul.f32 %v2444, %v2920
      %v2979 = vmul.f32 %v2445, %v2916
      %v2980 = vmul.f32 %v2446, %v2920
      %v2981 = vmul.f32 %v2447, %v2916
      %v2982 = vmul.f32 %v2448, %v2920
      %v2983 = vmul.f32 %v2449, %v2916
      %v2984 = vmul.f32 %v2450, %v2920
      %v2985 = vadd.f32 %v2849, %v2921
      %v2986 = vadd.f32 %v2850, %v2922
      %v2987 = vadd.f32 %v2851, %v2923
      %v2988 = vadd.f32 %v2852, %v2924
      %v2989 = vadd.f32 %v2853, %v2925
      %v2990 = vadd.f32 %v2854, %v2926
      %v2991 = vadd.f32 %v2855, %v2927
      %v2992 = vadd.f32 %v2856, %v2928
      %v2993 = vadd.f32 %v2857, %v2929
      %v2994 = vadd.f32 %v2858, %v2930
      %v2995 = vadd.f32 %v2859, %v2931
      %v2996 = vadd.f32 %v2860, %v2932
      %v2997 = vadd.f32 %v2861, %v2933
      %v2998 = vadd.f32 %v2862, %v2934
      %v2999 = vadd.f32 %v2863, %v2935
      %v3000 = vadd.f32 %v2864, %v2936
      %v3001 = vadd.f32 %v2865, %v2937
      %v3002 = vadd.f32 %v2866, %v2938
      %v3003 = vadd.f32 %v2867, %v2939
      %v3004 = vadd.f32 %v2868, %v2940
      %v3005 = vadd.f32 %v2869, %v2941
      %v3006 = vadd.f32 %v2870, %v2942
      %v3007 = vadd.f32 %v2871, %v2943
      %v3008 = vadd.f32 %v2872, %v2944
      %v3009 = vadd.f32 %v2873, %v2945
      %v3010 = vadd.f32 %v2874, %v2946
      %v3011 = vadd.f32 %v2875, %v2947
      %v3012 = vadd.f32 %v2876, %v2948
      %v3013 = vadd.f32 %v2877, %v2949
      %v3014 = vadd.f32 %v2878, %v2950
      %v3015 = vadd.f32 %v2879, %v2951
      %v3016 = vadd.f32 %v2880, %v2952
      %v3017 = vadd.f32 %v2881, %v2953
      %v3018 = vadd.f32 %v2882, %v2954
      %v3019 = vadd.f32 %v2883, %v2955
      %v3020 = vadd.f32 %v2884, %v2956
      %v3021 = vadd.f32 %v2885, %v2957
      %v3022 = vadd.f32 %v2886, %v2958
      %v3023 = vadd.f32 %v2887, %v2959
      %v3024 = vadd.f32 %v2888, %v2960
      %v3025 = vadd.f32 %v2889, %v2961
      %v3026 = vadd.f32 %v2890, %v2962
      %v3027 = vadd.f32 %v2891, %v2963
      %v3028 = vadd.f32 %v2892, %v2964
      %v3029 = vadd.f32 %v2893, %v2965
      %v3030 = vadd.f32 %v2894, %v2966
      %v3031 = vadd.f32 %v2895, %v2967
      %v3032 = vadd.f32 %v2896, %v2968
      %v3033 = vadd.f32 %v2897, %v2969
      %v3034 = vadd.f32 %v2898, %v2970
      %v3035 = vadd.f32 %v2899, %v2971
      %v3036 = vadd.f32 %v2900, %v2972
      %v3037 = vadd.f32 %v2901, %v2973
      %v3038 = vadd.f32 %v2902, %v2974
      %v3039 = vadd.f32 %v2903, %v2975
      %v3040 = vadd.f32 %v2904, %v2976
      %v3041 = vadd.f32 %v2905, %v2977
      %v3042 = vadd.f32 %v2906, %v2978
      %v3043 = vadd.f32 %v2907, %v2979
      %v3044 = vadd.f32 %v2908, %v2980
      %v3045 = vadd.f32 %v2909, %v2981
      %v3046 = vadd.f32 %v2910, %v2982
      %v3047 = vadd.f32 %v2911, %v2983
      %v3048 = vadd.f32 %v2912, %v2984
      %v3049 = vrot.slane %v2648, 1
      %v3050 = vrot.slane %v2649, 1
      %v3051 = vrot.slane %v2650, 1
      %v3052 = vrot.slane %v2651, 1
      %v3053 = vrot.slane %v2652, 1
      %v3054 = vrot.slane %v2653, 1
      %v3055 = vrot.slane %v2654, 1
      %v3056 = vrot.slane %v2655, 1
      %v3057 = vrot.slane %v2656, 1
      %v3058 = vrot.slane %v2657, 1
      %v3059 = vrot.slane %v2658, 1
      %v3060 = vrot.slane %v2659, 1
      %v3061 = vrot.slane %v2660, 1
      %v3062 = vrot.slane %v2661, 1
      %v3063 = vrot.slane %v2662, 1
      %v3064 = vrot.slane %v2663, 1
      %v3065 = vrot.slane %v2664, 1
      %v3066 = vrot.slane %v2665, 1
      %v3067 = vrot.slane %v2666, 1
      %v3068 = vrot.slane %v2667, 1
      %v3069 = vrot.slane %v2668, 1
      %v3070 = vrot.slane %v2669, 1
      %v3071 = vrot.slane %v2670, 1
      %v3072 = vrot.slane %v2671, 1
      %v3073 = vrot.slane %v2672, 1
      %v3074 = vrot.slane %v2673, 1
      %v3075 = vrot.slane %v2674, 1
      %v3076 = vrot.slane %v2675, 1
      %v3077 = vrot.slane %v2676, 1
      %v3078 = vrot.slane %v2677, 1
      %v3079 = vrot.slane %v2678, 1
      %v3080 = vrot.slane %v2679, 1
      %v3081 = vrot.slane %v2680, 1
      %v3082 = vrot.slane %v2681, 1
      %v3083 = vrot.slane %v2682, 1
      %v3084 = vrot.slane %v2683, 1
      %v3085 = vrot.slane %v2684, 1
      %v3086 = vrot.slane %v2685, 1
      %v3087 = vrot.slane %v2686, 1
      %v3088 = vrot.slane %v2687, 1
      %v3089 = vrot.slane %v2688, 1
      %v3090 = vrot.slane %v2689, 1
      %v3091 = vrot.slane %v2690, 1
      %v3092 = vrot.slane %v2691, 1
      %v3093 = vrot.slane %v2692, 1
      %v3094 = vrot.slane %v2693, 1
      %v3095 = vrot.slane %v2694, 1
      %v3096 = vrot.slane %v2695, 1
      %v3097 = vrot.slane %v2696, 1
      %v3098 = vrot.slane %v2697, 1
      %v3099 = vrot.slane %v2698, 1
      %v3100 = vrot.slane %v2699, 1
      %v3101 = vrot.slane %v2700, 1
      %v3102 = vrot.slane %v2701, 1
      %v3103 = vrot.slane %v2702, 1
      %v3104 = vrot.slane %v2703, 1
      %v3105 = vrot.slane %v2704, 1
      %v3106 = vrot.slane %v2705, 1
      %v3107 = vrot.slane %v2706, 1
      %v3108 = vrot.slane %v2707, 1
      %v3109 = vrot.slane %v2708, 1
      %v3110 = vrot.slane %v2709, 1
      %v3111 = vrot.slane %v2710, 1
      %v3112 = vrot.slane %v2711, 1
      %vm3113 = vcmp.lt.s32.totalorder %v2456, 7
      %v3114 = vsel %vm3113, %v3109, %v3111
      %v3115 = vsel %vm3113, %v3110, %v3112
      %v3116 = vsel %vm3113, %v3107, %v3109
      %v3117 = vsel %vm3113, %v3108, %v3110
      %v3118 = vsel %vm3113, %v3105, %v3107
      %v3119 = vsel %vm3113, %v3106, %v3108
      %v3120 = vsel %vm3113, %v3103, %v3105
      %v3121 = vsel %vm3113, %v3104, %v3106
      %v3122 = vsel %vm3113, %v3101, %v3103
      %v3123 = vsel %vm3113, %v3102, %v3104
      %v3124 = vsel %vm3113, %v3099, %v3101
      %v3125 = vsel %vm3113, %v3100, %v3102
      %v3126 = vsel %vm3113, %v3097, %v3099
      %v3127 = vsel %vm3113, %v3098, %v3100
      %v3128 = vsel %vm3113, %v3095, %v3097
      %v3129 = vsel %vm3113, %v3096, %v3098
      %v3130 = vsel %vm3113, %v3093, %v3095
      %v3131 = vsel %vm3113, %v3094, %v3096
      %v3132 = vsel %vm3113, %v3091, %v3093
      %v3133 = vsel %vm3113, %v3092, %v3094
      %v3134 = vsel %vm3113, %v3089, %v3091
      %v3135 = vsel %vm3113, %v3090, %v3092
      %v3136 = vsel %vm3113, %v3087, %v3089
      %v3137 = vsel %vm3113, %v3088, %v3090
      %v3138 = vsel %vm3113, %v3085, %v3087
      %v3139 = vsel %vm3113, %v3086, %v3088
      %v3140 = vsel %vm3113, %v3083, %v3085
      %v3141 = vsel %vm3113, %v3084, %v3086
      %v3142 = vsel %vm3113, %v3081, %v3083
      %v3143 = vsel %vm3113, %v3082, %v3084
      %v3144 = vsel %vm3113, %v3079, %v3081
      %v3145 = vsel %vm3113, %v3080, %v3082
      %v3146 = vsel %vm3113, %v3077, %v3079
      %v3147 = vsel %vm3113, %v3078, %v3080
      %v3148 = vsel %vm3113, %v3075, %v3077
      %v3149 = vsel %vm3113, %v3076, %v3078
      %v3150 = vsel %vm3113, %v3073, %v3075
      %v3151 = vsel %vm3113, %v3074, %v3076
      %v3152 = vsel %vm3113, %v3071, %v3073
      %v3153 = vsel %vm3113, %v3072, %v3074
      %v3154 = vsel %vm3113, %v3069, %v3071
      %v3155 = vsel %vm3113, %v3070, %v3072
      %v3156 = vsel %vm3113, %v3067, %v3069
      %v3157 = vsel %vm3113, %v3068, %v3070
      %v3158 = vsel %vm3113, %v3065, %v3067
      %v3159 = vsel %vm3113, %v3066, %v3068
      %v3160 = vsel %vm3113, %v3063, %v3065
      %v3161 = vsel %vm3113, %v3064, %v3066
      %v3162 = vsel %vm3113, %v3061, %v3063
      %v3163 = vsel %vm3113, %v3062, %v3064
      %v3164 = vsel %vm3113, %v3059, %v3061
      %v3165 = vsel %vm3113, %v3060, %v3062
      %v3166 = vsel %vm3113, %v3057, %v3059
      %v3167 = vsel %vm3113, %v3058, %v3060
      %v3168 = vsel %vm3113, %v3055, %v3057
      %v3169 = vsel %vm3113, %v3056, %v3058
      %v3170 = vsel %vm3113, %v3053, %v3055
      %v3171 = vsel %vm3113, %v3054, %v3056
      %v3172 = vsel %vm3113, %v3051, %v3053
      %v3173 = vsel %vm3113, %v3052, %v3054
      %v3174 = vsel %vm3113, %v3049, %v3051
      %v3175 = vsel %vm3113, %v3050, %v3052
      %v3176 = vsel %vm3113, %v3111, %v3049
      %v3177 = vsel %vm3113, %v3112, %v3050
      %v3178 = vlaneseq
      %v3179 = vshrl.u32 %v3178, 7
      %v3180 = vsub.s32 2, %v3179
      %v3181 = vrot.slane %v1938, %v3180
      %v3182 = vlaneseq
      %v3183 = vshrl.u32 %v3182, 7
      %v3184 = vsub.s32 2, %v3183
      %v3185 = vrot.slane %v1939, %v3184
      %v3186 = vmul.f32 %v3114, %v3181
      %v3187 = vmul.f32 %v3115, %v3185
      %v3188 = vmul.f32 %v3176, %v3181
      %v3189 = vmul.f32 %v3177, %v3185
      %v3190 = vmul.f32 %v3174, %v3181
      %v3191 = vmul.f32 %v3175, %v3185
      %v3192 = vmul.f32 %v3172, %v3181
      %v3193 = vmul.f32 %v3173, %v3185
      %v3194 = vmul.f32 %v3170, %v3181
      %v3195 = vmul.f32 %v3171, %v3185
      %v3196 = vmul.f32 %v3168, %v3181
      %v3197 = vmul.f32 %v3169, %v3185
      %v3198 = vmul.f32 %v3166, %v3181
      %v3199 = vmul.f32 %v3167, %v3185
      %v3200 = vmul.f32 %v3164, %v3181
      %v3201 = vmul.f32 %v3165, %v3185
      %v3202 = vmul.f32 %v3162, %v3181
      %v3203 = vmul.f32 %v3163, %v3185
      %v3204 = vmul.f32 %v3160, %v3181
      %v3205 = vmul.f32 %v3161, %v3185
      %v3206 = vmul.f32 %v3158, %v3181
      %v3207 = vmul.f32 %v3159, %v3185
      %v3208 = vmul.f32 %v3156, %v3181
      %v3209 = vmul.f32 %v3157, %v3185
      %v3210 = vmul.f32 %v3154, %v3181
      %v3211 = vmul.f32 %v3155, %v3185
      %v3212 = vmul.f32 %v3152, %v3181
      %v3213 = vmul.f32 %v3153, %v3185
      %v3214 = vmul.f32 %v3150, %v3181
      %v3215 = vmul.f32 %v3151, %v3185
      %v3216 = vmul.f32 %v3148, %v3181
      %v3217 = vmul.f32 %v3149, %v3185
      %v3218 = vmul.f32 %v3146, %v3181
      %v3219 = vmul.f32 %v3147, %v3185
      %v3220 = vmul.f32 %v3144, %v3181
      %v3221 = vmul.f32 %v3145, %v3185
      %v3222 = vmul.f32 %v3142, %v3181
      %v3223 = vmul.f32 %v3143, %v3185
      %v3224 = vmul.f32 %v3140, %v3181
      %v3225 = vmul.f32 %v3141, %v3185
      %v3226 = vmul.f32 %v3138, %v3181
      %v3227 = vmul.f32 %v3139, %v3185
      %v3228 = vmul.f32 %v3136, %v3181
      %v3229 = vmul.f32 %v3137, %v3185
      %v3230 = vmul.f32 %v3134, %v3181
      %v3231 = vmul.f32 %v3135, %v3185
      %v3232 = vmul.f32 %v3132, %v3181
      %v3233 = vmul.f32 %v3133, %v3185
      %v3234 = vmul.f32 %v3130, %v3181
      %v3235 = vmul.f32 %v3131, %v3185
      %v3236 = vmul.f32 %v3128, %v3181
      %v3237 = vmul.f32 %v3129, %v3185
      %v3238 = vmul.f32 %v3126, %v3181
      %v3239 = vmul.f32 %v3127, %v3185
      %v3240 = vmul.f32 %v3124, %v3181
      %v3241 = vmul.f32 %v3125, %v3185
      %v3242 = vmul.f32 %v3122, %v3181
      %v3243 = vmul.f32 %v3123, %v3185
      %v3244 = vmul.f32 %v3120, %v3181
      %v3245 = vmul.f32 %v3121, %v3185
      %v3246 = vmul.f32 %v3118, %v3181
      %v3247 = vmul.f32 %v3119, %v3185
      %v3248 = vmul.f32 %v3116, %v3181
      %v3249 = vmul.f32 %v3117, %v3185
      %v3250 = vadd.f32 %v2985, %v3186
      %v3251 = vadd.f32 %v2986, %v3187
      %v3252 = vadd.f32 %v2987, %v3188
      %v3253 = vadd.f32 %v2988, %v3189
      %v3254 = vadd.f32 %v2989, %v3190
      %v3255 = vadd.f32 %v2990, %v3191
      %v3256 = vadd.f32 %v2991, %v3192
      %v3257 = vadd.f32 %v2992, %v3193
      %v3258 = vadd.f32 %v2993, %v3194
      %v3259 = vadd.f32 %v2994, %v3195
      %v3260 = vadd.f32 %v2995, %v3196
      %v3261 = vadd.f32 %v2996, %v3197
      %v3262 = vadd.f32 %v2997, %v3198
      %v3263 = vadd.f32 %v2998, %v3199
      %v3264 = vadd.f32 %v2999, %v3200
      %v3265 = vadd.f32 %v3000, %v3201
      %v3266 = vadd.f32 %v3001, %v3202
      %v3267 = vadd.f32 %v3002, %v3203
      %v3268 = vadd.f32 %v3003, %v3204
      %v3269 = vadd.f32 %v3004, %v3205
      %v3270 = vadd.f32 %v3005, %v3206
      %v3271 = vadd.f32 %v3006, %v3207
      %v3272 = vadd.f32 %v3007, %v3208
      %v3273 = vadd.f32 %v3008, %v3209
      %v3274 = vadd.f32 %v3009, %v3210
      %v3275 = vadd.f32 %v3010, %v3211
      %v3276 = vadd.f32 %v3011, %v3212
      %v3277 = vadd.f32 %v3012, %v3213
      %v3278 = vadd.f32 %v3013, %v3214
      %v3279 = vadd.f32 %v3014, %v3215
      %v3280 = vadd.f32 %v3015, %v3216
      %v3281 = vadd.f32 %v3016, %v3217
      %v3282 = vadd.f32 %v3017, %v3218
      %v3283 = vadd.f32 %v3018, %v3219
      %v3284 = vadd.f32 %v3019, %v3220
      %v3285 = vadd.f32 %v3020, %v3221
      %v3286 = vadd.f32 %v3021, %v3222
      %v3287 = vadd.f32 %v3022, %v3223
      %v3288 = vadd.f32 %v3023, %v3224
      %v3289 = vadd.f32 %v3024, %v3225
      %v3290 = vadd.f32 %v3025, %v3226
      %v3291 = vadd.f32 %v3026, %v3227
      %v3292 = vadd.f32 %v3027, %v3228
      %v3293 = vadd.f32 %v3028, %v3229
      %v3294 = vadd.f32 %v3029, %v3230
      %v3295 = vadd.f32 %v3030, %v3231
      %v3296 = vadd.f32 %v3031, %v3232
      %v3297 = vadd.f32 %v3032, %v3233
      %v3298 = vadd.f32 %v3033, %v3234
      %v3299 = vadd.f32 %v3034, %v3235
      %v3300 = vadd.f32 %v3035, %v3236
      %v3301 = vadd.f32 %v3036, %v3237
      %v3302 = vadd.f32 %v3037, %v3238
      %v3303 = vadd.f32 %v3038, %v3239
      %v3304 = vadd.f32 %v3039, %v3240
      %v3305 = vadd.f32 %v3040, %v3241
      %v3306 = vadd.f32 %v3041, %v3242
      %v3307 = vadd.f32 %v3042, %v3243
      %v3308 = vadd.f32 %v3043, %v3244
      %v3309 = vadd.f32 %v3044, %v3245
      %v3310 = vadd.f32 %v3045, %v3246
      %v3311 = vadd.f32 %v3046, %v3247
      %v3312 = vadd.f32 %v3047, %v3248
      %v3313 = vadd.f32 %v3048, %v3249
      %vm3314 = vcmp.ge.s32.totalorder %v2456, 16
      %vm3315 = vcmp.ge.s32.totalorder %v2457, 16
      %vm3316 = vcmp.ge.s32.totalorder %v2458, 16
      %vm3317 = vcmp.ge.s32.totalorder %v2459, 16
      %vm3318 = vcmp.ge.s32.totalorder %v2460, 16
      %vm3319 = vcmp.ge.s32.totalorder %v2461, 16
      %vm3320 = vcmp.ge.s32.totalorder %v2462, 16
      %vm3321 = vcmp.ge.s32.totalorder %v2463, 16
      %vm3322 = vcmp.ge.s32.totalorder %v2464, 16
      %vm3323 = vcmp.ge.s32.totalorder %v2465, 16
      %vm3324 = vcmp.ge.s32.totalorder %v2466, 16
      %vm3325 = vcmp.ge.s32.totalorder %v2467, 16
      %vm3326 = vcmp.ge.s32.totalorder %v2468, 16
      %vm3327 = vcmp.ge.s32.totalorder %v2469, 16
      %vm3328 = vcmp.ge.s32.totalorder %v2470, 16
      %vm3329 = vcmp.ge.s32.totalorder %v2471, 16
      %vm3330 = vcmp.ge.s32.totalorder %v2472, 16
      %vm3331 = vcmp.ge.s32.totalorder %v2473, 16
      %vm3332 = vcmp.ge.s32.totalorder %v2474, 16
      %vm3333 = vcmp.ge.s32.totalorder %v2475, 16
      %vm3334 = vcmp.ge.s32.totalorder %v2476, 16
      %vm3335 = vcmp.ge.s32.totalorder %v2477, 16
      %vm3336 = vcmp.ge.s32.totalorder %v2478, 16
      %vm3337 = vcmp.ge.s32.totalorder %v2479, 16
      %vm3338 = vcmp.ge.s32.totalorder %v2480, 16
      %vm3339 = vcmp.ge.s32.totalorder %v2481, 16
      %vm3340 = vcmp.ge.s32.totalorder %v2482, 16
      %vm3341 = vcmp.ge.s32.totalorder %v2483, 16
      %vm3342 = vcmp.ge.s32.totalorder %v2484, 16
      %vm3343 = vcmp.ge.s32.totalorder %v2485, 16
      %vm3344 = vcmp.ge.s32.totalorder %v2486, 16
      %vm3345 = vcmp.ge.s32.totalorder %v2487, 16
      %v3346 = vsel %vm3314, %v3250, 0.0
      %v3347 = vsel %vm3314, %v3251, 0.0
      %v3348 = vsel %vm3315, %v3252, 0.0
      %v3349 = vsel %vm3315, %v3253, 0.0
      %v3350 = vsel %vm3316, %v3254, 0.0
      %v3351 = vsel %vm3316, %v3255, 0.0
      %v3352 = vsel %vm3317, %v3256, 0.0
      %v3353 = vsel %vm3317, %v3257, 0.0
      %v3354 = vsel %vm3318, %v3258, 0.0
      %v3355 = vsel %vm3318, %v3259, 0.0
      %v3356 = vsel %vm3319, %v3260, 0.0
      %v3357 = vsel %vm3319, %v3261, 0.0
      %v3358 = vsel %vm3320, %v3262, 0.0
      %v3359 = vsel %vm3320, %v3263, 0.0
      %v3360 = vsel %vm3321, %v3264, 0.0
      %v3361 = vsel %vm3321, %v3265, 0.0
      %v3362 = vsel %vm3322, %v3266, 0.0
      %v3363 = vsel %vm3322, %v3267, 0.0
      %v3364 = vsel %vm3323, %v3268, 0.0
      %v3365 = vsel %vm3323, %v3269, 0.0
      %v3366 = vsel %vm3324, %v3270, 0.0
      %v3367 = vsel %vm3324, %v3271, 0.0
      %v3368 = vsel %vm3325, %v3272, 0.0
      %v3369 = vsel %vm3325, %v3273, 0.0
      %v3370 = vsel %vm3326, %v3274, 0.0
      %v3371 = vsel %vm3326, %v3275, 0.0
      %v3372 = vsel %vm3327, %v3276, 0.0
      %v3373 = vsel %vm3327, %v3277, 0.0
      %v3374 = vsel %vm3328, %v3278, 0.0
      %v3375 = vsel %vm3328, %v3279, 0.0
      %v3376 = vsel %vm3329, %v3280, 0.0
      %v3377 = vsel %vm3329, %v3281, 0.0
      %v3378 = vsel %vm3330, %v3282, 0.0
      %v3379 = vsel %vm3330, %v3283, 0.0
      %v3380 = vsel %vm3331, %v3284, 0.0
      %v3381 = vsel %vm3331, %v3285, 0.0
      %v3382 = vsel %vm3332, %v3286, 0.0
      %v3383 = vsel %vm3332, %v3287, 0.0
      %v3384 = vsel %vm3333, %v3288, 0.0
      %v3385 = vsel %vm3333, %v3289, 0.0
      %v3386 = vsel %vm3334, %v3290, 0.0
      %v3387 = vsel %vm3334, %v3291, 0.0
      %v3388 = vsel %vm3335, %v3292, 0.0
      %v3389 = vsel %vm3335, %v3293, 0.0
      %v3390 = vsel %vm3336, %v3294, 0.0
      %v3391 = vsel %vm3336, %v3295, 0.0
      %v3392 = vsel %vm3337, %v3296, 0.0
      %v3393 = vsel %vm3337, %v3297, 0.0
      %v3394 = vsel %vm3338, %v3298, 0.0
      %v3395 = vsel %vm3338, %v3299, 0.0
      %v3396 = vsel %vm3339, %v3300, 0.0
      %v3397 = vsel %vm3339, %v3301, 0.0
      %v3398 = vsel %vm3340, %v3302, 0.0
      %v3399 = vsel %vm3340, %v3303, 0.0
      %v3400 = vsel %vm3341, %v3304, 0.0
      %v3401 = vsel %vm3341, %v3305, 0.0
      %v3402 = vsel %vm3342, %v3306, 0.0
      %v3403 = vsel %vm3342, %v3307, 0.0
      %v3404 = vsel %vm3343, %v3308, 0.0
      %v3405 = vsel %vm3343, %v3309, 0.0
      %v3406 = vsel %vm3344, %v3310, 0.0
      %v3407 = vsel %vm3344, %v3311, 0.0
      %v3408 = vsel %vm3345, %v3312, 0.0
      %v3409 = vsel %vm3345, %v3313, 0.0
      %v3410 = vadd.f32 %v3346, 0.0
      %v3411 = vadd.f32 %v3347, 0.0
      %v3412 = vadd.f32 %v3348, 0.0
      %v3413 = vadd.f32 %v3349, 0.0
      %v3414 = vadd.f32 %v3350, 0.0
      %v3415 = vadd.f32 %v3351, 0.0
      %v3416 = vadd.f32 %v3352, 0.0
      %v3417 = vadd.f32 %v3353, 0.0
      %v3418 = vadd.f32 %v3354, 0.0
      %v3419 = vadd.f32 %v3355, 0.0
      %v3420 = vadd.f32 %v3356, 0.0
      %v3421 = vadd.f32 %v3357, 0.0
      %v3422 = vadd.f32 %v3358, 0.0
      %v3423 = vadd.f32 %v3359, 0.0
      %v3424 = vadd.f32 %v3360, 0.0
      %v3425 = vadd.f32 %v3361, 0.0
      %v3426 = vadd.f32 %v3362, 0.0
      %v3427 = vadd.f32 %v3363, 0.0
      %v3428 = vadd.f32 %v3364, 0.0
      %v3429 = vadd.f32 %v3365, 0.0
      %v3430 = vadd.f32 %v3366, 0.0
      %v3431 = vadd.f32 %v3367, 0.0
      %v3432 = vadd.f32 %v3368, 0.0
      %v3433 = vadd.f32 %v3369, 0.0
      %v3434 = vadd.f32 %v3370, 0.0
      %v3435 = vadd.f32 %v3371, 0.0
      %v3436 = vadd.f32 %v3372, 0.0
      %v3437 = vadd.f32 %v3373, 0.0
      %v3438 = vadd.f32 %v3374, 0.0
      %v3439 = vadd.f32 %v3375, 0.0
      %v3440 = vadd.f32 %v3376, 0.0
      %v3441 = vadd.f32 %v3377, 0.0
      %v3442 = vadd.f32 %v3378, 0.0
      %v3443 = vadd.f32 %v3379, 0.0
      %v3444 = vadd.f32 %v3380, 0.0
      %v3445 = vadd.f32 %v3381, 0.0
      %v3446 = vadd.f32 %v3382, 0.0
      %v3447 = vadd.f32 %v3383, 0.0
      %v3448 = vadd.f32 %v3384, 0.0
      %v3449 = vadd.f32 %v3385, 0.0
      %v3450 = vadd.f32 %v3386, 0.0
      %v3451 = vadd.f32 %v3387, 0.0
      %v3452 = vadd.f32 %v3388, 0.0
      %v3453 = vadd.f32 %v3389, 0.0
      %v3454 = vadd.f32 %v3390, 0.0
      %v3455 = vadd.f32 %v3391, 0.0
      %v3456 = vadd.f32 %v3392, 0.0
      %v3457 = vadd.f32 %v3393, 0.0
      %v3458 = vadd.f32 %v3394, 0.0
      %v3459 = vadd.f32 %v3395, 0.0
      %v3460 = vadd.f32 %v3396, 0.0
      %v3461 = vadd.f32 %v3397, 0.0
      %v3462 = vadd.f32 %v3398, 0.0
      %v3463 = vadd.f32 %v3399, 0.0
      %v3464 = vadd.f32 %v3400, 0.0
      %v3465 = vadd.f32 %v3401, 0.0
      %v3466 = vadd.f32 %v3402, 0.0
      %v3467 = vadd.f32 %v3403, 0.0
      %v3468 = vadd.f32 %v3404, 0.0
      %v3469 = vadd.f32 %v3405, 0.0
      %v3470 = vadd.f32 %v3406, 0.0
      %v3471 = vadd.f32 %v3407, 0.0
      %v3472 = vadd.f32 %v3408, 0.0
      %v3473 = vadd.f32 %v3409, 0.0
      %v3474 = vlaneseq
      %v3475 = vshrl.u32 %v3474, 7
      %v3476 = vsub.s32 3, %v3475
      %v3477 = vrot.slane %v1938, %v3476
      %v3478 = vlaneseq
      %v3479 = vshrl.u32 %v3478, 7
      %v3480 = vsub.s32 3, %v3479
      %v3481 = vrot.slane %v1939, %v3480
      %v3482 = vmul.f32 %v2839, %v3477
      %v3483 = vmul.f32 %v2840, %v3481
      %v3484 = vmul.f32 %v2837, %v3477
      %v3485 = vmul.f32 %v2838, %v3481
      %v3486 = vmul.f32 %v2835, %v3477
      %v3487 = vmul.f32 %v2836, %v3481
      %v3488 = vmul.f32 %v2833, %v3477
      %v3489 = vmul.f32 %v2834, %v3481
      %v3490 = vmul.f32 %v2831, %v3477
      %v3491 = vmul.f32 %v2832, %v3481
      %v3492 = vmul.f32 %v2829, %v3477
      %v3493 = vmul.f32 %v2830, %v3481
      %v3494 = vmul.f32 %v2827, %v3477
      %v3495 = vmul.f32 %v2828, %v3481
      %v3496 = vmul.f32 %v2825, %v3477
      %v3497 = vmul.f32 %v2826, %v3481
      %v3498 = vmul.f32 %v2823, %v3477
      %v3499 = vmul.f32 %v2824, %v3481
      %v3500 = vmul.f32 %v2821, %v3477
      %v3501 = vmul.f32 %v2822, %v3481
      %v3502 = vmul.f32 %v2819, %v3477
      %v3503 = vmul.f32 %v2820, %v3481
      %v3504 = vmul.f32 %v2817, %v3477
      %v3505 = vmul.f32 %v2818, %v3481
      %v3506 = vmul.f32 %v2815, %v3477
      %v3507 = vmul.f32 %v2816, %v3481
      %v3508 = vmul.f32 %v2813, %v3477
      %v3509 = vmul.f32 %v2814, %v3481
      %v3510 = vmul.f32 %v2811, %v3477
      %v3511 = vmul.f32 %v2812, %v3481
      %v3512 = vmul.f32 %v2809, %v3477
      %v3513 = vmul.f32 %v2810, %v3481
      %v3514 = vmul.f32 %v2807, %v3477
      %v3515 = vmul.f32 %v2808, %v3481
      %v3516 = vmul.f32 %v2805, %v3477
      %v3517 = vmul.f32 %v2806, %v3481
      %v3518 = vmul.f32 %v2803, %v3477
      %v3519 = vmul.f32 %v2804, %v3481
      %v3520 = vmul.f32 %v2801, %v3477
      %v3521 = vmul.f32 %v2802, %v3481
      %v3522 = vmul.f32 %v2799, %v3477
      %v3523 = vmul.f32 %v2800, %v3481
      %v3524 = vmul.f32 %v2797, %v3477
      %v3525 = vmul.f32 %v2798, %v3481
      %v3526 = vmul.f32 %v2795, %v3477
      %v3527 = vmul.f32 %v2796, %v3481
      %v3528 = vmul.f32 %v2793, %v3477
      %v3529 = vmul.f32 %v2794, %v3481
      %v3530 = vmul.f32 %v2791, %v3477
      %v3531 = vmul.f32 %v2792, %v3481
      %v3532 = vmul.f32 %v2789, %v3477
      %v3533 = vmul.f32 %v2790, %v3481
      %v3534 = vmul.f32 %v2787, %v3477
      %v3535 = vmul.f32 %v2788, %v3481
      %v3536 = vmul.f32 %v2785, %v3477
      %v3537 = vmul.f32 %v2786, %v3481
      %v3538 = vmul.f32 %v2783, %v3477
      %v3539 = vmul.f32 %v2784, %v3481
      %v3540 = vmul.f32 %v2781, %v3477
      %v3541 = vmul.f32 %v2782, %v3481
      %v3542 = vmul.f32 %v2779, %v3477
      %v3543 = vmul.f32 %v2780, %v3481
      %v3544 = vmul.f32 %v2777, %v3477
      %v3545 = vmul.f32 %v2778, %v3481
      %v3546 = vlaneseq
      %v3547 = vshrl.u32 %v3546, 7
      %v3548 = vsub.s32 4, %v3547
      %v3549 = vrot.slane %v1938, %v3548
      %v3550 = vlaneseq
      %v3551 = vshrl.u32 %v3550, 7
      %v3552 = vsub.s32 4, %v3551
      %v3553 = vrot.slane %v1939, %v3552
      %v3554 = vmul.f32 %v2391, %v3549
      %v3555 = vmul.f32 %v2392, %v3553
      %v3556 = vmul.f32 %v2393, %v3549
      %v3557 = vmul.f32 %v2394, %v3553
      %v3558 = vmul.f32 %v2395, %v3549
      %v3559 = vmul.f32 %v2396, %v3553
      %v3560 = vmul.f32 %v2397, %v3549
      %v3561 = vmul.f32 %v2398, %v3553
      %v3562 = vmul.f32 %v2399, %v3549
      %v3563 = vmul.f32 %v2400, %v3553
      %v3564 = vmul.f32 %v2401, %v3549
      %v3565 = vmul.f32 %v2402, %v3553
      %v3566 = vmul.f32 %v2403, %v3549
      %v3567 = vmul.f32 %v2404, %v3553
      %v3568 = vmul.f32 %v2405, %v3549
      %v3569 = vmul.f32 %v2406, %v3553
      %v3570 = vmul.f32 %v2407, %v3549
      %v3571 = vmul.f32 %v2408, %v3553
      %v3572 = vmul.f32 %v2409, %v3549
      %v3573 = vmul.f32 %v2410, %v3553
      %v3574 = vmul.f32 %v2411, %v3549
      %v3575 = vmul.f32 %v2412, %v3553
      %v3576 = vmul.f32 %v2413, %v3549
      %v3577 = vmul.f32 %v2414, %v3553
      %v3578 = vmul.f32 %v2415, %v3549
      %v3579 = vmul.f32 %v2416, %v3553
      %v3580 = vmul.f32 %v2417, %v3549
      %v3581 = vmul.f32 %v2418, %v3553
      %v3582 = vmul.f32 %v2419, %v3549
      %v3583 = vmul.f32 %v2420, %v3553
      %v3584 = vmul.f32 %v2421, %v3549
      %v3585 = vmul.f32 %v2422, %v3553
      %v3586 = vmul.f32 %v2423, %v3549
      %v3587 = vmul.f32 %v2424, %v3553
      %v3588 = vmul.f32 %v2425, %v3549
      %v3589 = vmul.f32 %v2426, %v3553
      %v3590 = vmul.f32 %v2427, %v3549
      %v3591 = vmul.f32 %v2428, %v3553
      %v3592 = vmul.f32 %v2429, %v3549
      %v3593 = vmul.f32 %v2430, %v3553
      %v3594 = vmul.f32 %v2431, %v3549
      %v3595 = vmul.f32 %v2432, %v3553
      %v3596 = vmul.f32 %v2433, %v3549
      %v3597 = vmul.f32 %v2434, %v3553
      %v3598 = vmul.f32 %v2435, %v3549
      %v3599 = vmul.f32 %v2436, %v3553
      %v3600 = vmul.f32 %v2437, %v3549
      %v3601 = vmul.f32 %v2438, %v3553
      %v3602 = vmul.f32 %v2439, %v3549
      %v3603 = vmul.f32 %v2440, %v3553
      %v3604 = vmul.f32 %v2441, %v3549
      %v3605 = vmul.f32 %v2442, %v3553
      %v3606 = vmul.f32 %v2443, %v3549
      %v3607 = vmul.f32 %v2444, %v3553
      %v3608 = vmul.f32 %v2445, %v3549
      %v3609 = vmul.f32 %v2446, %v3553
      %v3610 = vmul.f32 %v2447, %v3549
      %v3611 = vmul.f32 %v2448, %v3553
      %v3612 = vmul.f32 %v2449, %v3549
      %v3613 = vmul.f32 %v2450, %v3553
      %v3614 = vmul.f32 %v2451, %v3549
      %v3615 = vmul.f32 %v2452, %v3553
      %v3616 = vmul.f32 %v2453, %v3549
      %v3617 = vmul.f32 %v2454, %v3553
      %v3618 = vadd.f32 %v3482, %v3554
      %v3619 = vadd.f32 %v3483, %v3555
      %v3620 = vadd.f32 %v3484, %v3556
      %v3621 = vadd.f32 %v3485, %v3557
      %v3622 = vadd.f32 %v3486, %v3558
      %v3623 = vadd.f32 %v3487, %v3559
      %v3624 = vadd.f32 %v3488, %v3560
      %v3625 = vadd.f32 %v3489, %v3561
      %v3626 = vadd.f32 %v3490, %v3562
      %v3627 = vadd.f32 %v3491, %v3563
      %v3628 = vadd.f32 %v3492, %v3564
      %v3629 = vadd.f32 %v3493, %v3565
      %v3630 = vadd.f32 %v3494, %v3566
      %v3631 = vadd.f32 %v3495, %v3567
      %v3632 = vadd.f32 %v3496, %v3568
      %v3633 = vadd.f32 %v3497, %v3569
      %v3634 = vadd.f32 %v3498, %v3570
      %v3635 = vadd.f32 %v3499, %v3571
      %v3636 = vadd.f32 %v3500, %v3572
      %v3637 = vadd.f32 %v3501, %v3573
      %v3638 = vadd.f32 %v3502, %v3574
      %v3639 = vadd.f32 %v3503, %v3575
      %v3640 = vadd.f32 %v3504, %v3576
      %v3641 = vadd.f32 %v3505, %v3577
      %v3642 = vadd.f32 %v3506, %v3578
      %v3643 = vadd.f32 %v3507, %v3579
      %v3644 = vadd.f32 %v3508, %v3580
      %v3645 = vadd.f32 %v3509, %v3581
      %v3646 = vadd.f32 %v3510, %v3582
      %v3647 = vadd.f32 %v3511, %v3583
      %v3648 = vadd.f32 %v3512, %v3584
      %v3649 = vadd.f32 %v3513, %v3585
      %v3650 = vadd.f32 %v3514, %v3586
      %v3651 = vadd.f32 %v3515, %v3587
      %v3652 = vadd.f32 %v3516, %v3588
      %v3653 = vadd.f32 %v3517, %v3589
      %v3654 = vadd.f32 %v3518, %v3590
      %v3655 = vadd.f32 %v3519, %v3591
      %v3656 = vadd.f32 %v3520, %v3592
      %v3657 = vadd.f32 %v3521, %v3593
      %v3658 = vadd.f32 %v3522, %v3594
      %v3659 = vadd.f32 %v3523, %v3595
      %v3660 = vadd.f32 %v3524, %v3596
      %v3661 = vadd.f32 %v3525, %v3597
      %v3662 = vadd.f32 %v3526, %v3598
      %v3663 = vadd.f32 %v3527, %v3599
      %v3664 = vadd.f32 %v3528, %v3600
      %v3665 = vadd.f32 %v3529, %v3601
      %v3666 = vadd.f32 %v3530, %v3602
      %v3667 = vadd.f32 %v3531, %v3603
      %v3668 = vadd.f32 %v3532, %v3604
      %v3669 = vadd.f32 %v3533, %v3605
      %v3670 = vadd.f32 %v3534, %v3606
      %v3671 = vadd.f32 %v3535, %v3607
      %v3672 = vadd.f32 %v3536, %v3608
      %v3673 = vadd.f32 %v3537, %v3609
      %v3674 = vadd.f32 %v3538, %v3610
      %v3675 = vadd.f32 %v3539, %v3611
      %v3676 = vadd.f32 %v3540, %v3612
      %v3677 = vadd.f32 %v3541, %v3613
      %v3678 = vadd.f32 %v3542, %v3614
      %v3679 = vadd.f32 %v3543, %v3615
      %v3680 = vadd.f32 %v3544, %v3616
      %v3681 = vadd.f32 %v3545, %v3617
      %v3682 = vlaneseq
      %v3683 = vshrl.u32 %v3682, 7
      %v3684 = vsub.s32 5, %v3683
      %v3685 = vrot.slane %v1938, %v3684
      %v3686 = vlaneseq
      %v3687 = vshrl.u32 %v3686, 7
      %v3688 = vsub.s32 5, %v3687
      %v3689 = vrot.slane %v1939, %v3688
      %v3690 = vmul.f32 %v3174, %v3685
      %v3691 = vmul.f32 %v3175, %v3689
      %v3692 = vmul.f32 %v3172, %v3685
      %v3693 = vmul.f32 %v3173, %v3689
      %v3694 = vmul.f32 %v3170, %v3685
      %v3695 = vmul.f32 %v3171, %v3689
      %v3696 = vmul.f32 %v3168, %v3685
      %v3697 = vmul.f32 %v3169, %v3689
      %v3698 = vmul.f32 %v3166, %v3685
      %v3699 = vmul.f32 %v3167, %v3689
      %v3700 = vmul.f32 %v3164, %v3685
      %v3701 = vmul.f32 %v3165, %v3689
      %v3702 = vmul.f32 %v3162, %v3685
      %v3703 = vmul.f32 %v3163, %v3689
      %v3704 = vmul.f32 %v3160, %v3685
      %v3705 = vmul.f32 %v3161, %v3689
      %v3706 = vmul.f32 %v3158, %v3685
      %v3707 = vmul.f32 %v3159, %v3689
      %v3708 = vmul.f32 %v3156, %v3685
      %v3709 = vmul.f32 %v3157, %v3689
      %v3710 = vmul.f32 %v3154, %v3685
      %v3711 = vmul.f32 %v3155, %v3689
      %v3712 = vmul.f32 %v3152, %v3685
      %v3713 = vmul.f32 %v3153, %v3689
      %v3714 = vmul.f32 %v3150, %v3685
      %v3715 = vmul.f32 %v3151, %v3689
      %v3716 = vmul.f32 %v3148, %v3685
      %v3717 = vmul.f32 %v3149, %v3689
      %v3718 = vmul.f32 %v3146, %v3685
      %v3719 = vmul.f32 %v3147, %v3689
      %v3720 = vmul.f32 %v3144, %v3685
      %v3721 = vmul.f32 %v3145, %v3689
      %v3722 = vmul.f32 %v3142, %v3685
      %v3723 = vmul.f32 %v3143, %v3689
      %v3724 = vmul.f32 %v3140, %v3685
      %v3725 = vmul.f32 %v3141, %v3689
      %v3726 = vmul.f32 %v3138, %v3685
      %v3727 = vmul.f32 %v3139, %v3689
      %v3728 = vmul.f32 %v3136, %v3685
      %v3729 = vmul.f32 %v3137, %v3689
      %v3730 = vmul.f32 %v3134, %v3685
      %v3731 = vmul.f32 %v3135, %v3689
      %v3732 = vmul.f32 %v3132, %v3685
      %v3733 = vmul.f32 %v3133, %v3689
      %v3734 = vmul.f32 %v3130, %v3685
      %v3735 = vmul.f32 %v3131, %v3689
      %v3736 = vmul.f32 %v3128, %v3685
      %v3737 = vmul.f32 %v3129, %v3689
      %v3738 = vmul.f32 %v3126, %v3685
      %v3739 = vmul.f32 %v3127, %v3689
      %v3740 = vmul.f32 %v3124, %v3685
      %v3741 = vmul.f32 %v3125, %v3689
      %v3742 = vmul.f32 %v3122, %v3685
      %v3743 = vmul.f32 %v3123, %v3689
      %v3744 = vmul.f32 %v3120, %v3685
      %v3745 = vmul.f32 %v3121, %v3689
      %v3746 = vmul.f32 %v3118, %v3685
      %v3747 = vmul.f32 %v3119, %v3689
      %v3748 = vmul.f32 %v3116, %v3685
      %v3749 = vmul.f32 %v3117, %v3689
      %v3750 = vmul.f32 %v3114, %v3685
      %v3751 = vmul.f32 %v3115, %v3689
      %v3752 = vmul.f32 %v3176, %v3685
      %v3753 = vmul.f32 %v3177, %v3689
      %v3754 = vadd.f32 %v3618, %v3690
      %v3755 = vadd.f32 %v3619, %v3691
      %v3756 = vadd.f32 %v3620, %v3692
      %v3757 = vadd.f32 %v3621, %v3693
      %v3758 = vadd.f32 %v3622, %v3694
      %v3759 = vadd.f32 %v3623, %v3695
      %v3760 = vadd.f32 %v3624, %v3696
      %v3761 = vadd.f32 %v3625, %v3697
      %v3762 = vadd.f32 %v3626, %v3698
      %v3763 = vadd.f32 %v3627, %v3699
      %v3764 = vadd.f32 %v3628, %v3700
      %v3765 = vadd.f32 %v3629, %v3701
      %v3766 = vadd.f32 %v3630, %v3702
      %v3767 = vadd.f32 %v3631, %v3703
      %v3768 = vadd.f32 %v3632, %v3704
      %v3769 = vadd.f32 %v3633, %v3705
      %v3770 = vadd.f32 %v3634, %v3706
      %v3771 = vadd.f32 %v3635, %v3707
      %v3772 = vadd.f32 %v3636, %v3708
      %v3773 = vadd.f32 %v3637, %v3709
      %v3774 = vadd.f32 %v3638, %v3710
      %v3775 = vadd.f32 %v3639, %v3711
      %v3776 = vadd.f32 %v3640, %v3712
      %v3777 = vadd.f32 %v3641, %v3713
      %v3778 = vadd.f32 %v3642, %v3714
      %v3779 = vadd.f32 %v3643, %v3715
      %v3780 = vadd.f32 %v3644, %v3716
      %v3781 = vadd.f32 %v3645, %v3717
      %v3782 = vadd.f32 %v3646, %v3718
      %v3783 = vadd.f32 %v3647, %v3719
      %v3784 = vadd.f32 %v3648, %v3720
      %v3785 = vadd.f32 %v3649, %v3721
      %v3786 = vadd.f32 %v3650, %v3722
      %v3787 = vadd.f32 %v3651, %v3723
      %v3788 = vadd.f32 %v3652, %v3724
      %v3789 = vadd.f32 %v3653, %v3725
      %v3790 = vadd.f32 %v3654, %v3726
      %v3791 = vadd.f32 %v3655, %v3727
      %v3792 = vadd.f32 %v3656, %v3728
      %v3793 = vadd.f32 %v3657, %v3729
      %v3794 = vadd.f32 %v3658, %v3730
      %v3795 = vadd.f32 %v3659, %v3731
      %v3796 = vadd.f32 %v3660, %v3732
      %v3797 = vadd.f32 %v3661, %v3733
      %v3798 = vadd.f32 %v3662, %v3734
      %v3799 = vadd.f32 %v3663, %v3735
      %v3800 = vadd.f32 %v3664, %v3736
      %v3801 = vadd.f32 %v3665, %v3737
      %v3802 = vadd.f32 %v3666, %v3738
      %v3803 = vadd.f32 %v3667, %v3739
      %v3804 = vadd.f32 %v3668, %v3740
      %v3805 = vadd.f32 %v3669, %v3741
      %v3806 = vadd.f32 %v3670, %v3742
      %v3807 = vadd.f32 %v3671, %v3743
      %v3808 = vadd.f32 %v3672, %v3744
      %v3809 = vadd.f32 %v3673, %v3745
      %v3810 = vadd.f32 %v3674, %v3746
      %v3811 = vadd.f32 %v3675, %v3747
      %v3812 = vadd.f32 %v3676, %v3748
      %v3813 = vadd.f32 %v3677, %v3749
      %v3814 = vadd.f32 %v3678, %v3750
      %v3815 = vadd.f32 %v3679, %v3751
      %v3816 = vadd.f32 %v3680, %v3752
      %v3817 = vadd.f32 %v3681, %v3753
      %v3818 = vadd.f32 %v3410, %v3754
      %v3819 = vadd.f32 %v3411, %v3755
      %v3820 = vadd.f32 %v3412, %v3756
      %v3821 = vadd.f32 %v3413, %v3757
      %v3822 = vadd.f32 %v3414, %v3758
      %v3823 = vadd.f32 %v3415, %v3759
      %v3824 = vadd.f32 %v3416, %v3760
      %v3825 = vadd.f32 %v3417, %v3761
      %v3826 = vadd.f32 %v3418, %v3762
      %v3827 = vadd.f32 %v3419, %v3763
      %v3828 = vadd.f32 %v3420, %v3764
      %v3829 = vadd.f32 %v3421, %v3765
      %v3830 = vadd.f32 %v3422, %v3766
      %v3831 = vadd.f32 %v3423, %v3767
      %v3832 = vadd.f32 %v3424, %v3768
      %v3833 = vadd.f32 %v3425, %v3769
      %v3834 = vadd.f32 %v3426, %v3770
      %v3835 = vadd.f32 %v3427, %v3771
      %v3836 = vadd.f32 %v3428, %v3772
      %v3837 = vadd.f32 %v3429, %v3773
      %v3838 = vadd.f32 %v3430, %v3774
      %v3839 = vadd.f32 %v3431, %v3775
      %v3840 = vadd.f32 %v3432, %v3776
      %v3841 = vadd.f32 %v3433, %v3777
      %v3842 = vadd.f32 %v3434, %v3778
      %v3843 = vadd.f32 %v3435, %v3779
      %v3844 = vadd.f32 %v3436, %v3780
      %v3845 = vadd.f32 %v3437, %v3781
      %v3846 = vadd.f32 %v3438, %v3782
      %v3847 = vadd.f32 %v3439, %v3783
      %v3848 = vadd.f32 %v3440, %v3784
      %v3849 = vadd.f32 %v3441, %v3785
      %v3850 = vadd.f32 %v3442, %v3786
      %v3851 = vadd.f32 %v3443, %v3787
      %v3852 = vadd.f32 %v3444, %v3788
      %v3853 = vadd.f32 %v3445, %v3789
      %v3854 = vadd.f32 %v3446, %v3790
      %v3855 = vadd.f32 %v3447, %v3791
      %v3856 = vadd.f32 %v3448, %v3792
      %v3857 = vadd.f32 %v3449, %v3793
      %v3858 = vadd.f32 %v3450, %v3794
      %v3859 = vadd.f32 %v3451, %v3795
      %v3860 = vadd.f32 %v3452, %v3796
      %v3861 = vadd.f32 %v3453, %v3797
      %v3862 = vadd.f32 %v3454, %v3798
      %v3863 = vadd.f32 %v3455, %v3799
      %v3864 = vadd.f32 %v3456, %v3800
      %v3865 = vadd.f32 %v3457, %v3801
      %v3866 = vadd.f32 %v3458, %v3802
      %v3867 = vadd.f32 %v3459, %v3803
      %v3868 = vadd.f32 %v3460, %v3804
      %v3869 = vadd.f32 %v3461, %v3805
      %v3870 = vadd.f32 %v3462, %v3806
      %v3871 = vadd.f32 %v3463, %v3807
      %v3872 = vadd.f32 %v3464, %v3808
      %v3873 = vadd.f32 %v3465, %v3809
      %v3874 = vadd.f32 %v3466, %v3810
      %v3875 = vadd.f32 %v3467, %v3811
      %v3876 = vadd.f32 %v3468, %v3812
      %v3877 = vadd.f32 %v3469, %v3813
      %v3878 = vadd.f32 %v3470, %v3814
      %v3879 = vadd.f32 %v3471, %v3815
      %v3880 = vadd.f32 %v3472, %v3816
      %v3881 = vadd.f32 %v3473, %v3817
      %v3882 = vlaneseq
      %v3883 = vshrl.u32 %v3882, 7
      %v3884 = vsub.s32 6, %v3883
      %v3885 = vrot.slane %v1938, %v3884
      %v3886 = vlaneseq
      %v3887 = vshrl.u32 %v3886, 7
      %v3888 = vsub.s32 6, %v3887
      %v3889 = vrot.slane %v1939, %v3888
      %v3890 = vmul.f32 %v2835, %v3885
      %v3891 = vmul.f32 %v2836, %v3889
      %v3892 = vmul.f32 %v2833, %v3885
      %v3893 = vmul.f32 %v2834, %v3889
      %v3894 = vmul.f32 %v2831, %v3885
      %v3895 = vmul.f32 %v2832, %v3889
      %v3896 = vmul.f32 %v2829, %v3885
      %v3897 = vmul.f32 %v2830, %v3889
      %v3898 = vmul.f32 %v2827, %v3885
      %v3899 = vmul.f32 %v2828, %v3889
      %v3900 = vmul.f32 %v2825, %v3885
      %v3901 = vmul.f32 %v2826, %v3889
      %v3902 = vmul.f32 %v2823, %v3885
      %v3903 = vmul.f32 %v2824, %v3889
      %v3904 = vmul.f32 %v2821, %v3885
      %v3905 = vmul.f32 %v2822, %v3889
      %v3906 = vmul.f32 %v2819, %v3885
      %v3907 = vmul.f32 %v2820, %v3889
      %v3908 = vmul.f32 %v2817, %v3885
      %v3909 = vmul.f32 %v2818, %v3889
      %v3910 = vmul.f32 %v2815, %v3885
      %v3911 = vmul.f32 %v2816, %v3889
      %v3912 = vmul.f32 %v2813, %v3885
      %v3913 = vmul.f32 %v2814, %v3889
      %v3914 = vmul.f32 %v2811, %v3885
      %v3915 = vmul.f32 %v2812, %v3889
      %v3916 = vmul.f32 %v2809, %v3885
      %v3917 = vmul.f32 %v2810, %v3889
      %v3918 = vmul.f32 %v2807, %v3885
      %v3919 = vmul.f32 %v2808, %v3889
      %v3920 = vmul.f32 %v2805, %v3885
      %v3921 = vmul.f32 %v2806, %v3889
      %v3922 = vmul.f32 %v2803, %v3885
      %v3923 = vmul.f32 %v2804, %v3889
      %v3924 = vmul.f32 %v2801, %v3885
      %v3925 = vmul.f32 %v2802, %v3889
      %v3926 = vmul.f32 %v2799, %v3885
      %v3927 = vmul.f32 %v2800, %v3889
      %v3928 = vmul.f32 %v2797, %v3885
      %v3929 = vmul.f32 %v2798, %v3889
      %v3930 = vmul.f32 %v2795, %v3885
      %v3931 = vmul.f32 %v2796, %v3889
      %v3932 = vmul.f32 %v2793, %v3885
      %v3933 = vmul.f32 %v2794, %v3889
      %v3934 = vmul.f32 %v2791, %v3885
      %v3935 = vmul.f32 %v2792, %v3889
      %v3936 = vmul.f32 %v2789, %v3885
      %v3937 = vmul.f32 %v2790, %v3889
      %v3938 = vmul.f32 %v2787, %v3885
      %v3939 = vmul.f32 %v2788, %v3889
      %v3940 = vmul.f32 %v2785, %v3885
      %v3941 = vmul.f32 %v2786, %v3889
      %v3942 = vmul.f32 %v2783, %v3885
      %v3943 = vmul.f32 %v2784, %v3889
      %v3944 = vmul.f32 %v2781, %v3885
      %v3945 = vmul.f32 %v2782, %v3889
      %v3946 = vmul.f32 %v2779, %v3885
      %v3947 = vmul.f32 %v2780, %v3889
      %v3948 = vmul.f32 %v2777, %v3885
      %v3949 = vmul.f32 %v2778, %v3889
      %v3950 = vmul.f32 %v2839, %v3885
      %v3951 = vmul.f32 %v2840, %v3889
      %v3952 = vmul.f32 %v2837, %v3885
      %v3953 = vmul.f32 %v2838, %v3889
      %v3954 = vlaneseq
      %v3955 = vshrl.u32 %v3954, 7
      %v3956 = vsub.s32 7, %v3955
      %v3957 = vrot.slane %v1938, %v3956
      %v3958 = vlaneseq
      %v3959 = vshrl.u32 %v3958, 7
      %v3960 = vsub.s32 7, %v3959
      %v3961 = vrot.slane %v1939, %v3960
      %v3962 = vmul.f32 %v2395, %v3957
      %v3963 = vmul.f32 %v2396, %v3961
      %v3964 = vmul.f32 %v2397, %v3957
      %v3965 = vmul.f32 %v2398, %v3961
      %v3966 = vmul.f32 %v2399, %v3957
      %v3967 = vmul.f32 %v2400, %v3961
      %v3968 = vmul.f32 %v2401, %v3957
      %v3969 = vmul.f32 %v2402, %v3961
      %v3970 = vmul.f32 %v2403, %v3957
      %v3971 = vmul.f32 %v2404, %v3961
      %v3972 = vmul.f32 %v2405, %v3957
      %v3973 = vmul.f32 %v2406, %v3961
      %v3974 = vmul.f32 %v2407, %v3957
      %v3975 = vmul.f32 %v2408, %v3961
      %v3976 = vmul.f32 %v2409, %v3957
      %v3977 = vmul.f32 %v2410, %v3961
      %v3978 = vmul.f32 %v2411, %v3957
      %v3979 = vmul.f32 %v2412, %v3961
      %v3980 = vmul.f32 %v2413, %v3957
      %v3981 = vmul.f32 %v2414, %v3961
      %v3982 = vmul.f32 %v2415, %v3957
      %v3983 = vmul.f32 %v2416, %v3961
      %v3984 = vmul.f32 %v2417, %v3957
      %v3985 = vmul.f32 %v2418, %v3961
      %v3986 = vmul.f32 %v2419, %v3957
      %v3987 = vmul.f32 %v2420, %v3961
      %v3988 = vmul.f32 %v2421, %v3957
      %v3989 = vmul.f32 %v2422, %v3961
      %v3990 = vmul.f32 %v2423, %v3957
      %v3991 = vmul.f32 %v2424, %v3961
      %v3992 = vmul.f32 %v2425, %v3957
      %v3993 = vmul.f32 %v2426, %v3961
      %v3994 = vmul.f32 %v2427, %v3957
      %v3995 = vmul.f32 %v2428, %v3961
      %v3996 = vmul.f32 %v2429, %v3957
      %v3997 = vmul.f32 %v2430, %v3961
      %v3998 = vmul.f32 %v2431, %v3957
      %v3999 = vmul.f32 %v2432, %v3961
      %v4000 = vmul.f32 %v2433, %v3957
      %v4001 = vmul.f32 %v2434, %v3961
      %v4002 = vmul.f32 %v2435, %v3957
      %v4003 = vmul.f32 %v2436, %v3961
      %v4004 = vmul.f32 %v2437, %v3957
      %v4005 = vmul.f32 %v2438, %v3961
      %v4006 = vmul.f32 %v2439, %v3957
      %v4007 = vmul.f32 %v2440, %v3961
      %v4008 = vmul.f32 %v2441, %v3957
      %v4009 = vmul.f32 %v2442, %v3961
      %v4010 = vmul.f32 %v2443, %v3957
      %v4011 = vmul.f32 %v2444, %v3961
      %v4012 = vmul.f32 %v2445, %v3957
      %v4013 = vmul.f32 %v2446, %v3961
      %v4014 = vmul.f32 %v2447, %v3957
      %v4015 = vmul.f32 %v2448, %v3961
      %v4016 = vmul.f32 %v2449, %v3957
      %v4017 = vmul.f32 %v2450, %v3961
      %v4018 = vmul.f32 %v2451, %v3957
      %v4019 = vmul.f32 %v2452, %v3961
      %v4020 = vmul.f32 %v2453, %v3957
      %v4021 = vmul.f32 %v2454, %v3961
      %v4022 = vmul.f32 %v2391, %v3957
      %v4023 = vmul.f32 %v2392, %v3961
      %v4024 = vmul.f32 %v2393, %v3957
      %v4025 = vmul.f32 %v2394, %v3961
      %v4026 = vadd.f32 %v3890, %v3962
      %v4027 = vadd.f32 %v3891, %v3963
      %v4028 = vadd.f32 %v3892, %v3964
      %v4029 = vadd.f32 %v3893, %v3965
      %v4030 = vadd.f32 %v3894, %v3966
      %v4031 = vadd.f32 %v3895, %v3967
      %v4032 = vadd.f32 %v3896, %v3968
      %v4033 = vadd.f32 %v3897, %v3969
      %v4034 = vadd.f32 %v3898, %v3970
      %v4035 = vadd.f32 %v3899, %v3971
      %v4036 = vadd.f32 %v3900, %v3972
      %v4037 = vadd.f32 %v3901, %v3973
      %v4038 = vadd.f32 %v3902, %v3974
      %v4039 = vadd.f32 %v3903, %v3975
      %v4040 = vadd.f32 %v3904, %v3976
      %v4041 = vadd.f32 %v3905, %v3977
      %v4042 = vadd.f32 %v3906, %v3978
      %v4043 = vadd.f32 %v3907, %v3979
      %v4044 = vadd.f32 %v3908, %v3980
      %v4045 = vadd.f32 %v3909, %v3981
      %v4046 = vadd.f32 %v3910, %v3982
      %v4047 = vadd.f32 %v3911, %v3983
      %v4048 = vadd.f32 %v3912, %v3984
      %v4049 = vadd.f32 %v3913, %v3985
      %v4050 = vadd.f32 %v3914, %v3986
      %v4051 = vadd.f32 %v3915, %v3987
      %v4052 = vadd.f32 %v3916, %v3988
      %v4053 = vadd.f32 %v3917, %v3989
      %v4054 = vadd.f32 %v3918, %v3990
      %v4055 = vadd.f32 %v3919, %v3991
      %v4056 = vadd.f32 %v3920, %v3992
      %v4057 = vadd.f32 %v3921, %v3993
      %v4058 = vadd.f32 %v3922, %v3994
      %v4059 = vadd.f32 %v3923, %v3995
      %v4060 = vadd.f32 %v3924, %v3996
      %v4061 = vadd.f32 %v3925, %v3997
      %v4062 = vadd.f32 %v3926, %v3998
      %v4063 = vadd.f32 %v3927, %v3999
      %v4064 = vadd.f32 %v3928, %v4000
      %v4065 = vadd.f32 %v3929, %v4001
      %v4066 = vadd.f32 %v3930, %v4002
      %v4067 = vadd.f32 %v3931, %v4003
      %v4068 = vadd.f32 %v3932, %v4004
      %v4069 = vadd.f32 %v3933, %v4005
      %v4070 = vadd.f32 %v3934, %v4006
      %v4071 = vadd.f32 %v3935, %v4007
      %v4072 = vadd.f32 %v3936, %v4008
      %v4073 = vadd.f32 %v3937, %v4009
      %v4074 = vadd.f32 %v3938, %v4010
      %v4075 = vadd.f32 %v3939, %v4011
      %v4076 = vadd.f32 %v3940, %v4012
      %v4077 = vadd.f32 %v3941, %v4013
      %v4078 = vadd.f32 %v3942, %v4014
      %v4079 = vadd.f32 %v3943, %v4015
      %v4080 = vadd.f32 %v3944, %v4016
      %v4081 = vadd.f32 %v3945, %v4017
      %v4082 = vadd.f32 %v3946, %v4018
      %v4083 = vadd.f32 %v3947, %v4019
      %v4084 = vadd.f32 %v3948, %v4020
      %v4085 = vadd.f32 %v3949, %v4021
      %v4086 = vadd.f32 %v3950, %v4022
      %v4087 = vadd.f32 %v3951, %v4023
      %v4088 = vadd.f32 %v3952, %v4024
      %v4089 = vadd.f32 %v3953, %v4025
      %v4090 = vlaneseq
      %v4091 = vshrl.u32 %v4090, 7
      %v4092 = vsub.s32 0, %v4091
      %v4093 = vrot.slane %v1940, %v4092
      %v4094 = vlaneseq
      %v4095 = vshrl.u32 %v4094, 7
      %v4096 = vsub.s32 0, %v4095
      %v4097 = vrot.slane %v1941, %v4096
      %v4098 = vmul.f32 %v3170, %v4093
      %v4099 = vmul.f32 %v3171, %v4097
      %v4100 = vmul.f32 %v3168, %v4093
      %v4101 = vmul.f32 %v3169, %v4097
      %v4102 = vmul.f32 %v3166, %v4093
      %v4103 = vmul.f32 %v3167, %v4097
      %v4104 = vmul.f32 %v3164, %v4093
      %v4105 = vmul.f32 %v3165, %v4097
      %v4106 = vmul.f32 %v3162, %v4093
      %v4107 = vmul.f32 %v3163, %v4097
      %v4108 = vmul.f32 %v3160, %v4093
      %v4109 = vmul.f32 %v3161, %v4097
      %v4110 = vmul.f32 %v3158, %v4093
      %v4111 = vmul.f32 %v3159, %v4097
      %v4112 = vmul.f32 %v3156, %v4093
      %v4113 = vmul.f32 %v3157, %v4097
      %v4114 = vmul.f32 %v3154, %v4093
      %v4115 = vmul.f32 %v3155, %v4097
      %v4116 = vmul.f32 %v3152, %v4093
      %v4117 = vmul.f32 %v3153, %v4097
      %v4118 = vmul.f32 %v3150, %v4093
      %v4119 = vmul.f32 %v3151, %v4097
      %v4120 = vmul.f32 %v3148, %v4093
      %v4121 = vmul.f32 %v3149, %v4097
      %v4122 = vmul.f32 %v3146, %v4093
      %v4123 = vmul.f32 %v3147, %v4097
      %v4124 = vmul.f32 %v3144, %v4093
      %v4125 = vmul.f32 %v3145, %v4097
      %v4126 = vmul.f32 %v3142, %v4093
      %v4127 = vmul.f32 %v3143, %v4097
      %v4128 = vmul.f32 %v3140, %v4093
      %v4129 = vmul.f32 %v3141, %v4097
      %v4130 = vmul.f32 %v3138, %v4093
      %v4131 = vmul.f32 %v3139, %v4097
      %v4132 = vmul.f32 %v3136, %v4093
      %v4133 = vmul.f32 %v3137, %v4097
      %v4134 = vmul.f32 %v3134, %v4093
      %v4135 = vmul.f32 %v3135, %v4097
      %v4136 = vmul.f32 %v3132, %v4093
      %v4137 = vmul.f32 %v3133, %v4097
      %v4138 = vmul.f32 %v3130, %v4093
      %v4139 = vmul.f32 %v3131, %v4097
      %v4140 = vmul.f32 %v3128, %v4093
      %v4141 = vmul.f32 %v3129, %v4097
      %v4142 = vmul.f32 %v3126, %v4093
      %v4143 = vmul.f32 %v3127, %v4097
      %v4144 = vmul.f32 %v3124, %v4093
      %v4145 = vmul.f32 %v3125, %v4097
      %v4146 = vmul.f32 %v3122, %v4093
      %v4147 = vmul.f32 %v3123, %v4097
      %v4148 = vmul.f32 %v3120, %v4093
      %v4149 = vmul.f32 %v3121, %v4097
      %v4150 = vmul.f32 %v3118, %v4093
      %v4151 = vmul.f32 %v3119, %v4097
      %v4152 = vmul.f32 %v3116, %v4093
      %v4153 = vmul.f32 %v3117, %v4097
      %v4154 = vmul.f32 %v3114, %v4093
      %v4155 = vmul.f32 %v3115, %v4097
      %v4156 = vmul.f32 %v3176, %v4093
      %v4157 = vmul.f32 %v3177, %v4097
      %v4158 = vmul.f32 %v3174, %v4093
      %v4159 = vmul.f32 %v3175, %v4097
      %v4160 = vmul.f32 %v3172, %v4093
      %v4161 = vmul.f32 %v3173, %v4097
      %v4162 = vadd.f32 %v4026, %v4098
      %v4163 = vadd.f32 %v4027, %v4099
      %v4164 = vadd.f32 %v4028, %v4100
      %v4165 = vadd.f32 %v4029, %v4101
      %v4166 = vadd.f32 %v4030, %v4102
      %v4167 = vadd.f32 %v4031, %v4103
      %v4168 = vadd.f32 %v4032, %v4104
      %v4169 = vadd.f32 %v4033, %v4105
      %v4170 = vadd.f32 %v4034, %v4106
      %v4171 = vadd.f32 %v4035, %v4107
      %v4172 = vadd.f32 %v4036, %v4108
      %v4173 = vadd.f32 %v4037, %v4109
      %v4174 = vadd.f32 %v4038, %v4110
      %v4175 = vadd.f32 %v4039, %v4111
      %v4176 = vadd.f32 %v4040, %v4112
      %v4177 = vadd.f32 %v4041, %v4113
      %v4178 = vadd.f32 %v4042, %v4114
      %v4179 = vadd.f32 %v4043, %v4115
      %v4180 = vadd.f32 %v4044, %v4116
      %v4181 = vadd.f32 %v4045, %v4117
      %v4182 = vadd.f32 %v4046, %v4118
      %v4183 = vadd.f32 %v4047, %v4119
      %v4184 = vadd.f32 %v4048, %v4120
      %v4185 = vadd.f32 %v4049, %v4121
      %v4186 = vadd.f32 %v4050, %v4122
      %v4187 = vadd.f32 %v4051, %v4123
      %v4188 = vadd.f32 %v4052, %v4124
      %v4189 = vadd.f32 %v4053, %v4125
      %v4190 = vadd.f32 %v4054, %v4126
      %v4191 = vadd.f32 %v4055, %v4127
      %v4192 = vadd.f32 %v4056, %v4128
      %v4193 = vadd.f32 %v4057, %v4129
      %v4194 = vadd.f32 %v4058, %v4130
      %v4195 = vadd.f32 %v4059, %v4131
      %v4196 = vadd.f32 %v4060, %v4132
      %v4197 = vadd.f32 %v4061, %v4133
      %v4198 = vadd.f32 %v4062, %v4134
      %v4199 = vadd.f32 %v4063, %v4135
      %v4200 = vadd.f32 %v4064, %v4136
      %v4201 = vadd.f32 %v4065, %v4137
      %v4202 = vadd.f32 %v4066, %v4138
      %v4203 = vadd.f32 %v4067, %v4139
      %v4204 = vadd.f32 %v4068, %v4140
      %v4205 = vadd.f32 %v4069, %v4141
      %v4206 = vadd.f32 %v4070, %v4142
      %v4207 = vadd.f32 %v4071, %v4143
      %v4208 = vadd.f32 %v4072, %v4144
      %v4209 = vadd.f32 %v4073, %v4145
      %v4210 = vadd.f32 %v4074, %v4146
      %v4211 = vadd.f32 %v4075, %v4147
      %v4212 = vadd.f32 %v4076, %v4148
      %v4213 = vadd.f32 %v4077, %v4149
      %v4214 = vadd.f32 %v4078, %v4150
      %v4215 = vadd.f32 %v4079, %v4151
      %v4216 = vadd.f32 %v4080, %v4152
      %v4217 = vadd.f32 %v4081, %v4153
      %v4218 = vadd.f32 %v4082, %v4154
      %v4219 = vadd.f32 %v4083, %v4155
      %v4220 = vadd.f32 %v4084, %v4156
      %v4221 = vadd.f32 %v4085, %v4157
      %v4222 = vadd.f32 %v4086, %v4158
      %v4223 = vadd.f32 %v4087, %v4159
      %v4224 = vadd.f32 %v4088, %v4160
      %v4225 = vadd.f32 %v4089, %v4161
      %vm4226 = vcmp.lt.s32.totalorder %v2456, 240
      %vm4227 = vcmp.lt.s32.totalorder %v2457, 240
      %vm4228 = vcmp.lt.s32.totalorder %v2458, 240
      %vm4229 = vcmp.lt.s32.totalorder %v2459, 240
      %vm4230 = vcmp.lt.s32.totalorder %v2460, 240
      %vm4231 = vcmp.lt.s32.totalorder %v2461, 240
      %vm4232 = vcmp.lt.s32.totalorder %v2462, 240
      %vm4233 = vcmp.lt.s32.totalorder %v2463, 240
      %vm4234 = vcmp.lt.s32.totalorder %v2464, 240
      %vm4235 = vcmp.lt.s32.totalorder %v2465, 240
      %vm4236 = vcmp.lt.s32.totalorder %v2466, 240
      %vm4237 = vcmp.lt.s32.totalorder %v2467, 240
      %vm4238 = vcmp.lt.s32.totalorder %v2468, 240
      %vm4239 = vcmp.lt.s32.totalorder %v2469, 240
      %vm4240 = vcmp.lt.s32.totalorder %v2470, 240
      %vm4241 = vcmp.lt.s32.totalorder %v2471, 240
      %vm4242 = vcmp.lt.s32.totalorder %v2472, 240
      %vm4243 = vcmp.lt.s32.totalorder %v2473, 240
      %vm4244 = vcmp.lt.s32.totalorder %v2474, 240
      %vm4245 = vcmp.lt.s32.totalorder %v2475, 240
      %vm4246 = vcmp.lt.s32.totalorder %v2476, 240
      %vm4247 = vcmp.lt.s32.totalorder %v2477, 240
      %vm4248 = vcmp.lt.s32.totalorder %v2478, 240
      %vm4249 = vcmp.lt.s32.totalorder %v2479, 240
      %vm4250 = vcmp.lt.s32.totalorder %v2480, 240
      %vm4251 = vcmp.lt.s32.totalorder %v2481, 240
      %vm4252 = vcmp.lt.s32.totalorder %v2482, 240
      %vm4253 = vcmp.lt.s32.totalorder %v2483, 240
      %vm4254 = vcmp.lt.s32.totalorder %v2484, 240
      %vm4255 = vcmp.lt.s32.totalorder %v2485, 240
      %vm4256 = vcmp.lt.s32.totalorder %v2486, 240
      %vm4257 = vcmp.lt.s32.totalorder %v2487, 240
      %v4258 = vsel %vm4226, %v4162, 0.0
      %v4259 = vsel %vm4226, %v4163, 0.0
      %v4260 = vsel %vm4227, %v4164, 0.0
      %v4261 = vsel %vm4227, %v4165, 0.0
      %v4262 = vsel %vm4228, %v4166, 0.0
      %v4263 = vsel %vm4228, %v4167, 0.0
      %v4264 = vsel %vm4229, %v4168, 0.0
      %v4265 = vsel %vm4229, %v4169, 0.0
      %v4266 = vsel %vm4230, %v4170, 0.0
      %v4267 = vsel %vm4230, %v4171, 0.0
      %v4268 = vsel %vm4231, %v4172, 0.0
      %v4269 = vsel %vm4231, %v4173, 0.0
      %v4270 = vsel %vm4232, %v4174, 0.0
      %v4271 = vsel %vm4232, %v4175, 0.0
      %v4272 = vsel %vm4233, %v4176, 0.0
      %v4273 = vsel %vm4233, %v4177, 0.0
      %v4274 = vsel %vm4234, %v4178, 0.0
      %v4275 = vsel %vm4234, %v4179, 0.0
      %v4276 = vsel %vm4235, %v4180, 0.0
      %v4277 = vsel %vm4235, %v4181, 0.0
      %v4278 = vsel %vm4236, %v4182, 0.0
      %v4279 = vsel %vm4236, %v4183, 0.0
      %v4280 = vsel %vm4237, %v4184, 0.0
      %v4281 = vsel %vm4237, %v4185, 0.0
      %v4282 = vsel %vm4238, %v4186, 0.0
      %v4283 = vsel %vm4238, %v4187, 0.0
      %v4284 = vsel %vm4239, %v4188, 0.0
      %v4285 = vsel %vm4239, %v4189, 0.0
      %v4286 = vsel %vm4240, %v4190, 0.0
      %v4287 = vsel %vm4240, %v4191, 0.0
      %v4288 = vsel %vm4241, %v4192, 0.0
      %v4289 = vsel %vm4241, %v4193, 0.0
      %v4290 = vsel %vm4242, %v4194, 0.0
      %v4291 = vsel %vm4242, %v4195, 0.0
      %v4292 = vsel %vm4243, %v4196, 0.0
      %v4293 = vsel %vm4243, %v4197, 0.0
      %v4294 = vsel %vm4244, %v4198, 0.0
      %v4295 = vsel %vm4244, %v4199, 0.0
      %v4296 = vsel %vm4245, %v4200, 0.0
      %v4297 = vsel %vm4245, %v4201, 0.0
      %v4298 = vsel %vm4246, %v4202, 0.0
      %v4299 = vsel %vm4246, %v4203, 0.0
      %v4300 = vsel %vm4247, %v4204, 0.0
      %v4301 = vsel %vm4247, %v4205, 0.0
      %v4302 = vsel %vm4248, %v4206, 0.0
      %v4303 = vsel %vm4248, %v4207, 0.0
      %v4304 = vsel %vm4249, %v4208, 0.0
      %v4305 = vsel %vm4249, %v4209, 0.0
      %v4306 = vsel %vm4250, %v4210, 0.0
      %v4307 = vsel %vm4250, %v4211, 0.0
      %v4308 = vsel %vm4251, %v4212, 0.0
      %v4309 = vsel %vm4251, %v4213, 0.0
      %v4310 = vsel %vm4252, %v4214, 0.0
      %v4311 = vsel %vm4252, %v4215, 0.0
      %v4312 = vsel %vm4253, %v4216, 0.0
      %v4313 = vsel %vm4253, %v4217, 0.0
      %v4314 = vsel %vm4254, %v4218, 0.0
      %v4315 = vsel %vm4254, %v4219, 0.0
      %v4316 = vsel %vm4255, %v4220, 0.0
      %v4317 = vsel %vm4255, %v4221, 0.0
      %v4318 = vsel %vm4256, %v4222, 0.0
      %v4319 = vsel %vm4256, %v4223, 0.0
      %v4320 = vsel %vm4257, %v4224, 0.0
      %v4321 = vsel %vm4257, %v4225, 0.0
      %v4322 = vadd.f32 %v3818, %v4258
      %v4323 = vadd.f32 %v3819, %v4259
      %v4324 = vadd.f32 %v3820, %v4260
      %v4325 = vadd.f32 %v3821, %v4261
      %v4326 = vadd.f32 %v3822, %v4262
      %v4327 = vadd.f32 %v3823, %v4263
      %v4328 = vadd.f32 %v3824, %v4264
      %v4329 = vadd.f32 %v3825, %v4265
      %v4330 = vadd.f32 %v3826, %v4266
      %v4331 = vadd.f32 %v3827, %v4267
      %v4332 = vadd.f32 %v3828, %v4268
      %v4333 = vadd.f32 %v3829, %v4269
      %v4334 = vadd.f32 %v3830, %v4270
      %v4335 = vadd.f32 %v3831, %v4271
      %v4336 = vadd.f32 %v3832, %v4272
      %v4337 = vadd.f32 %v3833, %v4273
      %v4338 = vadd.f32 %v3834, %v4274
      %v4339 = vadd.f32 %v3835, %v4275
      %v4340 = vadd.f32 %v3836, %v4276
      %v4341 = vadd.f32 %v3837, %v4277
      %v4342 = vadd.f32 %v3838, %v4278
      %v4343 = vadd.f32 %v3839, %v4279
      %v4344 = vadd.f32 %v3840, %v4280
      %v4345 = vadd.f32 %v3841, %v4281
      %v4346 = vadd.f32 %v3842, %v4282
      %v4347 = vadd.f32 %v3843, %v4283
      %v4348 = vadd.f32 %v3844, %v4284
      %v4349 = vadd.f32 %v3845, %v4285
      %v4350 = vadd.f32 %v3846, %v4286
      %v4351 = vadd.f32 %v3847, %v4287
      %v4352 = vadd.f32 %v3848, %v4288
      %v4353 = vadd.f32 %v3849, %v4289
      %v4354 = vadd.f32 %v3850, %v4290
      %v4355 = vadd.f32 %v3851, %v4291
      %v4356 = vadd.f32 %v3852, %v4292
      %v4357 = vadd.f32 %v3853, %v4293
      %v4358 = vadd.f32 %v3854, %v4294
      %v4359 = vadd.f32 %v3855, %v4295
      %v4360 = vadd.f32 %v3856, %v4296
      %v4361 = vadd.f32 %v3857, %v4297
      %v4362 = vadd.f32 %v3858, %v4298
      %v4363 = vadd.f32 %v3859, %v4299
      %v4364 = vadd.f32 %v3860, %v4300
      %v4365 = vadd.f32 %v3861, %v4301
      %v4366 = vadd.f32 %v3862, %v4302
      %v4367 = vadd.f32 %v3863, %v4303
      %v4368 = vadd.f32 %v3864, %v4304
      %v4369 = vadd.f32 %v3865, %v4305
      %v4370 = vadd.f32 %v3866, %v4306
      %v4371 = vadd.f32 %v3867, %v4307
      %v4372 = vadd.f32 %v3868, %v4308
      %v4373 = vadd.f32 %v3869, %v4309
      %v4374 = vadd.f32 %v3870, %v4310
      %v4375 = vadd.f32 %v3871, %v4311
      %v4376 = vadd.f32 %v3872, %v4312
      %v4377 = vadd.f32 %v3873, %v4313
      %v4378 = vadd.f32 %v3874, %v4314
      %v4379 = vadd.f32 %v3875, %v4315
      %v4380 = vadd.f32 %v3876, %v4316
      %v4381 = vadd.f32 %v3877, %v4317
      %v4382 = vadd.f32 %v3878, %v4318
      %v4383 = vadd.f32 %v3879, %v4319
      %v4384 = vadd.f32 %v3880, %v4320
      %v4385 = vadd.f32 %v3881, %v4321
      %v4386 = vlaneseq
      %v4387 = vshrl.u32 %v4386, 7
      %v4388 = vsub.s32 2, %v4387
      %v4389 = vrot.slane %v344, %v4388
      %v4390 = vlaneseq
      %v4391 = vshrl.u32 %v4390, 7
      %v4392 = vsub.s32 2, %v4391
      %v4393 = vrot.slane %v345, %v4392
      %v4394 = vmul.f32 %v4322, %v4389
      %v4395 = vmul.f32 %v4323, %v4393
      %v4396 = vmul.f32 %v4324, %v4389
      %v4397 = vmul.f32 %v4325, %v4393
      %v4398 = vmul.f32 %v4326, %v4389
      %v4399 = vmul.f32 %v4327, %v4393
      %v4400 = vmul.f32 %v4328, %v4389
      %v4401 = vmul.f32 %v4329, %v4393
      %v4402 = vmul.f32 %v4330, %v4389
      %v4403 = vmul.f32 %v4331, %v4393
      %v4404 = vmul.f32 %v4332, %v4389
      %v4405 = vmul.f32 %v4333, %v4393
      %v4406 = vmul.f32 %v4334, %v4389
      %v4407 = vmul.f32 %v4335, %v4393
      %v4408 = vmul.f32 %v4336, %v4389
      %v4409 = vmul.f32 %v4337, %v4393
      %v4410 = vmul.f32 %v4338, %v4389
      %v4411 = vmul.f32 %v4339, %v4393
      %v4412 = vmul.f32 %v4340, %v4389
      %v4413 = vmul.f32 %v4341, %v4393
      %v4414 = vmul.f32 %v4342, %v4389
      %v4415 = vmul.f32 %v4343, %v4393
      %v4416 = vmul.f32 %v4344, %v4389
      %v4417 = vmul.f32 %v4345, %v4393
      %v4418 = vmul.f32 %v4346, %v4389
      %v4419 = vmul.f32 %v4347, %v4393
      %v4420 = vmul.f32 %v4348, %v4389
      %v4421 = vmul.f32 %v4349, %v4393
      %v4422 = vmul.f32 %v4350, %v4389
      %v4423 = vmul.f32 %v4351, %v4393
      %v4424 = vmul.f32 %v4352, %v4389
      %v4425 = vmul.f32 %v4353, %v4393
      %v4426 = vmul.f32 %v4354, %v4389
      %v4427 = vmul.f32 %v4355, %v4393
      %v4428 = vmul.f32 %v4356, %v4389
      %v4429 = vmul.f32 %v4357, %v4393
      %v4430 = vmul.f32 %v4358, %v4389
      %v4431 = vmul.f32 %v4359, %v4393
      %v4432 = vmul.f32 %v4360, %v4389
      %v4433 = vmul.f32 %v4361, %v4393
      %v4434 = vmul.f32 %v4362, %v4389
      %v4435 = vmul.f32 %v4363, %v4393
      %v4436 = vmul.f32 %v4364, %v4389
      %v4437 = vmul.f32 %v4365, %v4393
      %v4438 = vmul.f32 %v4366, %v4389
      %v4439 = vmul.f32 %v4367, %v4393
      %v4440 = vmul.f32 %v4368, %v4389
      %v4441 = vmul.f32 %v4369, %v4393
      %v4442 = vmul.f32 %v4370, %v4389
      %v4443 = vmul.f32 %v4371, %v4393
      %v4444 = vmul.f32 %v4372, %v4389
      %v4445 = vmul.f32 %v4373, %v4393
      %v4446 = vmul.f32 %v4374, %v4389
      %v4447 = vmul.f32 %v4375, %v4393
      %v4448 = vmul.f32 %v4376, %v4389
      %v4449 = vmul.f32 %v4377, %v4393
      %v4450 = vmul.f32 %v4378, %v4389
      %v4451 = vmul.f32 %v4379, %v4393
      %v4452 = vmul.f32 %v4380, %v4389
      %v4453 = vmul.f32 %v4381, %v4393
      %v4454 = vmul.f32 %v4382, %v4389
      %v4455 = vmul.f32 %v4383, %v4393
      %v4456 = vmul.f32 %v4384, %v4389
      %v4457 = vmul.f32 %v4385, %v4393
      %v4458 = vlaneseq
      %v4459 = vshrl.u32 %v4458, 7
      %v4460 = vsub.s32 3, %v4459
      %v4461 = vrot.slane %v344, %v4460
      %v4462 = vlaneseq
      %v4463 = vshrl.u32 %v4462, 7
      %v4464 = vsub.s32 3, %v4463
      %v4465 = vrot.slane %v345, %v4464
      %v4466 = vadd.f32 %v4394, %v4461
      %v4467 = vadd.f32 %v4395, %v4465
      %v4468 = vadd.f32 %v4396, %v4461
      %v4469 = vadd.f32 %v4397, %v4465
      %v4470 = vadd.f32 %v4398, %v4461
      %v4471 = vadd.f32 %v4399, %v4465
      %v4472 = vadd.f32 %v4400, %v4461
      %v4473 = vadd.f32 %v4401, %v4465
      %v4474 = vadd.f32 %v4402, %v4461
      %v4475 = vadd.f32 %v4403, %v4465
      %v4476 = vadd.f32 %v4404, %v4461
      %v4477 = vadd.f32 %v4405, %v4465
      %v4478 = vadd.f32 %v4406, %v4461
      %v4479 = vadd.f32 %v4407, %v4465
      %v4480 = vadd.f32 %v4408, %v4461
      %v4481 = vadd.f32 %v4409, %v4465
      %v4482 = vadd.f32 %v4410, %v4461
      %v4483 = vadd.f32 %v4411, %v4465
      %v4484 = vadd.f32 %v4412, %v4461
      %v4485 = vadd.f32 %v4413, %v4465
      %v4486 = vadd.f32 %v4414, %v4461
      %v4487 = vadd.f32 %v4415, %v4465
      %v4488 = vadd.f32 %v4416, %v4461
      %v4489 = vadd.f32 %v4417, %v4465
      %v4490 = vadd.f32 %v4418, %v4461
      %v4491 = vadd.f32 %v4419, %v4465
      %v4492 = vadd.f32 %v4420, %v4461
      %v4493 = vadd.f32 %v4421, %v4465
      %v4494 = vadd.f32 %v4422, %v4461
      %v4495 = vadd.f32 %v4423, %v4465
      %v4496 = vadd.f32 %v4424, %v4461
      %v4497 = vadd.f32 %v4425, %v4465
      %v4498 = vadd.f32 %v4426, %v4461
      %v4499 = vadd.f32 %v4427, %v4465
      %v4500 = vadd.f32 %v4428, %v4461
      %v4501 = vadd.f32 %v4429, %v4465
      %v4502 = vadd.f32 %v4430, %v4461
      %v4503 = vadd.f32 %v4431, %v4465
      %v4504 = vadd.f32 %v4432, %v4461
      %v4505 = vadd.f32 %v4433, %v4465
      %v4506 = vadd.f32 %v4434, %v4461
      %v4507 = vadd.f32 %v4435, %v4465
      %v4508 = vadd.f32 %v4436, %v4461
      %v4509 = vadd.f32 %v4437, %v4465
      %v4510 = vadd.f32 %v4438, %v4461
      %v4511 = vadd.f32 %v4439, %v4465
      %v4512 = vadd.f32 %v4440, %v4461
      %v4513 = vadd.f32 %v4441, %v4465
      %v4514 = vadd.f32 %v4442, %v4461
      %v4515 = vadd.f32 %v4443, %v4465
      %v4516 = vadd.f32 %v4444, %v4461
      %v4517 = vadd.f32 %v4445, %v4465
      %v4518 = vadd.f32 %v4446, %v4461
      %v4519 = vadd.f32 %v4447, %v4465
      %v4520 = vadd.f32 %v4448, %v4461
      %v4521 = vadd.f32 %v4449, %v4465
      %v4522 = vadd.f32 %v4450, %v4461
      %v4523 = vadd.f32 %v4451, %v4465
      %v4524 = vadd.f32 %v4452, %v4461
      %v4525 = vadd.f32 %v4453, %v4465
      %v4526 = vadd.f32 %v4454, %v4461
      %v4527 = vadd.f32 %v4455, %v4465
      %v4528 = vadd.f32 %v4456, %v4461
      %v4529 = vadd.f32 %v4457, %v4465
      %v4530 = vmax.f32 %v4466, 0.0
      %v4531 = vmax.f32 %v4467, 0.0
      %v4532 = vmax.f32 %v4468, 0.0
      %v4533 = vmax.f32 %v4469, 0.0
      %v4534 = vmax.f32 %v4470, 0.0
      %v4535 = vmax.f32 %v4471, 0.0
      %v4536 = vmax.f32 %v4472, 0.0
      %v4537 = vmax.f32 %v4473, 0.0
      %v4538 = vmax.f32 %v4474, 0.0
      %v4539 = vmax.f32 %v4475, 0.0
      %v4540 = vmax.f32 %v4476, 0.0
      %v4541 = vmax.f32 %v4477, 0.0
      %v4542 = vmax.f32 %v4478, 0.0
      %v4543 = vmax.f32 %v4479, 0.0
      %v4544 = vmax.f32 %v4480, 0.0
      %v4545 = vmax.f32 %v4481, 0.0
      %v4546 = vmax.f32 %v4482, 0.0
      %v4547 = vmax.f32 %v4483, 0.0
      %v4548 = vmax.f32 %v4484, 0.0
      %v4549 = vmax.f32 %v4485, 0.0
      %v4550 = vmax.f32 %v4486, 0.0
      %v4551 = vmax.f32 %v4487, 0.0
      %v4552 = vmax.f32 %v4488, 0.0
      %v4553 = vmax.f32 %v4489, 0.0
      %v4554 = vmax.f32 %v4490, 0.0
      %v4555 = vmax.f32 %v4491, 0.0
      %v4556 = vmax.f32 %v4492, 0.0
      %v4557 = vmax.f32 %v4493, 0.0
      %v4558 = vmax.f32 %v4494, 0.0
      %v4559 = vmax.f32 %v4495, 0.0
      %v4560 = vmax.f32 %v4496, 0.0
      %v4561 = vmax.f32 %v4497, 0.0
      %v4562 = vmax.f32 %v4498, 0.0
      %v4563 = vmax.f32 %v4499, 0.0
      %v4564 = vmax.f32 %v4500, 0.0
      %v4565 = vmax.f32 %v4501, 0.0
      %v4566 = vmax.f32 %v4502, 0.0
      %v4567 = vmax.f32 %v4503, 0.0
      %v4568 = vmax.f32 %v4504, 0.0
      %v4569 = vmax.f32 %v4505, 0.0
      %v4570 = vmax.f32 %v4506, 0.0
      %v4571 = vmax.f32 %v4507, 0.0
      %v4572 = vmax.f32 %v4508, 0.0
      %v4573 = vmax.f32 %v4509, 0.0
      %v4574 = vmax.f32 %v4510, 0.0
      %v4575 = vmax.f32 %v4511, 0.0
      %v4576 = vmax.f32 %v4512, 0.0
      %v4577 = vmax.f32 %v4513, 0.0
      %v4578 = vmax.f32 %v4514, 0.0
      %v4579 = vmax.f32 %v4515, 0.0
      %v4580 = vmax.f32 %v4516, 0.0
      %v4581 = vmax.f32 %v4517, 0.0
      %v4582 = vmax.f32 %v4518, 0.0
      %v4583 = vmax.f32 %v4519, 0.0
      %v4584 = vmax.f32 %v4520, 0.0
      %v4585 = vmax.f32 %v4521, 0.0
      %v4586 = vmax.f32 %v4522, 0.0
      %v4587 = vmax.f32 %v4523, 0.0
      %v4588 = vmax.f32 %v4524, 0.0
      %v4589 = vmax.f32 %v4525, 0.0
      %v4590 = vmax.f32 %v4526, 0.0
      %v4591 = vmax.f32 %v4527, 0.0
      %v4592 = vmax.f32 %v4528, 0.0
      %v4593 = vmax.f32 %v4529, 0.0
      %v4594 = vpack.c.bf16 %v4532, %v4530
      %v4595 = vpack.c.bf16 %v4533, %v4531
      %v4596 = vpack.c.bf16 %v4536, %v4534
      %v4597 = vpack.c.bf16 %v4537, %v4535
      %v4598 = vpack.c.bf16 %v4540, %v4538
      %v4599 = vpack.c.bf16 %v4541, %v4539
      %v4600 = vpack.c.bf16 %v4544, %v4542
      %v4601 = vpack.c.bf16 %v4545, %v4543
      %v4602 = vpack.c.bf16 %v4548, %v4546
      %v4603 = vpack.c.bf16 %v4549, %v4547
      %v4604 = vpack.c.bf16 %v4552, %v4550
      %v4605 = vpack.c.bf16 %v4553, %v4551
      %v4606 = vpack.c.bf16 %v4556, %v4554
      %v4607 = vpack.c.bf16 %v4557, %v4555
      %v4608 = vpack.c.bf16 %v4560, %v4558
      %v4609 = vpack.c.bf16 %v4561, %v4559
      %v4610 = vpack.c.bf16 %v4564, %v4562
      %v4611 = vpack.c.bf16 %v4565, %v4563
      %v4612 = vpack.c.bf16 %v4568, %v4566
      %v4613 = vpack.c.bf16 %v4569, %v4567
      %v4614 = vpack.c.bf16 %v4572, %v4570
      %v4615 = vpack.c.bf16 %v4573, %v4571
      %v4616 = vpack.c.bf16 %v4576, %v4574
      %v4617 = vpack.c.bf16 %v4577, %v4575
      %v4618 = vpack.c.bf16 %v4580, %v4578
      %v4619 = vpack.c.bf16 %v4581, %v4579
      %v4620 = vpack.c.bf16 %v4584, %v4582
      %v4621 = vpack.c.bf16 %v4585, %v4583
      %v4622 = vpack.c.bf16 %v4588, %v4586
      %v4623 = vpack.c.bf16 %v4589, %v4587
      %v4624 = vpack.c.bf16 %v4592, %v4590
      %v4625 = vpack.c.bf16 %v4593, %v4591
      %v4626 = vpack.c.bf16 %v1896, %v1895
      %v4627 = vpack.c.bf16 %v1898, %v1897
      %v4628 = vpack.c.bf16 %v1900, %v1899
      %v4629 = vpack.c.bf16 %v1902, %v1901
      %v4630 = vpack.c.bf16 %v1904, %v1903
      %v4631 = vpack.c.bf16 %v1906, %v1905
      %v4632 = vpack.c.bf16 %v1908, %v1907
      %v4633 = vpack.c.bf16 %v1910, %v1909
      %v4634 = vpack.c.bf16 %v1912, %v1911
      %v4635 = vpack.c.bf16 %v1914, %v1913
      %v4636 = vpack.c.bf16 %v1916, %v1915
      %v4637 = vpack.c.bf16 %v1918, %v1917
      %v4638 = vpack.c.bf16 %v1920, %v1919
      %v4639 = vpack.c.bf16 %v1922, %v1921
      %v4640 = vpack.c.bf16 %v1924, %v1923
      %v4641 = vpack.c.bf16 %v1926, %v1925
      %4642 = vmatprep.subr.bf16.mxu0 0
      %4643 = vmatpush1.bf16.msra.mxu0 %v4626
      %4644 = vmatprep.subr.bf16.mxu0 0
      %4645 = vmatpush1.bf16.msra.mxu0 %v4627
      %4646 = vmatprep.subr.bf16.mxu0 0
      %4647 = vmatpush1.bf16.msra.mxu0 %v4628
      %4648 = vmatprep.subr.bf16.mxu0 0
      %4649 = vmatpush1.bf16.msra.mxu0 %v4629
      %4650 = vmatprep.subr.bf16.mxu0 0
      %4651 = vmatpush1.bf16.msra.mxu0 %v4630
      %4652 = vmatprep.subr.bf16.mxu0 0
      %4653 = vmatpush1.bf16.msra.mxu0 %v4631
      %4654 = vmatprep.subr.bf16.mxu0 0
      %4655 = vmatpush1.bf16.msra.mxu0 %v4632
      %4656 = vmatprep.subr.bf16.mxu0 0
      %4657 = vmatpush1.bf16.msra.mxu0 %v4633
      %4658 = vmatprep.subr.bf16.mxu0 0
      %4659 = vmatpush1.bf16.msra.mxu0 %v4634
      %4660 = vmatprep.subr.bf16.mxu0 0
      %4661 = vmatpush1.bf16.msra.mxu0 %v4635
      %4662 = vmatprep.subr.bf16.mxu0 0
      %4663 = vmatpush1.bf16.msra.mxu0 %v4636
      %4664 = vmatprep.subr.bf16.mxu0 0
      %4665 = vmatpush1.bf16.msra.mxu0 %v4637
      %4666 = vmatprep.subr.bf16.mxu0 0
      %4667 = vmatpush1.bf16.msra.mxu0 %v4638
      %4668 = vmatprep.subr.bf16.mxu0 0
      %4669 = vmatpush1.bf16.msra.mxu0 %v4639
      %4670 = vmatprep.subr.bf16.mxu0 0
      %4671 = vmatpush1.bf16.msra.mxu0 %v4640
      %4672 = vmatprep.subr.bf16.mxu0 0
      %4673 = vmatpush1.bf16.msra.mxu0 %v4641
      %4674 = vmatprep.mubr.bf16.mxu0 %v4595
      %4675 = vmatmul.mubr.bf16.gmra.mrb[0].mxu0 %v4594
      %v4676 = vpop.f32.mrb[0].mxu0
      %v4677 = vadd.f32 0.0, %v4676
      %v4678 = vpop.f32.mrb[0].mxu0
      %v4679 = vpop.f32.mrb[0].mxu0
      %v4680 = vadd.f32 0.0, %v4679
      %v4681 = vpop.f32.mrb[0].mxu0
      %4682 = vmatprep.mubr.bf16.mxu0 %v4597
      %4683 = vmatmul.mubr.bf16.gmra.mrb[0].mxu0 %v4596
      %v4684 = vpop.f32.mrb[0].mxu0
      %v4685 = vadd.f32 0.0, %v4684
      %v4686 = vpop.f32.mrb[0].mxu0
      %v4687 = vpop.f32.mrb[0].mxu0
      %v4688 = vadd.f32 0.0, %v4687
      %v4689 = vpop.f32.mrb[0].mxu0
      %4690 = vmatprep.mubr.bf16.mxu0 %v4599
      %4691 = vmatmul.mubr.bf16.gmra.mrb[0].mxu0 %v4598
      %v4692 = vpop.f32.mrb[0].mxu0
      %v4693 = vadd.f32 0.0, %v4692
      %v4694 = vpop.f32.mrb[0].mxu0
      %v4695 = vpop.f32.mrb[0].mxu0
      %v4696 = vadd.f32 0.0, %v4695
      %v4697 = vpop.f32.mrb[0].mxu0
      %4698 = vmatprep.mubr.bf16.mxu0 %v4601
      %4699 = vmatmul.mubr.bf16.gmra.mrb[0].mxu0 %v4600
      %v4700 = vpop.f32.mrb[0].mxu0
      %v4701 = vadd.f32 0.0, %v4700
      %v4702 = vpop.f32.mrb[0].mxu0
      %v4703 = vpop.f32.mrb[0].mxu0
      %v4704 = vadd.f32 0.0, %v4703
      %v4705 = vpop.f32.mrb[0].mxu0
      %4706 = vmatprep.mubr.bf16.mxu0 %v4603
      %4707 = vmatmul.mubr.bf16.gmra.mrb[0].mxu0 %v4602
      %v4708 = vpop.f32.mrb[0].mxu0
      %v4709 = vadd.f32 0.0, %v4708
      %v4710 = vpop.f32.mrb[0].mxu0
      %v4711 = vpop.f32.mrb[0].mxu0
      %v4712 = vadd.f32 0.0, %v4711
      %v4713 = vpop.f32.mrb[0].mxu0
      %4714 = vmatprep.mubr.bf16.mxu0 %v4605
      %4715 = vmatmul.mubr.bf16.gmra.mrb[0].mxu0 %v4604
      %v4716 = vpop.f32.mrb[0].mxu0
      %v4717 = vadd.f32 0.0, %v4716
      %v4718 = vpop.f32.mrb[0].mxu0
      %v4719 = vpop.f32.mrb[0].mxu0
      %v4720 = vadd.f32 0.0, %v4719
      %v4721 = vpop.f32.mrb[0].mxu0
      %4722 = vmatprep.mubr.bf16.mxu0 %v4607
      %4723 = vmatmul.mubr.bf16.gmra.mrb[0].mxu0 %v4606
      %v4724 = vpop.f32.mrb[0].mxu0
      %v4725 = vadd.f32 0.0, %v4724
      %v4726 = vpop.f32.mrb[0].mxu0
      %v4727 = vpop.f32.mrb[0].mxu0
      %v4728 = vadd.f32 0.0, %v4727
      %v4729 = vpop.f32.mrb[0].mxu0
      %4730 = vmatprep.mubr.bf16.mxu0 %v4609
      %4731 = vmatmul.mubr.bf16.gmra.mrb[0].mxu0 %v4608
      %v4732 = vpop.f32.mrb[0].mxu0
      %v4733 = vadd.f32 0.0, %v4732
      %v4734 = vpop.f32.mrb[0].mxu0
      %v4735 = vpop.f32.mrb[0].mxu0
      %v4736 = vadd.f32 0.0, %v4735
      %v4737 = vpop.f32.mrb[0].mxu0
      %4738 = vmatprep.mubr.bf16.mxu0 %v4611
      %4739 = vmatmul.mubr.bf16.gmra.mrb[0].mxu0 %v4610
      %v4740 = vpop.f32.mrb[0].mxu0
      %v4741 = vadd.f32 0.0, %v4740
      %v4742 = vpop.f32.mrb[0].mxu0
      %v4743 = vpop.f32.mrb[0].mxu0
      %v4744 = vadd.f32 0.0, %v4743
      %v4745 = vpop.f32.mrb[0].mxu0
      %4746 = vmatprep.mubr.bf16.mxu0 %v4613
      %4747 = vmatmul.mubr.bf16.gmra.mrb[0].mxu0 %v4612
      %v4748 = vpop.f32.mrb[0].mxu0
      %v4749 = vadd.f32 0.0, %v4748
      %v4750 = vpop.f32.mrb[0].mxu0
      %v4751 = vpop.f32.mrb[0].mxu0
      %v4752 = vadd.f32 0.0, %v4751
      %v4753 = vpop.f32.mrb[0].mxu0
      %4754 = vmatprep.mubr.bf16.mxu0 %v4615
      %4755 = vmatmul.mubr.bf16.gmra.mrb[0].mxu0 %v4614
      %v4756 = vpop.f32.mrb[0].mxu0
      %v4757 = vadd.f32 0.0, %v4756
      %v4758 = vpop.f32.mrb[0].mxu0
      %v4759 = vpop.f32.mrb[0].mxu0
      %v4760 = vadd.f32 0.0, %v4759
      %v4761 = vpop.f32.mrb[0].mxu0
      %4762 = vmatprep.mubr.bf16.mxu0 %v4617
      %4763 = vmatmul.mubr.bf16.gmra.mrb[0].mxu0 %v4616
      %v4764 = vpop.f32.mrb[0].mxu0
      %v4765 = vadd.f32 0.0, %v4764
      %v4766 = vpop.f32.mrb[0].mxu0
      %v4767 = vpop.f32.mrb[0].mxu0
      %v4768 = vadd.f32 0.0, %v4767
      %v4769 = vpop.f32.mrb[0].mxu0
      %4770 = vmatprep.mubr.bf16.mxu0 %v4619
      %4771 = vmatmul.mubr.bf16.gmra.mrb[0].mxu0 %v4618
      %v4772 = vpop.f32.mrb[0].mxu0
      %v4773 = vadd.f32 0.0, %v4772
      %v4774 = vpop.f32.mrb[0].mxu0
      %v4775 = vpop.f32.mrb[0].mxu0
      %v4776 = vadd.f32 0.0, %v4775
      %v4777 = vpop.f32.mrb[0].mxu0
      %4778 = vmatprep.mubr.bf16.mxu0 %v4621
      %4779 = vmatmul.mubr.bf16.gmra.mrb[0].mxu0 %v4620
      %v4780 = vpop.f32.mrb[0].mxu0
      %v4781 = vadd.f32 0.0, %v4780
      %v4782 = vpop.f32.mrb[0].mxu0
      %v4783 = vpop.f32.mrb[0].mxu0
      %v4784 = vadd.f32 0.0, %v4783
      %v4785 = vpop.f32.mrb[0].mxu0
      %4786 = vmatprep.mubr.bf16.mxu0 %v4623
      %4787 = vmatmul.mubr.bf16.gmra.mrb[0].mxu0 %v4622
      %v4788 = vpop.f32.mrb[0].mxu0
      %v4789 = vadd.f32 0.0, %v4788
      %v4790 = vpop.f32.mrb[0].mxu0
      %v4791 = vpop.f32.mrb[0].mxu0
      %v4792 = vadd.f32 0.0, %v4791
      %v4793 = vpop.f32.mrb[0].mxu0
      %4794 = vmatprep.mubr.bf16.mxu0 %v4625
      %4795 = vmatmul.mubr.bf16.gmra.mrb[0].mxu0 %v4624
      %v4796 = vpop.f32.mrb[0].mxu0
      %v4797 = vadd.f32 0.0, %v4796
      %v4798 = vpop.f32.mrb[0].mxu0
      %v4799 = vpop.f32.mrb[0].mxu0
      %v4800 = vadd.f32 0.0, %v4799
      %v4801 = vpop.f32.mrb[0].mxu0
      %4802 = vdwg.mxu0
      %v4803 = vlaneseq
      %v4804 = vshrl.u32 %v4803, 7
      %v4805 = vsub.s32 4, %v4804
      %v4806 = vrot.slane %v344, %v4805
      %v4807 = vmul.f32 %v4677, %v4806
      %v4808 = vmul.f32 %v4680, %v4806
      %v4809 = vmul.f32 %v4685, %v4806
      %v4810 = vmul.f32 %v4688, %v4806
      %v4811 = vmul.f32 %v4693, %v4806
      %v4812 = vmul.f32 %v4696, %v4806
      %v4813 = vmul.f32 %v4701, %v4806
      %v4814 = vmul.f32 %v4704, %v4806
      %v4815 = vmul.f32 %v4709, %v4806
      %v4816 = vmul.f32 %v4712, %v4806
      %v4817 = vmul.f32 %v4717, %v4806
      %v4818 = vmul.f32 %v4720, %v4806
      %v4819 = vmul.f32 %v4725, %v4806
      %v4820 = vmul.f32 %v4728, %v4806
      %v4821 = vmul.f32 %v4733, %v4806
      %v4822 = vmul.f32 %v4736, %v4806
      %v4823 = vmul.f32 %v4741, %v4806
      %v4824 = vmul.f32 %v4744, %v4806
      %v4825 = vmul.f32 %v4749, %v4806
      %v4826 = vmul.f32 %v4752, %v4806
      %v4827 = vmul.f32 %v4757, %v4806
      %v4828 = vmul.f32 %v4760, %v4806
      %v4829 = vmul.f32 %v4765, %v4806
      %v4830 = vmul.f32 %v4768, %v4806
      %v4831 = vmul.f32 %v4773, %v4806
      %v4832 = vmul.f32 %v4776, %v4806
      %v4833 = vmul.f32 %v4781, %v4806
      %v4834 = vmul.f32 %v4784, %v4806
      %v4835 = vmul.f32 %v4789, %v4806
      %v4836 = vmul.f32 %v4792, %v4806
      %v4837 = vmul.f32 %v4797, %v4806
      %v4838 = vmul.f32 %v4800, %v4806
      %v4839 = vlaneseq
      %v4840 = vshrl.u32 %v4839, 7
      %v4841 = vsub.s32 5, %v4840
      %v4842 = vrot.slane %v344, %v4841
      %v4843 = vadd.f32 %v4807, %v4842
      %v4844 = vadd.f32 %v4808, %v4842
      %v4845 = vadd.f32 %v4809, %v4842
      %v4846 = vadd.f32 %v4810, %v4842
      %v4847 = vadd.f32 %v4811, %v4842
      %v4848 = vadd.f32 %v4812, %v4842
      %v4849 = vadd.f32 %v4813, %v4842
      %v4850 = vadd.f32 %v4814, %v4842
      %v4851 = vadd.f32 %v4815, %v4842
      %v4852 = vadd.f32 %v4816, %v4842
      %v4853 = vadd.f32 %v4817, %v4842
      %v4854 = vadd.f32 %v4818, %v4842
      %v4855 = vadd.f32 %v4819, %v4842
      %v4856 = vadd.f32 %v4820, %v4842
      %v4857 = vadd.f32 %v4821, %v4842
      %v4858 = vadd.f32 %v4822, %v4842
      %v4859 = vadd.f32 %v4823, %v4842
      %v4860 = vadd.f32 %v4824, %v4842
      %v4861 = vadd.f32 %v4825, %v4842
      %v4862 = vadd.f32 %v4826, %v4842
      %v4863 = vadd.f32 %v4827, %v4842
      %v4864 = vadd.f32 %v4828, %v4842
      %v4865 = vadd.f32 %v4829, %v4842
      %v4866 = vadd.f32 %v4830, %v4842
      %v4867 = vadd.f32 %v4831, %v4842
      %v4868 = vadd.f32 %v4832, %v4842
      %v4869 = vadd.f32 %v4833, %v4842
      %v4870 = vadd.f32 %v4834, %v4842
      %v4871 = vadd.f32 %v4835, %v4842
      %v4872 = vadd.f32 %v4836, %v4842
      %v4873 = vadd.f32 %v4837, %v4842
      %v4874 = vadd.f32 %v4838, %v4842
      %v4875 = vadd.f32 %v4843, %v312
      %v4876 = vadd.f32 %v4844, %v313
      %v4877 = vadd.f32 %v4845, %v314
      %v4878 = vadd.f32 %v4846, %v315
      %v4879 = vadd.f32 %v4847, %v316
      %v4880 = vadd.f32 %v4848, %v317
      %v4881 = vadd.f32 %v4849, %v318
      %v4882 = vadd.f32 %v4850, %v319
      %v4883 = vadd.f32 %v4851, %v320
      %v4884 = vadd.f32 %v4852, %v321
      %v4885 = vadd.f32 %v4853, %v322
      %v4886 = vadd.f32 %v4854, %v323
      %v4887 = vadd.f32 %v4855, %v324
      %v4888 = vadd.f32 %v4856, %v325
      %v4889 = vadd.f32 %v4857, %v326
      %v4890 = vadd.f32 %v4858, %v327
      %v4891 = vadd.f32 %v4859, %v328
      %v4892 = vadd.f32 %v4860, %v329
      %v4893 = vadd.f32 %v4861, %v330
      %v4894 = vadd.f32 %v4862, %v331
      %v4895 = vadd.f32 %v4863, %v332
      %v4896 = vadd.f32 %v4864, %v333
      %v4897 = vadd.f32 %v4865, %v334
      %v4898 = vadd.f32 %v4866, %v335
      %v4899 = vadd.f32 %v4867, %v336
      %v4900 = vadd.f32 %v4868, %v337
      %v4901 = vadd.f32 %v4869, %v338
      %v4902 = vadd.f32 %v4870, %v339
      %v4903 = vadd.f32 %v4871, %v340
      %v4904 = vadd.f32 %v4872, %v341
      %v4905 = vadd.f32 %v4873, %v342
      %v4906 = vadd.f32 %v4874, %v343
      %v4907 = vpack.c.bf16 %v4876, %v4875
      %v4908 = vpack.c.bf16 %v4878, %v4877
      %v4909 = vpack.c.bf16 %v4880, %v4879
      %v4910 = vpack.c.bf16 %v4882, %v4881
      %v4911 = vpack.c.bf16 %v4884, %v4883
      %v4912 = vpack.c.bf16 %v4886, %v4885
      %v4913 = vpack.c.bf16 %v4888, %v4887
      %v4914 = vpack.c.bf16 %v4890, %v4889
      %v4915 = vpack.c.bf16 %v4892, %v4891
      %v4916 = vpack.c.bf16 %v4894, %v4893
      %v4917 = vpack.c.bf16 %v4896, %v4895
      %v4918 = vpack.c.bf16 %v4898, %v4897
      %v4919 = vpack.c.bf16 %v4900, %v4899
      %v4920 = vpack.c.bf16 %v4902, %v4901
      %v4921 = vpack.c.bf16 %v4904, %v4903
      %v4922 = vpack.c.bf16 %v4906, %v4905
      %v4939 = vunpack.c.l.b16 %v4907
      %v4940 = vunpack.c.h.b16 %v4907
      %v4941 = vunpack.c.l.b16 %v4908
      %v4942 = vunpack.c.h.b16 %v4908
      %v4943 = vunpack.c.l.b16 %v4909
      %v4944 = vunpack.c.h.b16 %v4909
      %v4945 = vunpack.c.l.b16 %v4910
      %v4946 = vunpack.c.h.b16 %v4910
      %v4947 = vunpack.c.l.b16 %v4911
      %v4948 = vunpack.c.h.b16 %v4911
      %v4949 = vunpack.c.l.b16 %v4912
      %v4950 = vunpack.c.h.b16 %v4912
      %v4951 = vunpack.c.l.b16 %v4913
      %v4952 = vunpack.c.h.b16 %v4913
      %v4953 = vunpack.c.l.b16 %v4914
      %v4954 = vunpack.c.h.b16 %v4914
      %v4955 = vunpack.c.l.b16 %v4915
      %v4956 = vunpack.c.h.b16 %v4915
      %v4957 = vunpack.c.l.b16 %v4916
      %v4958 = vunpack.c.h.b16 %v4916
      %v4959 = vunpack.c.l.b16 %v4917
      %v4960 = vunpack.c.h.b16 %v4917
      %v4961 = vunpack.c.l.b16 %v4918
      %v4962 = vunpack.c.h.b16 %v4918
      %v4963 = vunpack.c.l.b16 %v4919
      %v4964 = vunpack.c.h.b16 %v4919
      %v4965 = vunpack.c.l.b16 %v4920
      %v4966 = vunpack.c.h.b16 %v4920
      %v4967 = vunpack.c.l.b16 %v4921
      %v4968 = vunpack.c.h.b16 %v4921
      %v4969 = vunpack.c.l.b16 %v4922
      %v4970 = vunpack.c.h.b16 %v4922
      %v4971 = vpack.c.b16 %v4939, %v4939
      %v4972 = vpack.c.b16 %v4940, %v4940
      %v4973 = vpack.c.b16 %v4941, %v4941
      %v4974 = vpack.c.b16 %v4942, %v4942
      %v4975 = vpack.c.b16 %v4943, %v4943
      %v4976 = vpack.c.b16 %v4944, %v4944
      %v4977 = vpack.c.b16 %v4945, %v4945
      %v4978 = vpack.c.b16 %v4946, %v4946
      %v4979 = vpack.c.b16 %v4947, %v4947
      %v4980 = vpack.c.b16 %v4948, %v4948
      %v4981 = vpack.c.b16 %v4949, %v4949
      %v4982 = vpack.c.b16 %v4950, %v4950
      %v4983 = vpack.c.b16 %v4951, %v4951
      %v4984 = vpack.c.b16 %v4952, %v4952
      %v4985 = vpack.c.b16 %v4953, %v4953
      %v4986 = vpack.c.b16 %v4954, %v4954
      %v4987 = vpack.c.b16 %v4955, %v4955
      %v4988 = vpack.c.b16 %v4956, %v4956
      %v4989 = vpack.c.b16 %v4957, %v4957
      %v4990 = vpack.c.b16 %v4958, %v4958
      %v4991 = vpack.c.b16 %v4959, %v4959
      %v4992 = vpack.c.b16 %v4960, %v4960
      %v4993 = vpack.c.b16 %v4961, %v4961
      %v4994 = vpack.c.b16 %v4962, %v4962
      %v4995 = vpack.c.b16 %v4963, %v4963
      %v4996 = vpack.c.b16 %v4964, %v4964
      %v4997 = vpack.c.b16 %v4965, %v4965
      %v4998 = vpack.c.b16 %v4966, %v4966
      %v4999 = vpack.c.b16 %v4967, %v4967
      %v5000 = vpack.c.b16 %v4968, %v4968
      %v5001 = vpack.c.b16 %v4969, %v4969
      %v5002 = vpack.c.b16 %v4970, %v4970
      %5035 = vst [vmem:[%s278] sm:$0xf] %v4971
      %5036 = vst [vmem:[%s278 + $0x4] sm:$0xf] %v4972
      %5037 = vst [vmem:[%s278 + $0x8] sm:$0xf] %v4973
      %5038 = vst [vmem:[%s278 + $0xc] sm:$0xf] %v4974
      %5039 = vst [vmem:[%s278 + $0x10] sm:$0xf] %v4975
      %5040 = vst [vmem:[%s278 + $0x14] sm:$0xf] %v4976
      %5041 = vst [vmem:[%s278 + $0x18] sm:$0xf] %v4977
      %5042 = vst [vmem:[%s278 + $0x1c] sm:$0xf] %v4978
      %5043 = vst [vmem:[%s278 + $0x20] sm:$0xf] %v4979
      %5044 = vst [vmem:[%s278 + $0x24] sm:$0xf] %v4980
      %5045 = vst [vmem:[%s278 + $0x28] sm:$0xf] %v4981
      %5046 = vst [vmem:[%s278 + $0x2c] sm:$0xf] %v4982
      %5047 = vst [vmem:[%s278 + $0x30] sm:$0xf] %v4983
      %5048 = vst [vmem:[%s278 + $0x34] sm:$0xf] %v4984
      %5049 = vst [vmem:[%s278 + $0x38] sm:$0xf] %v4985
      %5050 = vst [vmem:[%s278 + $0x3c] sm:$0xf] %v4986
      %5051 = vst [vmem:[%s278 + $0x40] sm:$0xf] %v4987
      %5052 = vst [vmem:[%s278 + $0x44] sm:$0xf] %v4988
      %5053 = vst [vmem:[%s278 + $0x48] sm:$0xf] %v4989
      %5054 = vst [vmem:[%s278 + $0x4c] sm:$0xf] %v4990
      %5055 = vst [vmem:[%s278 + $0x50] sm:$0xf] %v4991
      %5056 = vst [vmem:[%s278 + $0x54] sm:$0xf] %v4992
      %5057 = vst [vmem:[%s278 + $0x58] sm:$0xf] %v4993
      %5058 = vst [vmem:[%s278 + $0x5c] sm:$0xf] %v4994
      %5059 = vst [vmem:[%s278 + $0x60] sm:$0xf] %v4995
      %5060 = vst [vmem:[%s278 + $0x64] sm:$0xf] %v4996
      %5061 = vst [vmem:[%s278 + $0x68] sm:$0xf] %v4997
      %5062 = vst [vmem:[%s278 + $0x6c] sm:$0xf] %v4998
      %5063 = vst [vmem:[%s278 + $0x70] sm:$0xf] %v4999
      %5064 = vst [vmem:[%s278 + $0x74] sm:$0xf] %v5000
      %5065 = vst [vmem:[%s278 + $0x78] sm:$0xf] %v5001
      %5066 = vst [vmem:[%s278 + $0x7c] sm:$0xf] %v5002
      %p5067 = scmp.lt.s32.totalorder %s18, 1
      %s5068 = scalar_select %p5067, %s18, 1
      %s5069 = smul.addr %s5068, 32
      %s5070 = smul.addr %s5069, 4
      %s5071 = scalar_lea.vmem %s7, %s5070
      // Predicated region
      $region49: #{cond_conv_residual.1} parent=47 // pred_check
        %p5072 = pneg %p188
      $region50: #{cond_conv_residual.1} parent=47 // pred_check_branch
        %5074 = sbr.rel (%p5072) target = $region52
      $region51: #{cond_conv_residual.1} parent=47 // pred_region
        _
      $region52: #{cond_conv_residual.1} parent=47 // pred_fallthru
        _
    $region48: #{cond_conv_residual.1} parent=5 // pred_fallthru
      _
    %p5075 = scmp.le.s32.totalorder 2, %s13
    // Predicated region
    $region53: #{cond_conv_residual.1} parent=5 // pred_check
      %p5076 = pneg %p5075
    $region54: #{cond_conv_residual.1} parent=5 // pred_check_branch
      %5078 = sbr.rel (%p5076) target = $region56
    $region55: #{cond_conv_residual.1} parent=5 // pred_region
      %s5079 = ssub.s32 %s13, 2
      // Predicated region
      $region57: #{cond_conv_residual.1} parent=55 // pred_check
        %p5080 = pneg %p194
      $region58: #{cond_conv_residual.1} parent=55 // pred_check_branch
        %5082 = sbr.rel (%p5080) target = $region60
      $region59: #{cond_conv_residual.1} parent=55 // pred_region
        %p5083 = scmp.lt.s32.totalorder %s19, 1
        %s5084 = scalar_select %p5083, %s19, 1
        %s5085 = smul.addr %s5084, 32
        %s5086 = smul.addr %s5085, 4
        %s5087 = scalar_lea.vmem %s7, %s5086
      $region60: #{cond_conv_residual.1} parent=55 // pred_fallthru
        _
    $region56: #{cond_conv_residual.1} parent=5 // pred_fallthru
      _
  $region6: #{cond_conv_residual.1} parent=0 // loop_footer
    %s17 = sadd.s32 1, %s13
  $region7: #{cond_conv_residual.1} parent=0 // loop_footer_branch
    %12 = sbr.rel target = $region3
  $region8: #{cond_conv_residual.1} parent=0 // loop_exit
    _

</llo_original>
